<compile_context>
chip_gen: v7x
topology: tpu7x:2x2x1
jax: 0.10.0
libtpu: 0.0.40
codegen_flags: <defaults>
</compile_context>

<pallas_src>
import functools

import numpy as np
import jax
import jax.numpy as jnp
from jax.experimental import pallas as pl
from jax.experimental.pallas import tpu as pltpu


WINDOW_SIZE = 11
SIGMA = 1.5          # create_window() default sigma used by the SSIM module
C1 = 0.01 ** 2
C2 = 0.03 ** 2


def _gaussian_taps(window_size: int, sigma: float):
    """Same construction as gaussian() in the PyTorch code; returns py floats."""
    g = np.array(
        [np.exp(-((x - window_size // 2) ** 2) / float(2 * sigma ** 2))
         for x in range(window_size)],
        dtype=np.float64,
    )
    g = g / g.sum()
    return tuple(float(v) for v in g.astype(np.float32))


def _round_up(x: int, m: int) -> int:
    return (x + m - 1) // m * m


def _ssim_tile_kernel(x1_ref, x2_ref, o_ref, h_ref, *,
                      H, W, TH, THB, Wcols, K, taps):
    # x1_ref, x2_ref : (THB, Wpad)     zero-padded rows for this H-tile
    #                                  (TH output rows + K-1 halo + slack)
    # o_ref          : (8, 128)        per-tile partial SSIM sum (scalar bcast)
    # h_ref          : (5, THB, Wcols) horizontal-pass scratch:
    #                                  [mu1_h, mu2_h, x1x1_h, x2x2_h, x1x2_h]
    mid = K // 2
    t_idx = pl.program_id(1)

    # ---- Phase 1: horizontal K-tap Gaussian (lane axis), 8-row strips.
    # Moments fused into the same tap loop (only 2 misaligned lane slices per
    # tap); symmetric taps paired; accumulators stay register-resident and
    # each h_ref element is written exactly once.
    for s in range(THB // 8):
        r0 = s * 8
        tc = taps[mid]
        a1 = x1_ref[r0:r0 + 8, mid:mid + Wcols]
        a2 = x2_ref[r0:r0 + 8, mid:mid + Wcols]
        h0 = tc * a1
        h1 = tc * a2
        h2 = tc * (a1 * a1)
        h3 = tc * (a2 * a2)
        h4 = tc * (a1 * a2)
        for j in range(mid):
            jr = K - 1 - j
            tj = taps[j]                      # == taps[jr] (Gaussian symmetry)
            a1 = x1_ref[r0:r0 + 8, j:j + Wcols]
            b1 = x1_ref[r0:r0 + 8, jr:jr + Wcols]
            a2 = x2_ref[r0:r0 + 8, j:j + Wcols]
            b2 = x2_ref[r0:r0 + 8, jr:jr + Wcols]
            h0 = h0 + tj * (a1 + b1)
            h1 = h1 + tj * (a2 + b2)
            h2 = h2 + tj * (a1 * a1 + b1 * b1)
            h3 = h3 + tj * (a2 * a2 + b2 * b2)
            h4 = h4 + tj * (a1 * a2 + b1 * b2)
        h_ref[0, r0:r0 + 8, :] = h0
        h_ref[1, r0:r0 + 8, :] = h1
        h_ref[2, r0:r0 + 8, :] = h2
        h_ref[3, r0:r0 + 8, :] = h3
        h_ref[4, r0:r0 + 8, :] = h4

    # ---- Phase 2: vertical K-tap pass (sublane axis) + SSIM map + masked
    # in-kernel mean, processed in 8-row output strips so the five blurred
    # moments stay vreg-resident.  The SSIM map never touches HBM.
    col_ok = jax.lax.broadcasted_iota(jnp.int32, (8, Wcols), 1) < W
    row_iota = jax.lax.broadcasted_iota(jnp.int32, (8, Wcols), 0)
    lane_acc = jnp.zeros((8, 128), jnp.float32)

    def vblur(p, base):
        acc = taps[mid] * h_ref[p, base + mid:base + mid + 8, :]
        for i in range(mid):
            ir = K - 1 - i
            acc = acc + taps[i] * (h_ref[p, base + i:base + i + 8, :] +
                                   h_ref[p, base + ir:base + ir + 8, :])
        return acc

    for s in range(TH // 8):
        base = s * 8
        mu1 = vblur(0, base)
        mu2 = vblur(1, base)
        e11 = vblur(2, base)
        e22 = vblur(3, base)
        e12 = vblur(4, base)
        mu1_sq = mu1 * mu1
        mu2_sq = mu2 * mu2
        mu1_mu2 = mu1 * mu2
        sigma1_sq = e11 - mu1_sq
        sigma2_sq = e22 - mu2_sq
        sigma12 = e12 - mu1_mu2
        num = (2.0 * mu1_mu2 + C1) * (2.0 * sigma12 + C2)
        den = (mu1_sq + mu2_sq + C1) * (sigma1_sq + sigma2_sq + C2)
        ssim_strip = num / den                      # den >= C1*C2 > 0, safe
        row_ok = (row_iota + (t_idx * TH + base)) < H
        contrib = jnp.where(jnp.logical_and(row_ok, col_ok), ssim_strip, 0.0)
        for wb in range(Wcols // 128):              # fold lanes: VPU adds only
            lane_acc = lane_acc + contrib[:, wb * 128:(wb + 1) * 128]

    tile_sum = jnp.sum(lane_acc)                    # one cross-lane reduce/tile
    o_ref[...] = jnp.full((8, 128), tile_sum, jnp.float32)


def _pick_tile_h(H, Wcols, Wpad, budget_bytes=20 * 1024 * 1024):
    """Largest 8-aligned H-tile (capped at 128 rows) whose double-buffered
    inputs + 5-plane horizontal scratch fit a conservative VMEM budget sized
    for v7x (64 MiB physical / 32 MiB default scoped) with headroom."""
    per_row = 4 * (2 * 2 * Wpad + 5 * Wcols)       # f32 bytes per (tile+halo) row
    fit = max(8, (budget_bytes // per_row - 16) // 8 * 8)
    return max(8, min(_round_up(H, 8), 128, fit))


def ssim(img1, img2, window_size: int = WINDOW_SIZE, sigma: float = SIGMA,
         tile_h: int = None):
    """Pallas equivalent of SSIM.forward (returns ssim_map.mean()).
    img1/img2: (C, H, W); the PyTorch module uses channel=1."""
    assert img1.shape == img2.shape and img1.ndim == 3
    C, H, W = img1.shape
    K = window_size
    pad = K // 2
    taps = _gaussian_taps(K, sigma)

    Wcols = _round_up(max(W, 128), 128)       # lane-dense columns (slack masked)
    Wpad = _round_up(Wcols + K - 1, 128)      # padded input columns (zero halo)
    TH = _pick_tile_h(H, Wcols, Wpad) if tile_h is None else max(8, _round_up(tile_h, 8))
    NT = -(-H // TH)                          # number of H-tiles
    THB = TH + _round_up(K - 1, 8)            # tile rows + 8-aligned halo (TH+16)

    rows_total = (NT - 1) * TH + THB
    bottom = rows_total - pad - H
    right = Wpad - pad - W

    def prep(x):
        # One fused pad + overlapping-H-tile gather per input (XLA fuses the
        # pad/slice/stack into a single copy).  Tile t holds padded rows
        # [t*TH, t*TH + THB), so consecutive tiles overlap by the K-1 halo.
        xp = jnp.pad(x.astype(jnp.float32),
                     ((0, 0), (pad, bottom), (pad, right)))
        return jnp.stack([xp[:, t * TH:t * TH + THB, :] for t in range(NT)],
                         axis=1)

    x1_t = prep(img1)    # (C, NT, THB, Wpad)
    x2_t = prep(img2)

    kernel = functools.partial(_ssim_tile_kernel, H=H, W=W, TH=TH, THB=THB,
                               Wcols=Wcols, K=K, taps=taps)

    partials = pl.pallas_call(
        kernel,
        out_shape=jax.ShapeDtypeStruct((C, NT, 8, 128), jnp.float32),
        grid=(C, NT),
        in_specs=[
            pl.BlockSpec((None, None, THB, Wpad), lambda c, t: (c, t, 0, 0)),
            pl.BlockSpec((None, None, THB, Wpad), lambda c, t: (c, t, 0, 0)),
        ],
        out_specs=pl.BlockSpec((None, None, 8, 128), lambda c, t: (c, t, 0, 0)),
        scratch_shapes=[pltpu.VMEM((5, THB, Wcols), jnp.float32)],
        compiler_params=pltpu.CompilerParams(
            dimension_semantics=("parallel", "parallel"),
            vmem_limit_bytes=48 * 1024 * 1024),
    )(x1_t, x2_t)

    # Per-tile partial sums (tiny HBM writeback) -> global mean in the wrapper.
    return jnp.sum(partials[:, :, 0, 0]) / (C * H * W)


def _ref_ssim_np(img1, img2, window_size: int = WINDOW_SIZE, sigma: float = SIGMA):
    """Pure-numpy float64 reference with the exact PyTorch semantics."""
    g = np.asarray(_gaussian_taps(window_size, sigma), dtype=np.float64)
    w2d = np.outer(g, g)
    p = window_size // 2

    def blur(x):
        Cc, Hh, Ww = x.shape
        xp = np.pad(x, ((0, 0), (p, p), (p, p)))
        out = np.zeros_like(x)
        for di in range(window_size):
            for dj in range(window_size):
                out += w2d[di, dj] * xp[:, di:di + Hh, dj:dj + Ww]
        return out

    x1 = np.asarray(img1, np.float64)
    x2 = np.asarray(img2, np.float64)
    mu1, mu2 = blur(x1), blur(x2)
    e11, e22, e12 = blur(x1 * x1), blur(x2 * x2), blur(x1 * x2)
    mu1_sq, mu2_sq, mu1_mu2 = mu1 * mu1, mu2 * mu2, mu1 * mu2
    s1, s2, s12 = e11 - mu1_sq, e22 - mu2_sq, e12 - mu1_mu2
    ssim_map = ((2 * mu1_mu2 + C1) * (2 * s12 + C2)) / \
               ((mu1_sq + mu2_sq + C1) * (s1 + s2 + C2))
    return float(ssim_map.mean())


if __name__ == "__main__":
    key = jax.random.PRNGKey(0)
    k1, k2, k3, k4 = jax.random.split(key, 4)

    # --- Test 1: channel=1 (the SSIM module default), small plane, one tile.
    img1 = jax.random.uniform(k1, (1, 16, 16), dtype=jnp.float32)
    img2 = jax.random.uniform(k2, (1, 16, 16), dtype=jnp.float32)
    out1 = jax.block_until_ready(jax.jit(ssim)(img1, img2))
    assert out1.shape == ()
    np.testing.assert_allclose(
        float(out1), _ref_ssim_np(np.asarray(img1), np.asarray(img2)),
        rtol=1e-4, atol=1e-5)

    # --- Test 2: multi-tile path (3 H-tiles of 32 rows) + row/col mask slack.
    img3 = jax.random.uniform(k3, (1, 90, 144), dtype=jnp.float32)
    img4 = jax.random.uniform(k4, (1, 90, 144), dtype=jnp.float32)
    ssim_t32 = jax.jit(functools.partial(ssim, tile_h=32))
    out2 = jax.block_until_ready(ssim_t32(img3, img4))
    np.testing.assert_allclose(
        float(out2), _ref_ssim_np(np.asarray(img3), np.asarray(img4)),
        rtol=1e-4, atol=1e-5)

    print("KERNEL_OK")
</pallas_src>

<mosaic_0001>
module attributes {stable_mosaic.version = 11 : i64} {
  func.func @_ssim_tile_kernel(%arg0: i32, %arg1: i32, %arg2: memref<1x1x32x256xf32, #tpu.memory_space<vmem>>, %arg3: memref<1x1x32x256xf32, #tpu.memory_space<vmem>>, %arg4: memref<1x1x8x128xf32, #tpu.memory_space<vmem>>, %arg5: memref<5x32x128xf32, #tpu.memory_space<vmem>>) attributes {dimension_semantics = [#tpu.dimension_semantics<parallel>, #tpu.dimension_semantics<parallel>], iteration_bounds = array<i64: 1, 1>, scalar_prefetch = 0 : i64, scratch_operands = 1 : i64, tpu.core_type = #tpu.core_type<tc>, window_params = [{transform_indices = @transform_0, window_bounds = array<i64: 1, 1, 32, 256>}, {transform_indices = @transform_1, window_bounds = array<i64: 1, 1, 32, 256>}, {transform_indices = @transform_2, window_bounds = array<i64: 1, 1, 8, 128>}]} {
    %c0 = arith.constant 0 : index
    %c0_0 = arith.constant 0 : index
    %c0_1 = arith.constant 0 : index
    %c5 = arith.constant 5 : index
    %0 = vector.load %arg2[%c0, %c0_0, %c0_1, %c5] : memref<1x1x32x256xf32, #tpu.memory_space<vmem>>, vector<1x1x8x128xf32>
    %1 = vector.shape_cast %0 : vector<1x1x8x128xf32> to vector<8x128xf32>
    %c0_2 = arith.constant 0 : index
    %c0_3 = arith.constant 0 : index
    %c0_4 = arith.constant 0 : index
    %c5_5 = arith.constant 5 : index
    %2 = vector.load %arg3[%c0_2, %c0_3, %c0_4, %c5_5] : memref<1x1x32x256xf32, #tpu.memory_space<vmem>>, vector<1x1x8x128xf32>
    %3 = vector.shape_cast %2 : vector<1x1x8x128xf32> to vector<8x128xf32>
    %cst = arith.constant 0.266011715 : f32
    %4 = vector.broadcast %cst : f32 to vector<8x128xf32>
    %5 = arith.mulf %4, %1 : vector<8x128xf32>
    %cst_6 = arith.constant 0.266011715 : f32
    %6 = vector.broadcast %cst_6 : f32 to vector<8x128xf32>
    %7 = arith.mulf %6, %3 : vector<8x128xf32>
    %8 = arith.mulf %1, %1 : vector<8x128xf32>
    %cst_7 = arith.constant 0.266011715 : f32
    %9 = vector.broadcast %cst_7 : f32 to vector<8x128xf32>
    %10 = arith.mulf %9, %8 : vector<8x128xf32>
    %11 = arith.mulf %3, %3 : vector<8x128xf32>
    %cst_8 = arith.constant 0.266011715 : f32
    %12 = vector.broadcast %cst_8 : f32 to vector<8x128xf32>
    %13 = arith.mulf %12, %11 : vector<8x128xf32>
    %14 = arith.mulf %1, %3 : vector<8x128xf32>
    %cst_9 = arith.constant 0.266011715 : f32
    %15 = vector.broadcast %cst_9 : f32 to vector<8x128xf32>
    %16 = arith.mulf %15, %14 : vector<8x128xf32>
    %c0_10 = arith.constant 0 : index
    %c0_11 = arith.constant 0 : index
    %c0_12 = arith.constant 0 : index
    %c0_13 = arith.constant 0 : index
    %17 = vector.load %arg2[%c0_10, %c0_11, %c0_12, %c0_13] : memref<1x1x32x256xf32, #tpu.memory_space<vmem>>, vector<1x1x8x128xf32>
    %18 = vector.shape_cast %17 : vector<1x1x8x128xf32> to vector<8x128xf32>
    %c0_14 = arith.constant 0 : index
    %c0_15 = arith.constant 0 : index
    %c0_16 = arith.constant 0 : index
    %c10 = arith.constant 10 : index
    %19 = vector.load %arg2[%c0_14, %c0_15, %c0_16, %c10] : memref<1x1x32x256xf32, #tpu.memory_space<vmem>>, vector<1x1x8x128xf32>
    %20 = vector.shape_cast %19 : vector<1x1x8x128xf32> to vector<8x128xf32>
    %c0_17 = arith.constant 0 : index
    %c0_18 = arith.constant 0 : index
    %c0_19 = arith.constant 0 : index
    %c0_20 = arith.constant 0 : index
    %21 = vector.load %arg3[%c0_17, %c0_18, %c0_19, %c0_20] : memref<1x1x32x256xf32, #tpu.memory_space<vmem>>, vector<1x1x8x128xf32>
    %22 = vector.shape_cast %21 : vector<1x1x8x128xf32> to vector<8x128xf32>
    %c0_21 = arith.constant 0 : index
    %c0_22 = arith.constant 0 : index
    %c0_23 = arith.constant 0 : index
    %c10_24 = arith.constant 10 : index
    %23 = vector.load %arg3[%c0_21, %c0_22, %c0_23, %c10_24] : memref<1x1x32x256xf32, #tpu.memory_space<vmem>>, vector<1x1x8x128xf32>
    %24 = vector.shape_cast %23 : vector<1x1x8x128xf32> to vector<8x128xf32>
    %25 = arith.addf %18, %20 : vector<8x128xf32>
    %cst_25 = arith.constant 0.00102838012 : f32
    %26 = vector.broadcast %cst_25 : f32 to vector<8x128xf32>
    %27 = arith.mulf %26, %25 : vector<8x128xf32>
    %28 = arith.addf %5, %27 : vector<8x128xf32>
    %29 = arith.addf %22, %24 : vector<8x128xf32>
    %cst_26 = arith.constant 0.00102838012 : f32
    %30 = vector.broadcast %cst_26 : f32 to vector<8x128xf32>
    %31 = arith.mulf %30, %29 : vector<8x128xf32>
    %32 = arith.addf %7, %31 : vector<8x128xf32>
    %33 = arith.mulf %18, %18 : vector<8x128xf32>
    %34 = arith.mulf %20, %20 : vector<8x128xf32>
    %35 = arith.addf %33, %34 : vector<8x128xf32>
    %cst_27 = arith.constant 0.00102838012 : f32
    %36 = vector.broadcast %cst_27 : f32 to vector<8x128xf32>
    %37 = arith.mulf %36, %35 : vector<8x128xf32>
    %38 = arith.addf %10, %37 : vector<8x128xf32>
    %39 = arith.mulf %22, %22 : vector<8x128xf32>
    %40 = arith.mulf %24, %24 : vector<8x128xf32>
    %41 = arith.addf %39, %40 : vector<8x128xf32>
    %cst_28 = arith.constant 0.00102838012 : f32
    %42 = vector.broadcast %cst_28 : f32 to vector<8x128xf32>
    %43 = arith.mulf %42, %41 : vector<8x128xf32>
    %44 = arith.addf %13, %43 : vector<8x128xf32>
    %45 = arith.mulf %18, %22 : vector<8x128xf32>
    %46 = arith.mulf %20, %24 : vector<8x128xf32>
    %47 = arith.addf %45, %46 : vector<8x128xf32>
    %cst_29 = arith.constant 0.00102838012 : f32
    %48 = vector.broadcast %cst_29 : f32 to vector<8x128xf32>
    %49 = arith.mulf %48, %47 : vector<8x128xf32>
    %50 = arith.addf %16, %49 : vector<8x128xf32>
    %c0_30 = arith.constant 0 : index
    %c0_31 = arith.constant 0 : index
    %c0_32 = arith.constant 0 : index
    %c1 = arith.constant 1 : index
    %51 = vector.load %arg2[%c0_30, %c0_31, %c0_32, %c1] : memref<1x1x32x256xf32, #tpu.memory_space<vmem>>, vector<1x1x8x128xf32>
    %52 = vector.shape_cast %51 : vector<1x1x8x128xf32> to vector<8x128xf32>
    %c0_33 = arith.constant 0 : index
    %c0_34 = arith.constant 0 : index
    %c0_35 = arith.constant 0 : index
    %c9 = arith.constant 9 : index
    %53 = vector.load %arg2[%c0_33, %c0_34, %c0_35, %c9] : memref<1x1x32x256xf32, #tpu.memory_space<vmem>>, vector<1x1x8x128xf32>
    %54 = vector.shape_cast %53 : vector<1x1x8x128xf32> to vector<8x128xf32>
    %c0_36 = arith.constant 0 : index
    %c0_37 = arith.constant 0 : index
    %c0_38 = arith.constant 0 : index
    %c1_39 = arith.constant 1 : index
    %55 = vector.load %arg3[%c0_36, %c0_37, %c0_38, %c1_39] : memref<1x1x32x256xf32, #tpu.memory_space<vmem>>, vector<1x1x8x128xf32>
    %56 = vector.shape_cast %55 : vector<1x1x8x128xf32> to vector<8x128xf32>
    %c0_40 = arith.constant 0 : index
    %c0_41 = arith.constant 0 : index
    %c0_42 = arith.constant 0 : index
    %c9_43 = arith.constant 9 : index
    %57 = vector.load %arg3[%c0_40, %c0_41, %c0_42, %c9_43] : memref<1x1x32x256xf32, #tpu.memory_space<vmem>>, vector<1x1x8x128xf32>
    %58 = vector.shape_cast %57 : vector<1x1x8x128xf32> to vector<8x128xf32>
    %59 = arith.addf %52, %54 : vector<8x128xf32>
    %cst_44 = arith.constant 0.00759875821 : f32
    %60 = vector.broadcast %cst_44 : f32 to vector<8x128xf32>
    %61 = arith.mulf %60, %59 : vector<8x128xf32>
    %62 = arith.addf %28, %61 : vector<8x128xf32>
    %63 = arith.addf %56, %58 : vector<8x128xf32>
    %cst_45 = arith.constant 0.00759875821 : f32
    %64 = vector.broadcast %cst_45 : f32 to vector<8x128xf32>
    %65 = arith.mulf %64, %63 : vector<8x128xf32>
    %66 = arith.addf %32, %65 : vector<8x128xf32>
    %67 = arith.mulf %52, %52 : vector<8x128xf32>
    %68 = arith.mulf %54, %54 : vector<8x128xf32>
    %69 = arith.addf %67, %68 : vector<8x128xf32>
    %cst_46 = arith.constant 0.00759875821 : f32
    %70 = vector.broadcast %cst_46 : f32 to vector<8x128xf32>
    %71 = arith.mulf %70, %69 : vector<8x128xf32>
    %72 = arith.addf %38, %71 : vector<8x128xf32>
    %73 = arith.mulf %56, %56 : vector<8x128xf32>
    %74 = arith.mulf %58, %58 : vector<8x128xf32>
    %75 = arith.addf %73, %74 : vector<8x128xf32>
    %cst_47 = arith.constant 0.00759875821 : f32
    %76 = vector.broadcast %cst_47 : f32 to vector<8x128xf32>
    %77 = arith.mulf %76, %75 : vector<8x128xf32>
    %78 = arith.addf %44, %77 : vector<8x128xf32>
    %79 = arith.mulf %52, %56 : vector<8x128xf32>
    %80 = arith.mulf %54, %58 : vector<8x128xf32>
    %81 = arith.addf %79, %80 : vector<8x128xf32>
    %cst_48 = arith.constant 0.00759875821 : f32
    %82 = vector.broadcast %cst_48 : f32 to vector<8x128xf32>
    %83 = arith.mulf %82, %81 : vector<8x128xf32>
    %84 = arith.addf %50, %83 : vector<8x128xf32>
    %c0_49 = arith.constant 0 : index
    %c0_50 = arith.constant 0 : index
    %c0_51 = arith.constant 0 : index
    %c2 = arith.constant 2 : index
    %85 = vector.load %arg2[%c0_49, %c0_50, %c0_51, %c2] : memref<1x1x32x256xf32, #tpu.memory_space<vmem>>, vector<1x1x8x128xf32>
    %86 = vector.shape_cast %85 : vector<1x1x8x128xf32> to vector<8x128xf32>
    %c0_52 = arith.constant 0 : index
    %c0_53 = arith.constant 0 : index
    %c0_54 = arith.constant 0 : index
    %c8 = arith.constant 8 : index
    %87 = vector.load %arg2[%c0_52, %c0_53, %c0_54, %c8] : memref<1x1x32x256xf32, #tpu.memory_space<vmem>>, vector<1x1x8x128xf32>
    %88 = vector.shape_cast %87 : vector<1x1x8x128xf32> to vector<8x128xf32>
    %c0_55 = arith.constant 0 : index
    %c0_56 = arith.constant 0 : index
    %c0_57 = arith.constant 0 : index
    %c2_58 = arith.constant 2 : index
    %89 = vector.load %arg3[%c0_55, %c0_56, %c0_57, %c2_58] : memref<1x1x32x256xf32, #tpu.memory_space<vmem>>, vector<1x1x8x128xf32>
    %90 = vector.shape_cast %89 : vector<1x1x8x128xf32> to vector<8x128xf32>
    %c0_59 = arith.constant 0 : index
    %c0_60 = arith.constant 0 : index
    %c0_61 = arith.constant 0 : index
    %c8_62 = arith.constant 8 : index
    %91 = vector.load %arg3[%c0_59, %c0_60, %c0_61, %c8_62] : memref<1x1x32x256xf32, #tpu.memory_space<vmem>>, vector<1x1x8x128xf32>
    %92 = vector.shape_cast %91 : vector<1x1x8x128xf32> to vector<8x128xf32>
    %93 = arith.addf %86, %88 : vector<8x128xf32>
    %cst_63 = arith.constant 0.0360007733 : f32
    %94 = vector.broadcast %cst_63 : f32 to vector<8x128xf32>
    %95 = arith.mulf %94, %93 : vector<8x128xf32>
    %96 = arith.addf %62, %95 : vector<8x128xf32>
    %97 = arith.addf %90, %92 : vector<8x128xf32>
    %cst_64 = arith.constant 0.0360007733 : f32
    %98 = vector.broadcast %cst_64 : f32 to vector<8x128xf32>
    %99 = arith.mulf %98, %97 : vector<8x128xf32>
    %100 = arith.addf %66, %99 : vector<8x128xf32>
    %101 = arith.mulf %86, %86 : vector<8x128xf32>
    %102 = arith.mulf %88, %88 : vector<8x128xf32>
    %103 = arith.addf %101, %102 : vector<8x128xf32>
    %cst_65 = arith.constant 0.0360007733 : f32
    %104 = vector.broadcast %cst_65 : f32 to vector<8x128xf32>
    %105 = arith.mulf %104, %103 : vector<8x128xf32>
    %106 = arith.addf %72, %105 : vector<8x128xf32>
    %107 = arith.mulf %90, %90 : vector<8x128xf32>
    %108 = arith.mulf %92, %92 : vector<8x128xf32>
    %109 = arith.addf %107, %108 : vector<8x128xf32>
    %cst_66 = arith.constant 0.0360007733 : f32
    %110 = vector.broadcast %cst_66 : f32 to vector<8x128xf32>
    %111 = arith.mulf %110, %109 : vector<8x128xf32>
    %112 = arith.addf %78, %111 : vector<8x128xf32>
    %113 = arith.mulf %86, %90 : vector<8x128xf32>
    %114 = arith.mulf %88, %92 : vector<8x128xf32>
    %115 = arith.addf %113, %114 : vector<8x128xf32>
    %cst_67 = arith.constant 0.0360007733 : f32
    %116 = vector.broadcast %cst_67 : f32 to vector<8x128xf32>
    %117 = arith.mulf %116, %115 : vector<8x128xf32>
    %118 = arith.addf %84, %117 : vector<8x128xf32>
    %c0_68 = arith.constant 0 : index
    %c0_69 = arith.constant 0 : index
    %c0_70 = arith.constant 0 : index
    %c3 = arith.constant 3 : index
    %119 = vector.load %arg2[%c0_68, %c0_69, %c0_70, %c3] : memref<1x1x32x256xf32, #tpu.memory_space<vmem>>, vector<1x1x8x128xf32>
    %120 = vector.shape_cast %119 : vector<1x1x8x128xf32> to vector<8x128xf32>
    %c0_71 = arith.constant 0 : index
    %c0_72 = arith.constant 0 : index
    %c0_73 = arith.constant 0 : index
    %c7 = arith.constant 7 : index
    %121 = vector.load %arg2[%c0_71, %c0_72, %c0_73, %c7] : memref<1x1x32x256xf32, #tpu.memory_space<vmem>>, vector<1x1x8x128xf32>
    %122 = vector.shape_cast %121 : vector<1x1x8x128xf32> to vector<8x128xf32>
    %c0_74 = arith.constant 0 : index
    %c0_75 = arith.constant 0 : index
    %c0_76 = arith.constant 0 : index
    %c3_77 = arith.constant 3 : index
    %123 = vector.load %arg3[%c0_74, %c0_75, %c0_76, %c3_77] : memref<1x1x32x256xf32, #tpu.memory_space<vmem>>, vector<1x1x8x128xf32>
    %124 = vector.shape_cast %123 : vector<1x1x8x128xf32> to vector<8x128xf32>
    %c0_78 = arith.constant 0 : index
    %c0_79 = arith.constant 0 : index
    %c0_80 = arith.constant 0 : index
    %c7_81 = arith.constant 7 : index
    %125 = vector.load %arg3[%c0_78, %c0_79, %c0_80, %c7_81] : memref<1x1x32x256xf32, #tpu.memory_space<vmem>>, vector<1x1x8x128xf32>
    %126 = vector.shape_cast %125 : vector<1x1x8x128xf32> to vector<8x128xf32>
    %127 = arith.addf %120, %122 : vector<8x128xf32>
    %cst_82 = arith.constant 0.109360687 : f32
    %128 = vector.broadcast %cst_82 : f32 to vector<8x128xf32>
    %129 = arith.mulf %128, %127 : vector<8x128xf32>
    %130 = arith.addf %96, %129 : vector<8x128xf32>
    %131 = arith.addf %124, %126 : vector<8x128xf32>
    %cst_83 = arith.constant 0.109360687 : f32
    %132 = vector.broadcast %cst_83 : f32 to vector<8x128xf32>
    %133 = arith.mulf %132, %131 : vector<8x128xf32>
    %134 = arith.addf %100, %133 : vector<8x128xf32>
    %135 = arith.mulf %120, %120 : vector<8x128xf32>
    %136 = arith.mulf %122, %122 : vector<8x128xf32>
    %137 = arith.addf %135, %136 : vector<8x128xf32>
    %cst_84 = arith.constant 0.109360687 : f32
    %138 = vector.broadcast %cst_84 : f32 to vector<8x128xf32>
    %139 = arith.mulf %138, %137 : vector<8x128xf32>
    %140 = arith.addf %106, %139 : vector<8x128xf32>
    %141 = arith.mulf %124, %124 : vector<8x128xf32>
    %142 = arith.mulf %126, %126 : vector<8x128xf32>
    %143 = arith.addf %141, %142 : vector<8x128xf32>
    %cst_85 = arith.constant 0.109360687 : f32
    %144 = vector.broadcast %cst_85 : f32 to vector<8x128xf32>
    %145 = arith.mulf %144, %143 : vector<8x128xf32>
    %146 = arith.addf %112, %145 : vector<8x128xf32>
    %147 = arith.mulf %120, %124 : vector<8x128xf32>
    %148 = arith.mulf %122, %126 : vector<8x128xf32>
    %149 = arith.addf %147, %148 : vector<8x128xf32>
    %cst_86 = arith.constant 0.109360687 : f32
    %150 = vector.broadcast %cst_86 : f32 to vector<8x128xf32>
    %151 = arith.mulf %150, %149 : vector<8x128xf32>
    %152 = arith.addf %118, %151 : vector<8x128xf32>
    %c0_87 = arith.constant 0 : index
    %c0_88 = arith.constant 0 : index
    %c0_89 = arith.constant 0 : index
    %c4 = arith.constant 4 : index
    %153 = vector.load %arg2[%c0_87, %c0_88, %c0_89, %c4] : memref<1x1x32x256xf32, #tpu.memory_space<vmem>>, vector<1x1x8x128xf32>
    %154 = vector.shape_cast %153 : vector<1x1x8x128xf32> to vector<8x128xf32>
    %c0_90 = arith.constant 0 : index
    %c0_91 = arith.constant 0 : index
    %c0_92 = arith.constant 0 : index
    %c6 = arith.constant 6 : index
    %155 = vector.load %arg2[%c0_90, %c0_91, %c0_92, %c6] : memref<1x1x32x256xf32, #tpu.memory_space<vmem>>, vector<1x1x8x128xf32>
    %156 = vector.shape_cast %155 : vector<1x1x8x128xf32> to vector<8x128xf32>
    %c0_93 = arith.constant 0 : index
    %c0_94 = arith.constant 0 : index
    %c0_95 = arith.constant 0 : index
    %c4_96 = arith.constant 4 : index
    %157 = vector.load %arg3[%c0_93, %c0_94, %c0_95, %c4_96] : memref<1x1x32x256xf32, #tpu.memory_space<vmem>>, vector<1x1x8x128xf32>
    %158 = vector.shape_cast %157 : vector<1x1x8x128xf32> to vector<8x128xf32>
    %c0_97 = arith.constant 0 : index
    %c0_98 = arith.constant 0 : index
    %c0_99 = arith.constant 0 : index
    %c6_100 = arith.constant 6 : index
    %159 = vector.load %arg3[%c0_97, %c0_98, %c0_99, %c6_100] : memref<1x1x32x256xf32, #tpu.memory_space<vmem>>, vector<1x1x8x128xf32>
    %160 = vector.shape_cast %159 : vector<1x1x8x128xf32> to vector<8x128xf32>
    %161 = arith.addf %154, %156 : vector<8x128xf32>
    %cst_101 = arith.constant 0.213005543 : f32
    %162 = vector.broadcast %cst_101 : f32 to vector<8x128xf32>
    %163 = arith.mulf %162, %161 : vector<8x128xf32>
    %164 = arith.addf %130, %163 : vector<8x128xf32>
    %165 = arith.addf %158, %160 : vector<8x128xf32>
    %cst_102 = arith.constant 0.213005543 : f32
    %166 = vector.broadcast %cst_102 : f32 to vector<8x128xf32>
    %167 = arith.mulf %166, %165 : vector<8x128xf32>
    %168 = arith.addf %134, %167 : vector<8x128xf32>
    %169 = arith.mulf %154, %154 : vector<8x128xf32>
    %170 = arith.mulf %156, %156 : vector<8x128xf32>
    %171 = arith.addf %169, %170 : vector<8x128xf32>
    %cst_103 = arith.constant 0.213005543 : f32
    %172 = vector.broadcast %cst_103 : f32 to vector<8x128xf32>
    %173 = arith.mulf %172, %171 : vector<8x128xf32>
    %174 = arith.addf %140, %173 : vector<8x128xf32>
    %175 = arith.mulf %158, %158 : vector<8x128xf32>
    %176 = arith.mulf %160, %160 : vector<8x128xf32>
    %177 = arith.addf %175, %176 : vector<8x128xf32>
    %cst_104 = arith.constant 0.213005543 : f32
    %178 = vector.broadcast %cst_104 : f32 to vector<8x128xf32>
    %179 = arith.mulf %178, %177 : vector<8x128xf32>
    %180 = arith.addf %146, %179 : vector<8x128xf32>
    %181 = arith.mulf %154, %158 : vector<8x128xf32>
    %182 = arith.mulf %156, %160 : vector<8x128xf32>
    %183 = arith.addf %181, %182 : vector<8x128xf32>
    %cst_105 = arith.constant 0.213005543 : f32
    %184 = vector.broadcast %cst_105 : f32 to vector<8x128xf32>
    %185 = arith.mulf %184, %183 : vector<8x128xf32>
    %186 = arith.addf %152, %185 : vector<8x128xf32>
    %c0_106 = arith.constant 0 : index
    %c0_107 = arith.constant 0 : index
    %c0_108 = arith.constant 0 : index
    %187 = vector.load %arg5[%c0_106, %c0_107, %c0_108] : memref<5x32x128xf32, #tpu.memory_space<vmem>>, vector<1x8x128xf32>
    %188 = vector.shape_cast %187 : vector<1x8x128xf32> to vector<8x128xf32>
    %189 = vector.shape_cast %164 : vector<8x128xf32> to vector<1x8x128xf32>
    tpu.vector_store %arg5[%c0_106, %c0_107, %c0_108], %189 {strides = array<i32>} : memref<5x32x128xf32, #tpu.memory_space<vmem>>, vector<1x8x128xf32>,
    %c1_109 = arith.constant 1 : index
    %c0_110 = arith.constant 0 : index
    %c0_111 = arith.constant 0 : index
    %190 = vector.load %arg5[%c1_109, %c0_110, %c0_111] : memref<5x32x128xf32, #tpu.memory_space<vmem>>, vector<1x8x128xf32>
    %191 = vector.shape_cast %190 : vector<1x8x128xf32> to vector<8x128xf32>
    %192 = vector.shape_cast %168 : vector<8x128xf32> to vector<1x8x128xf32>
    tpu.vector_store %arg5[%c1_109, %c0_110, %c0_111], %192 {strides = array<i32>} : memref<5x32x128xf32, #tpu.memory_space<vmem>>, vector<1x8x128xf32>,
    %c2_112 = arith.constant 2 : index
    %c0_113 = arith.constant 0 : index
    %c0_114 = arith.constant 0 : index
    %193 = vector.load %arg5[%c2_112, %c0_113, %c0_114] : memref<5x32x128xf32, #tpu.memory_space<vmem>>, vector<1x8x128xf32>
    %194 = vector.shape_cast %193 : vector<1x8x128xf32> to vector<8x128xf32>
    %195 = vector.shape_cast %174 : vector<8x128xf32> to vector<1x8x128xf32>
    tpu.vector_store %arg5[%c2_112, %c0_113, %c0_114], %195 {strides = array<i32>} : memref<5x32x128xf32, #tpu.memory_space<vmem>>, vector<1x8x128xf32>,
    %c3_115 = arith.constant 3 : index
    %c0_116 = arith.constant 0 : index
    %c0_117 = arith.constant 0 : index
    %196 = vector.load %arg5[%c3_115, %c0_116, %c0_117] : memref<5x32x128xf32, #tpu.memory_space<vmem>>, vector<1x8x128xf32>
    %197 = vector.shape_cast %196 : vector<1x8x128xf32> to vector<8x128xf32>
    %198 = vector.shape_cast %180 : vector<8x128xf32> to vector<1x8x128xf32>
    tpu.vector_store %arg5[%c3_115, %c0_116, %c0_117], %198 {strides = array<i32>} : memref<5x32x128xf32, #tpu.memory_space<vmem>>, vector<1x8x128xf32>,
    %c4_118 = arith.constant 4 : index
    %c0_119 = arith.constant 0 : index
    %c0_120 = arith.constant 0 : index
    %199 = vector.load %arg5[%c4_118, %c0_119, %c0_120] : memref<5x32x128xf32, #tpu.memory_space<vmem>>, vector<1x8x128xf32>
    %200 = vector.shape_cast %199 : vector<1x8x128xf32> to vector<8x128xf32>
    %201 = vector.shape_cast %186 : vector<8x128xf32> to vector<1x8x128xf32>
    tpu.vector_store %arg5[%c4_118, %c0_119, %c0_120], %201 {strides = array<i32>} : memref<5x32x128xf32, #tpu.memory_space<vmem>>, vector<1x8x128xf32>,
    %c0_121 = arith.constant 0 : index
    %c0_122 = arith.constant 0 : index
    %c8_123 = arith.constant 8 : index
    %c5_124 = arith.constant 5 : index
    %202 = vector.load %arg2[%c0_121, %c0_122, %c8_123, %c5_124] : memref<1x1x32x256xf32, #tpu.memory_space<vmem>>, vector<1x1x8x128xf32>
    %203 = vector.shape_cast %202 : vector<1x1x8x128xf32> to vector<8x128xf32>
    %c0_125 = arith.constant 0 : index
    %c0_126 = arith.constant 0 : index
    %c8_127 = arith.constant 8 : index
    %c5_128 = arith.constant 5 : index
    %204 = vector.load %arg3[%c0_125, %c0_126, %c8_127, %c5_128] : memref<1x1x32x256xf32, #tpu.memory_space<vmem>>, vector<1x1x8x128xf32>
    %205 = vector.shape_cast %204 : vector<1x1x8x128xf32> to vector<8x128xf32>
    %cst_129 = arith.constant 0.266011715 : f32
    %206 = vector.broadcast %cst_129 : f32 to vector<8x128xf32>
    %207 = arith.mulf %206, %203 : vector<8x128xf32>
    %cst_130 = arith.constant 0.266011715 : f32
    %208 = vector.broadcast %cst_130 : f32 to vector<8x128xf32>
    %209 = arith.mulf %208, %205 : vector<8x128xf32>
    %210 = arith.mulf %203, %203 : vector<8x128xf32>
    %cst_131 = arith.constant 0.266011715 : f32
    %211 = vector.broadcast %cst_131 : f32 to vector<8x128xf32>
    %212 = arith.mulf %211, %210 : vector<8x128xf32>
    %213 = arith.mulf %205, %205 : vector<8x128xf32>
    %cst_132 = arith.constant 0.266011715 : f32
    %214 = vector.broadcast %cst_132 : f32 to vector<8x128xf32>
    %215 = arith.mulf %214, %213 : vector<8x128xf32>
    %216 = arith.mulf %203, %205 : vector<8x128xf32>
    %cst_133 = arith.constant 0.266011715 : f32
    %217 = vector.broadcast %cst_133 : f32 to vector<8x128xf32>
    %218 = arith.mulf %217, %216 : vector<8x128xf32>
    %c0_134 = arith.constant 0 : index
    %c0_135 = arith.constant 0 : index
    %c8_136 = arith.constant 8 : index
    %c0_137 = arith.constant 0 : index
    %219 = vector.load %arg2[%c0_134, %c0_135, %c8_136, %c0_137] : memref<1x1x32x256xf32, #tpu.memory_space<vmem>>, vector<1x1x8x128xf32>
    %220 = vector.shape_cast %219 : vector<1x1x8x128xf32> to vector<8x128xf32>
    %c0_138 = arith.constant 0 : index
    %c0_139 = arith.constant 0 : index
    %c8_140 = arith.constant 8 : index
    %c10_141 = arith.constant 10 : index
    %221 = vector.load %arg2[%c0_138, %c0_139, %c8_140, %c10_141] : memref<1x1x32x256xf32, #tpu.memory_space<vmem>>, vector<1x1x8x128xf32>
    %222 = vector.shape_cast %221 : vector<1x1x8x128xf32> to vector<8x128xf32>
    %c0_142 = arith.constant 0 : index
    %c0_143 = arith.constant 0 : index
    %c8_144 = arith.constant 8 : index
    %c0_145 = arith.constant 0 : index
    %223 = vector.load %arg3[%c0_142, %c0_143, %c8_144, %c0_145] : memref<1x1x32x256xf32, #tpu.memory_space<vmem>>, vector<1x1x8x128xf32>
    %224 = vector.shape_cast %223 : vector<1x1x8x128xf32> to vector<8x128xf32>
    %c0_146 = arith.constant 0 : index
    %c0_147 = arith.constant 0 : index
    %c8_148 = arith.constant 8 : index
    %c10_149 = arith.constant 10 : index
    %225 = vector.load %arg3[%c0_146, %c0_147, %c8_148, %c10_149] : memref<1x1x32x256xf32, #tpu.memory_space<vmem>>, vector<1x1x8x128xf32>
    %226 = vector.shape_cast %225 : vector<1x1x8x128xf32> to vector<8x128xf32>
    %227 = arith.addf %220, %222 : vector<8x128xf32>
    %cst_150 = arith.constant 0.00102838012 : f32
    %228 = vector.broadcast %cst_150 : f32 to vector<8x128xf32>
    %229 = arith.mulf %228, %227 : vector<8x128xf32>
    %230 = arith.addf %207, %229 : vector<8x128xf32>
    %231 = arith.addf %224, %226 : vector<8x128xf32>
    %cst_151 = arith.constant 0.00102838012 : f32
    %232 = vector.broadcast %cst_151 : f32 to vector<8x128xf32>
    %233 = arith.mulf %232, %231 : vector<8x128xf32>
    %234 = arith.addf %209, %233 : vector<8x128xf32>
    %235 = arith.mulf %220, %220 : vector<8x128xf32>
    %236 = arith.mulf %222, %222 : vector<8x128xf32>
    %237 = arith.addf %235, %236 : vector<8x128xf32>
    %cst_152 = arith.constant 0.00102838012 : f32
    %238 = vector.broadcast %cst_152 : f32 to vector<8x128xf32>
    %239 = arith.mulf %238, %237 : vector<8x128xf32>
    %240 = arith.addf %212, %239 : vector<8x128xf32>
    %241 = arith.mulf %224, %224 : vector<8x128xf32>
    %242 = arith.mulf %226, %226 : vector<8x128xf32>
    %243 = arith.addf %241, %242 : vector<8x128xf32>
    %cst_153 = arith.constant 0.00102838012 : f32
    %244 = vector.broadcast %cst_153 : f32 to vector<8x128xf32>
    %245 = arith.mulf %244, %243 : vector<8x128xf32>
    %246 = arith.addf %215, %245 : vector<8x128xf32>
    %247 = arith.mulf %220, %224 : vector<8x128xf32>
    %248 = arith.mulf %222, %226 : vector<8x128xf32>
    %249 = arith.addf %247, %248 : vector<8x128xf32>
    %cst_154 = arith.constant 0.00102838012 : f32
    %250 = vector.broadcast %cst_154 : f32 to vector<8x128xf32>
    %251 = arith.mulf %250, %249 : vector<8x128xf32>
    %252 = arith.addf %218, %251 : vector<8x128xf32>
    %c0_155 = arith.constant 0 : index
    %c0_156 = arith.constant 0 : index
    %c8_157 = arith.constant 8 : index
    %c1_158 = arith.constant 1 : index
    %253 = vector.load %arg2[%c0_155, %c0_156, %c8_157, %c1_158] : memref<1x1x32x256xf32, #tpu.memory_space<vmem>>, vector<1x1x8x128xf32>
    %254 = vector.shape_cast %253 : vector<1x1x8x128xf32> to vector<8x128xf32>
    %c0_159 = arith.constant 0 : index
    %c0_160 = arith.constant 0 : index
    %c8_161 = arith.constant 8 : index
    %c9_162 = arith.constant 9 : index
    %255 = vector.load %arg2[%c0_159, %c0_160, %c8_161, %c9_162] : memref<1x1x32x256xf32, #tpu.memory_space<vmem>>, vector<1x1x8x128xf32>
    %256 = vector.shape_cast %255 : vector<1x1x8x128xf32> to vector<8x128xf32>
    %c0_163 = arith.constant 0 : index
    %c0_164 = arith.constant 0 : index
    %c8_165 = arith.constant 8 : index
    %c1_166 = arith.constant 1 : index
    %257 = vector.load %arg3[%c0_163, %c0_164, %c8_165, %c1_166] : memref<1x1x32x256xf32, #tpu.memory_space<vmem>>, vector<1x1x8x128xf32>
    %258 = vector.shape_cast %257 : vector<1x1x8x128xf32> to vector<8x128xf32>
    %c0_167 = arith.constant 0 : index
    %c0_168 = arith.constant 0 : index
    %c8_169 = arith.constant 8 : index
    %c9_170 = arith.constant 9 : index
    %259 = vector.load %arg3[%c0_167, %c0_168, %c8_169, %c9_170] : memref<1x1x32x256xf32, #tpu.memory_space<vmem>>, vector<1x1x8x128xf32>
    %260 = vector.shape_cast %259 : vector<1x1x8x128xf32> to vector<8x128xf32>
    %261 = arith.addf %254, %256 : vector<8x128xf32>
    %cst_171 = arith.constant 0.00759875821 : f32
    %262 = vector.broadcast %cst_171 : f32 to vector<8x128xf32>
    %263 = arith.mulf %262, %261 : vector<8x128xf32>
    %264 = arith.addf %230, %263 : vector<8x128xf32>
    %265 = arith.addf %258, %260 : vector<8x128xf32>
    %cst_172 = arith.constant 0.00759875821 : f32
    %266 = vector.broadcast %cst_172 : f32 to vector<8x128xf32>
    %267 = arith.mulf %266, %265 : vector<8x128xf32>
    %268 = arith.addf %234, %267 : vector<8x128xf32>
    %269 = arith.mulf %254, %254 : vector<8x128xf32>
    %270 = arith.mulf %256, %256 : vector<8x128xf32>
    %271 = arith.addf %269, %270 : vector<8x128xf32>
    %cst_173 = arith.constant 0.00759875821 : f32
    %272 = vector.broadcast %cst_173 : f32 to vector<8x128xf32>
    %273 = arith.mulf %272, %271 : vector<8x128xf32>
    %274 = arith.addf %240, %273 : vector<8x128xf32>
    %275 = arith.mulf %258, %258 : vector<8x128xf32>
    %276 = arith.mulf %260, %260 : vector<8x128xf32>
    %277 = arith.addf %275, %276 : vector<8x128xf32>
    %cst_174 = arith.constant 0.00759875821 : f32
    %278 = vector.broadcast %cst_174 : f32 to vector<8x128xf32>
    %279 = arith.mulf %278, %277 : vector<8x128xf32>
    %280 = arith.addf %246, %279 : vector<8x128xf32>
    %281 = arith.mulf %254, %258 : vector<8x128xf32>
    %282 = arith.mulf %256, %260 : vector<8x128xf32>
    %283 = arith.addf %281, %282 : vector<8x128xf32>
    %cst_175 = arith.constant 0.00759875821 : f32
    %284 = vector.broadcast %cst_175 : f32 to vector<8x128xf32>
    %285 = arith.mulf %284, %283 : vector<8x128xf32>
    %286 = arith.addf %252, %285 : vector<8x128xf32>
    %c0_176 = arith.constant 0 : index
    %c0_177 = arith.constant 0 : index
    %c8_178 = arith.constant 8 : index
    %c2_179 = arith.constant 2 : index
    %287 = vector.load %arg2[%c0_176, %c0_177, %c8_178, %c2_179] : memref<1x1x32x256xf32, #tpu.memory_space<vmem>>, vector<1x1x8x128xf32>
    %288 = vector.shape_cast %287 : vector<1x1x8x128xf32> to vector<8x128xf32>
    %c0_180 = arith.constant 0 : index
    %c0_181 = arith.constant 0 : index
    %c8_182 = arith.constant 8 : index
    %c8_183 = arith.constant 8 : index
    %289 = vector.load %arg2[%c0_180, %c0_181, %c8_182, %c8_183] : memref<1x1x32x256xf32, #tpu.memory_space<vmem>>, vector<1x1x8x128xf32>
    %290 = vector.shape_cast %289 : vector<1x1x8x128xf32> to vector<8x128xf32>
    %c0_184 = arith.constant 0 : index
    %c0_185 = arith.constant 0 : index
    %c8_186 = arith.constant 8 : index
    %c2_187 = arith.constant 2 : index
    %291 = vector.load %arg3[%c0_184, %c0_185, %c8_186, %c2_187] : memref<1x1x32x256xf32, #tpu.memory_space<vmem>>, vector<1x1x8x128xf32>
    %292 = vector.shape_cast %291 : vector<1x1x8x128xf32> to vector<8x128xf32>
    %c0_188 = arith.constant 0 : index
    %c0_189 = arith.constant 0 : index
    %c8_190 = arith.constant 8 : index
    %c8_191 = arith.constant 8 : index
    %293 = vector.load %arg3[%c0_188, %c0_189, %c8_190, %c8_191] : memref<1x1x32x256xf32, #tpu.memory_space<vmem>>, vector<1x1x8x128xf32>
    %294 = vector.shape_cast %293 : vector<1x1x8x128xf32> to vector<8x128xf32>
    %295 = arith.addf %288, %290 : vector<8x128xf32>
    %cst_192 = arith.constant 0.0360007733 : f32
    %296 = vector.broadcast %cst_192 : f32 to vector<8x128xf32>
    %297 = arith.mulf %296, %295 : vector<8x128xf32>
    %298 = arith.addf %264, %297 : vector<8x128xf32>
    %299 = arith.addf %292, %294 : vector<8x128xf32>
    %cst_193 = arith.constant 0.0360007733 : f32
    %300 = vector.broadcast %cst_193 : f32 to vector<8x128xf32>
    %301 = arith.mulf %300, %299 : vector<8x128xf32>
    %302 = arith.addf %268, %301 : vector<8x128xf32>
    %303 = arith.mulf %288, %288 : vector<8x128xf32>
    %304 = arith.mulf %290, %290 : vector<8x128xf32>
    %305 = arith.addf %303, %304 : vector<8x128xf32>
    %cst_194 = arith.constant 0.0360007733 : f32
    %306 = vector.broadcast %cst_194 : f32 to vector<8x128xf32>
    %307 = arith.mulf %306, %305 : vector<8x128xf32>
    %308 = arith.addf %274, %307 : vector<8x128xf32>
    %309 = arith.mulf %292, %292 : vector<8x128xf32>
    %310 = arith.mulf %294, %294 : vector<8x128xf32>
    %311 = arith.addf %309, %310 : vector<8x128xf32>
    %cst_195 = arith.constant 0.0360007733 : f32
    %312 = vector.broadcast %cst_195 : f32 to vector<8x128xf32>
    %313 = arith.mulf %312, %311 : vector<8x128xf32>
    %314 = arith.addf %280, %313 : vector<8x128xf32>
    %315 = arith.mulf %288, %292 : vector<8x128xf32>
    %316 = arith.mulf %290, %294 : vector<8x128xf32>
    %317 = arith.addf %315, %316 : vector<8x128xf32>
    %cst_196 = arith.constant 0.0360007733 : f32
    %318 = vector.broadcast %cst_196 : f32 to vector<8x128xf32>
    %319 = arith.mulf %318, %317 : vector<8x128xf32>
    %320 = arith.addf %286, %319 : vector<8x128xf32>
    %c0_197 = arith.constant 0 : index
    %c0_198 = arith.constant 0 : index
    %c8_199 = arith.constant 8 : index
    %c3_200 = arith.constant 3 : index
    %321 = vector.load %arg2[%c0_197, %c0_198, %c8_199, %c3_200] : memref<1x1x32x256xf32, #tpu.memory_space<vmem>>, vector<1x1x8x128xf32>
    %322 = vector.shape_cast %321 : vector<1x1x8x128xf32> to vector<8x128xf32>
    %c0_201 = arith.constant 0 : index
    %c0_202 = arith.constant 0 : index
    %c8_203 = arith.constant 8 : index
    %c7_204 = arith.constant 7 : index
    %323 = vector.load %arg2[%c0_201, %c0_202, %c8_203, %c7_204] : memref<1x1x32x256xf32, #tpu.memory_space<vmem>>, vector<1x1x8x128xf32>
    %324 = vector.shape_cast %323 : vector<1x1x8x128xf32> to vector<8x128xf32>
    %c0_205 = arith.constant 0 : index
    %c0_206 = arith.constant 0 : index
    %c8_207 = arith.constant 8 : index
    %c3_208 = arith.constant 3 : index
    %325 = vector.load %arg3[%c0_205, %c0_206, %c8_207, %c3_208] : memref<1x1x32x256xf32, #tpu.memory_space<vmem>>, vector<1x1x8x128xf32>
    %326 = vector.shape_cast %325 : vector<1x1x8x128xf32> to vector<8x128xf32>
    %c0_209 = arith.constant 0 : index
    %c0_210 = arith.constant 0 : index
    %c8_211 = arith.constant 8 : index
    %c7_212 = arith.constant 7 : index
    %327 = vector.load %arg3[%c0_209, %c0_210, %c8_211, %c7_212] : memref<1x1x32x256xf32, #tpu.memory_space<vmem>>, vector<1x1x8x128xf32>
    %328 = vector.shape_cast %327 : vector<1x1x8x128xf32> to vector<8x128xf32>
    %329 = arith.addf %322, %324 : vector<8x128xf32>
    %cst_213 = arith.constant 0.109360687 : f32
    %330 = vector.broadcast %cst_213 : f32 to vector<8x128xf32>
    %331 = arith.mulf %330, %329 : vector<8x128xf32>
    %332 = arith.addf %298, %331 : vector<8x128xf32>
    %333 = arith.addf %326, %328 : vector<8x128xf32>
    %cst_214 = arith.constant 0.109360687 : f32
    %334 = vector.broadcast %cst_214 : f32 to vector<8x128xf32>
    %335 = arith.mulf %334, %333 : vector<8x128xf32>
    %336 = arith.addf %302, %335 : vector<8x128xf32>
    %337 = arith.mulf %322, %322 : vector<8x128xf32>
    %338 = arith.mulf %324, %324 : vector<8x128xf32>
    %339 = arith.addf %337, %338 : vector<8x128xf32>
    %cst_215 = arith.constant 0.109360687 : f32
    %340 = vector.broadcast %cst_215 : f32 to vector<8x128xf32>
    %341 = arith.mulf %340, %339 : vector<8x128xf32>
    %342 = arith.addf %308, %341 : vector<8x128xf32>
    %343 = arith.mulf %326, %326 : vector<8x128xf32>
    %344 = arith.mulf %328, %328 : vector<8x128xf32>
    %345 = arith.addf %343, %344 : vector<8x128xf32>
    %cst_216 = arith.constant 0.109360687 : f32
    %346 = vector.broadcast %cst_216 : f32 to vector<8x128xf32>
    %347 = arith.mulf %346, %345 : vector<8x128xf32>
    %348 = arith.addf %314, %347 : vector<8x128xf32>
    %349 = arith.mulf %322, %326 : vector<8x128xf32>
    %350 = arith.mulf %324, %328 : vector<8x128xf32>
    %351 = arith.addf %349, %350 : vector<8x128xf32>
    %cst_217 = arith.constant 0.109360687 : f32
    %352 = vector.broadcast %cst_217 : f32 to vector<8x128xf32>
    %353 = arith.mulf %352, %351 : vector<8x128xf32>
    %354 = arith.addf %320, %353 : vector<8x128xf32>
    %c0_218 = arith.constant 0 : index
    %c0_219 = arith.constant 0 : index
    %c8_220 = arith.constant 8 : index
    %c4_221 = arith.constant 4 : index
    %355 = vector.load %arg2[%c0_218, %c0_219, %c8_220, %c4_221] : memref<1x1x32x256xf32, #tpu.memory_space<vmem>>, vector<1x1x8x128xf32>
    %356 = vector.shape_cast %355 : vector<1x1x8x128xf32> to vector<8x128xf32>
    %c0_222 = arith.constant 0 : index
    %c0_223 = arith.constant 0 : index
    %c8_224 = arith.constant 8 : index
    %c6_225 = arith.constant 6 : index
    %357 = vector.load %arg2[%c0_222, %c0_223, %c8_224, %c6_225] : memref<1x1x32x256xf32, #tpu.memory_space<vmem>>, vector<1x1x8x128xf32>
    %358 = vector.shape_cast %357 : vector<1x1x8x128xf32> to vector<8x128xf32>
    %c0_226 = arith.constant 0 : index
    %c0_227 = arith.constant 0 : index
    %c8_228 = arith.constant 8 : index
    %c4_229 = arith.constant 4 : index
    %359 = vector.load %arg3[%c0_226, %c0_227, %c8_228, %c4_229] : memref<1x1x32x256xf32, #tpu.memory_space<vmem>>, vector<1x1x8x128xf32>
    %360 = vector.shape_cast %359 : vector<1x1x8x128xf32> to vector<8x128xf32>
    %c0_230 = arith.constant 0 : index
    %c0_231 = arith.constant 0 : index
    %c8_232 = arith.constant 8 : index
    %c6_233 = arith.constant 6 : index
    %361 = vector.load %arg3[%c0_230, %c0_231, %c8_232, %c6_233] : memref<1x1x32x256xf32, #tpu.memory_space<vmem>>, vector<1x1x8x128xf32>
    %362 = vector.shape_cast %361 : vector<1x1x8x128xf32> to vector<8x128xf32>
    %363 = arith.addf %356, %358 : vector<8x128xf32>
    %cst_234 = arith.constant 0.213005543 : f32
    %364 = vector.broadcast %cst_234 : f32 to vector<8x128xf32>
    %365 = arith.mulf %364, %363 : vector<8x128xf32>
    %366 = arith.addf %332, %365 : vector<8x128xf32>
    %367 = arith.addf %360, %362 : vector<8x128xf32>
    %cst_235 = arith.constant 0.213005543 : f32
    %368 = vector.broadcast %cst_235 : f32 to vector<8x128xf32>
    %369 = arith.mulf %368, %367 : vector<8x128xf32>
    %370 = arith.addf %336, %369 : vector<8x128xf32>
    %371 = arith.mulf %356, %356 : vector<8x128xf32>
    %372 = arith.mulf %358, %358 : vector<8x128xf32>
    %373 = arith.addf %371, %372 : vector<8x128xf32>
    %cst_236 = arith.constant 0.213005543 : f32
    %374 = vector.broadcast %cst_236 : f32 to vector<8x128xf32>
    %375 = arith.mulf %374, %373 : vector<8x128xf32>
    %376 = arith.addf %342, %375 : vector<8x128xf32>
    %377 = arith.mulf %360, %360 : vector<8x128xf32>
    %378 = arith.mulf %362, %362 : vector<8x128xf32>
    %379 = arith.addf %377, %378 : vector<8x128xf32>
    %cst_237 = arith.constant 0.213005543 : f32
    %380 = vector.broadcast %cst_237 : f32 to vector<8x128xf32>
    %381 = arith.mulf %380, %379 : vector<8x128xf32>
    %382 = arith.addf %348, %381 : vector<8x128xf32>
    %383 = arith.mulf %356, %360 : vector<8x128xf32>
    %384 = arith.mulf %358, %362 : vector<8x128xf32>
    %385 = arith.addf %383, %384 : vector<8x128xf32>
    %cst_238 = arith.constant 0.213005543 : f32
    %386 = vector.broadcast %cst_238 : f32 to vector<8x128xf32>
    %387 = arith.mulf %386, %385 : vector<8x128xf32>
    %388 = arith.addf %354, %387 : vector<8x128xf32>
    %c0_239 = arith.constant 0 : index
    %c8_240 = arith.constant 8 : index
    %c0_241 = arith.constant 0 : index
    %389 = vector.load %arg5[%c0_239, %c8_240, %c0_241] : memref<5x32x128xf32, #tpu.memory_space<vmem>>, vector<1x8x128xf32>
    %390 = vector.shape_cast %389 : vector<1x8x128xf32> to vector<8x128xf32>
    %391 = vector.shape_cast %366 : vector<8x128xf32> to vector<1x8x128xf32>
    tpu.vector_store %arg5[%c0_239, %c8_240, %c0_241], %391 {strides = array<i32>} : memref<5x32x128xf32, #tpu.memory_space<vmem>>, vector<1x8x128xf32>,
    %c1_242 = arith.constant 1 : index
    %c8_243 = arith.constant 8 : index
    %c0_244 = arith.constant 0 : index
    %392 = vector.load %arg5[%c1_242, %c8_243, %c0_244] : memref<5x32x128xf32, #tpu.memory_space<vmem>>, vector<1x8x128xf32>
    %393 = vector.shape_cast %392 : vector<1x8x128xf32> to vector<8x128xf32>
    %394 = vector.shape_cast %370 : vector<8x128xf32> to vector<1x8x128xf32>
    tpu.vector_store %arg5[%c1_242, %c8_243, %c0_244], %394 {strides = array<i32>} : memref<5x32x128xf32, #tpu.memory_space<vmem>>, vector<1x8x128xf32>,
    %c2_245 = arith.constant 2 : index
    %c8_246 = arith.constant 8 : index
    %c0_247 = arith.constant 0 : index
    %395 = vector.load %arg5[%c2_245, %c8_246, %c0_247] : memref<5x32x128xf32, #tpu.memory_space<vmem>>, vector<1x8x128xf32>
    %396 = vector.shape_cast %395 : vector<1x8x128xf32> to vector<8x128xf32>
    %397 = vector.shape_cast %376 : vector<8x128xf32> to vector<1x8x128xf32>
    tpu.vector_store %arg5[%c2_245, %c8_246, %c0_247], %397 {strides = array<i32>} : memref<5x32x128xf32, #tpu.memory_space<vmem>>, vector<1x8x128xf32>,
    %c3_248 = arith.constant 3 : index
    %c8_249 = arith.constant 8 : index
    %c0_250 = arith.constant 0 : index
    %398 = vector.load %arg5[%c3_248, %c8_249, %c0_250] : memref<5x32x128xf32, #tpu.memory_space<vmem>>, vector<1x8x128xf32>
    %399 = vector.shape_cast %398 : vector<1x8x128xf32> to vector<8x128xf32>
    %400 = vector.shape_cast %382 : vector<8x128xf32> to vector<1x8x128xf32>
    tpu.vector_store %arg5[%c3_248, %c8_249, %c0_250], %400 {strides = array<i32>} : memref<5x32x128xf32, #tpu.memory_space<vmem>>, vector<1x8x128xf32>,
    %c4_251 = arith.constant 4 : index
    %c8_252 = arith.constant 8 : index
    %c0_253 = arith.constant 0 : index
    %401 = vector.load %arg5[%c4_251, %c8_252, %c0_253] : memref<5x32x128xf32, #tpu.memory_space<vmem>>, vector<1x8x128xf32>
    %402 = vector.shape_cast %401 : vector<1x8x128xf32> to vector<8x128xf32>
    %403 = vector.shape_cast %388 : vector<8x128xf32> to vector<1x8x128xf32>
    tpu.vector_store %arg5[%c4_251, %c8_252, %c0_253], %403 {strides = array<i32>} : memref<5x32x128xf32, #tpu.memory_space<vmem>>, vector<1x8x128xf32>,
    %c0_254 = arith.constant 0 : index
    %c0_255 = arith.constant 0 : index
    %c16 = arith.constant 16 : index
    %c5_256 = arith.constant 5 : index
    %404 = vector.load %arg2[%c0_254, %c0_255, %c16, %c5_256] : memref<1x1x32x256xf32, #tpu.memory_space<vmem>>, vector<1x1x8x128xf32>
    %405 = vector.shape_cast %404 : vector<1x1x8x128xf32> to vector<8x128xf32>
    %c0_257 = arith.constant 0 : index
    %c0_258 = arith.constant 0 : index
    %c16_259 = arith.constant 16 : index
    %c5_260 = arith.constant 5 : index
    %406 = vector.load %arg3[%c0_257, %c0_258, %c16_259, %c5_260] : memref<1x1x32x256xf32, #tpu.memory_space<vmem>>, vector<1x1x8x128xf32>
    %407 = vector.shape_cast %406 : vector<1x1x8x128xf32> to vector<8x128xf32>
    %cst_261 = arith.constant 0.266011715 : f32
    %408 = vector.broadcast %cst_261 : f32 to vector<8x128xf32>
    %409 = arith.mulf %408, %405 : vector<8x128xf32>
    %cst_262 = arith.constant 0.266011715 : f32
    %410 = vector.broadcast %cst_262 : f32 to vector<8x128xf32>
    %411 = arith.mulf %410, %407 : vector<8x128xf32>
    %412 = arith.mulf %405, %405 : vector<8x128xf32>
    %cst_263 = arith.constant 0.266011715 : f32
    %413 = vector.broadcast %cst_263 : f32 to vector<8x128xf32>
    %414 = arith.mulf %413, %412 : vector<8x128xf32>
    %415 = arith.mulf %407, %407 : vector<8x128xf32>
    %cst_264 = arith.constant 0.266011715 : f32
    %416 = vector.broadcast %cst_264 : f32 to vector<8x128xf32>
    %417 = arith.mulf %416, %415 : vector<8x128xf32>
    %418 = arith.mulf %405, %407 : vector<8x128xf32>
    %cst_265 = arith.constant 0.266011715 : f32
    %419 = vector.broadcast %cst_265 : f32 to vector<8x128xf32>
    %420 = arith.mulf %419, %418 : vector<8x128xf32>
    %c0_266 = arith.constant 0 : index
    %c0_267 = arith.constant 0 : index
    %c16_268 = arith.constant 16 : index
    %c0_269 = arith.constant 0 : index
    %421 = vector.load %arg2[%c0_266, %c0_267, %c16_268, %c0_269] : memref<1x1x32x256xf32, #tpu.memory_space<vmem>>, vector<1x1x8x128xf32>
    %422 = vector.shape_cast %421 : vector<1x1x8x128xf32> to vector<8x128xf32>
    %c0_270 = arith.constant 0 : index
    %c0_271 = arith.constant 0 : index
    %c16_272 = arith.constant 16 : index
    %c10_273 = arith.constant 10 : index
    %423 = vector.load %arg2[%c0_270, %c0_271, %c16_272, %c10_273] : memref<1x1x32x256xf32, #tpu.memory_space<vmem>>, vector<1x1x8x128xf32>
    %424 = vector.shape_cast %423 : vector<1x1x8x128xf32> to vector<8x128xf32>
    %c0_274 = arith.constant 0 : index
    %c0_275 = arith.constant 0 : index
    %c16_276 = arith.constant 16 : index
    %c0_277 = arith.constant 0 : index
    %425 = vector.load %arg3[%c0_274, %c0_275, %c16_276, %c0_277] : memref<1x1x32x256xf32, #tpu.memory_space<vmem>>, vector<1x1x8x128xf32>
    %426 = vector.shape_cast %425 : vector<1x1x8x128xf32> to vector<8x128xf32>
    %c0_278 = arith.constant 0 : index
    %c0_279 = arith.constant 0 : index
    %c16_280 = arith.constant 16 : index
    %c10_281 = arith.constant 10 : index
    %427 = vector.load %arg3[%c0_278, %c0_279, %c16_280, %c10_281] : memref<1x1x32x256xf32, #tpu.memory_space<vmem>>, vector<1x1x8x128xf32>
    %428 = vector.shape_cast %427 : vector<1x1x8x128xf32> to vector<8x128xf32>
    %429 = arith.addf %422, %424 : vector<8x128xf32>
    %cst_282 = arith.constant 0.00102838012 : f32
    %430 = vector.broadcast %cst_282 : f32 to vector<8x128xf32>
    %431 = arith.mulf %430, %429 : vector<8x128xf32>
    %432 = arith.addf %409, %431 : vector<8x128xf32>
    %433 = arith.addf %426, %428 : vector<8x128xf32>
    %cst_283 = arith.constant 0.00102838012 : f32
    %434 = vector.broadcast %cst_283 : f32 to vector<8x128xf32>
    %435 = arith.mulf %434, %433 : vector<8x128xf32>
    %436 = arith.addf %411, %435 : vector<8x128xf32>
    %437 = arith.mulf %422, %422 : vector<8x128xf32>
    %438 = arith.mulf %424, %424 : vector<8x128xf32>
    %439 = arith.addf %437, %438 : vector<8x128xf32>
    %cst_284 = arith.constant 0.00102838012 : f32
    %440 = vector.broadcast %cst_284 : f32 to vector<8x128xf32>
    %441 = arith.mulf %440, %439 : vector<8x128xf32>
    %442 = arith.addf %414, %441 : vector<8x128xf32>
    %443 = arith.mulf %426, %426 : vector<8x128xf32>
    %444 = arith.mulf %428, %428 : vector<8x128xf32>
    %445 = arith.addf %443, %444 : vector<8x128xf32>
    %cst_285 = arith.constant 0.00102838012 : f32
    %446 = vector.broadcast %cst_285 : f32 to vector<8x128xf32>
    %447 = arith.mulf %446, %445 : vector<8x128xf32>
    %448 = arith.addf %417, %447 : vector<8x128xf32>
    %449 = arith.mulf %422, %426 : vector<8x128xf32>
    %450 = arith.mulf %424, %428 : vector<8x128xf32>
    %451 = arith.addf %449, %450 : vector<8x128xf32>
    %cst_286 = arith.constant 0.00102838012 : f32
    %452 = vector.broadcast %cst_286 : f32 to vector<8x128xf32>
    %453 = arith.mulf %452, %451 : vector<8x128xf32>
    %454 = arith.addf %420, %453 : vector<8x128xf32>
    %c0_287 = arith.constant 0 : index
    %c0_288 = arith.constant 0 : index
    %c16_289 = arith.constant 16 : index
    %c1_290 = arith.constant 1 : index
    %455 = vector.load %arg2[%c0_287, %c0_288, %c16_289, %c1_290] : memref<1x1x32x256xf32, #tpu.memory_space<vmem>>, vector<1x1x8x128xf32>
    %456 = vector.shape_cast %455 : vector<1x1x8x128xf32> to vector<8x128xf32>
    %c0_291 = arith.constant 0 : index
    %c0_292 = arith.constant 0 : index
    %c16_293 = arith.constant 16 : index
    %c9_294 = arith.constant 9 : index
    %457 = vector.load %arg2[%c0_291, %c0_292, %c16_293, %c9_294] : memref<1x1x32x256xf32, #tpu.memory_space<vmem>>, vector<1x1x8x128xf32>
    %458 = vector.shape_cast %457 : vector<1x1x8x128xf32> to vector<8x128xf32>
    %c0_295 = arith.constant 0 : index
    %c0_296 = arith.constant 0 : index
    %c16_297 = arith.constant 16 : index
    %c1_298 = arith.constant 1 : index
    %459 = vector.load %arg3[%c0_295, %c0_296, %c16_297, %c1_298] : memref<1x1x32x256xf32, #tpu.memory_space<vmem>>, vector<1x1x8x128xf32>
    %460 = vector.shape_cast %459 : vector<1x1x8x128xf32> to vector<8x128xf32>
    %c0_299 = arith.constant 0 : index
    %c0_300 = arith.constant 0 : index
    %c16_301 = arith.constant 16 : index
    %c9_302 = arith.constant 9 : index
    %461 = vector.load %arg3[%c0_299, %c0_300, %c16_301, %c9_302] : memref<1x1x32x256xf32, #tpu.memory_space<vmem>>, vector<1x1x8x128xf32>
    %462 = vector.shape_cast %461 : vector<1x1x8x128xf32> to vector<8x128xf32>
    %463 = arith.addf %456, %458 : vector<8x128xf32>
    %cst_303 = arith.constant 0.00759875821 : f32
    %464 = vector.broadcast %cst_303 : f32 to vector<8x128xf32>
    %465 = arith.mulf %464, %463 : vector<8x128xf32>
    %466 = arith.addf %432, %465 : vector<8x128xf32>
    %467 = arith.addf %460, %462 : vector<8x128xf32>
    %cst_304 = arith.constant 0.00759875821 : f32
    %468 = vector.broadcast %cst_304 : f32 to vector<8x128xf32>
    %469 = arith.mulf %468, %467 : vector<8x128xf32>
    %470 = arith.addf %436, %469 : vector<8x128xf32>
    %471 = arith.mulf %456, %456 : vector<8x128xf32>
    %472 = arith.mulf %458, %458 : vector<8x128xf32>
    %473 = arith.addf %471, %472 : vector<8x128xf32>
    %cst_305 = arith.constant 0.00759875821 : f32
    %474 = vector.broadcast %cst_305 : f32 to vector<8x128xf32>
    %475 = arith.mulf %474, %473 : vector<8x128xf32>
    %476 = arith.addf %442, %475 : vector<8x128xf32>
    %477 = arith.mulf %460, %460 : vector<8x128xf32>
    %478 = arith.mulf %462, %462 : vector<8x128xf32>
    %479 = arith.addf %477, %478 : vector<8x128xf32>
    %cst_306 = arith.constant 0.00759875821 : f32
    %480 = vector.broadcast %cst_306 : f32 to vector<8x128xf32>
    %481 = arith.mulf %480, %479 : vector<8x128xf32>
    %482 = arith.addf %448, %481 : vector<8x128xf32>
    %483 = arith.mulf %456, %460 : vector<8x128xf32>
    %484 = arith.mulf %458, %462 : vector<8x128xf32>
    %485 = arith.addf %483, %484 : vector<8x128xf32>
    %cst_307 = arith.constant 0.00759875821 : f32
    %486 = vector.broadcast %cst_307 : f32 to vector<8x128xf32>
    %487 = arith.mulf %486, %485 : vector<8x128xf32>
    %488 = arith.addf %454, %487 : vector<8x128xf32>
    %c0_308 = arith.constant 0 : index
    %c0_309 = arith.constant 0 : index
    %c16_310 = arith.constant 16 : index
    %c2_311 = arith.constant 2 : index
    %489 = vector.load %arg2[%c0_308, %c0_309, %c16_310, %c2_311] : memref<1x1x32x256xf32, #tpu.memory_space<vmem>>, vector<1x1x8x128xf32>
    %490 = vector.shape_cast %489 : vector<1x1x8x128xf32> to vector<8x128xf32>
    %c0_312 = arith.constant 0 : index
    %c0_313 = arith.constant 0 : index
    %c16_314 = arith.constant 16 : index
    %c8_315 = arith.constant 8 : index
    %491 = vector.load %arg2[%c0_312, %c0_313, %c16_314, %c8_315] : memref<1x1x32x256xf32, #tpu.memory_space<vmem>>, vector<1x1x8x128xf32>
    %492 = vector.shape_cast %491 : vector<1x1x8x128xf32> to vector<8x128xf32>
    %c0_316 = arith.constant 0 : index
    %c0_317 = arith.constant 0 : index
    %c16_318 = arith.constant 16 : index
    %c2_319 = arith.constant 2 : index
    %493 = vector.load %arg3[%c0_316, %c0_317, %c16_318, %c2_319] : memref<1x1x32x256xf32, #tpu.memory_space<vmem>>, vector<1x1x8x128xf32>
    %494 = vector.shape_cast %493 : vector<1x1x8x128xf32> to vector<8x128xf32>
    %c0_320 = arith.constant 0 : index
    %c0_321 = arith.constant 0 : index
    %c16_322 = arith.constant 16 : index
    %c8_323 = arith.constant 8 : index
    %495 = vector.load %arg3[%c0_320, %c0_321, %c16_322, %c8_323] : memref<1x1x32x256xf32, #tpu.memory_space<vmem>>, vector<1x1x8x128xf32>
    %496 = vector.shape_cast %495 : vector<1x1x8x128xf32> to vector<8x128xf32>
    %497 = arith.addf %490, %492 : vector<8x128xf32>
    %cst_324 = arith.constant 0.0360007733 : f32
    %498 = vector.broadcast %cst_324 : f32 to vector<8x128xf32>
    %499 = arith.mulf %498, %497 : vector<8x128xf32>
    %500 = arith.addf %466, %499 : vector<8x128xf32>
    %501 = arith.addf %494, %496 : vector<8x128xf32>
    %cst_325 = arith.constant 0.0360007733 : f32
    %502 = vector.broadcast %cst_325 : f32 to vector<8x128xf32>
    %503 = arith.mulf %502, %501 : vector<8x128xf32>
    %504 = arith.addf %470, %503 : vector<8x128xf32>
    %505 = arith.mulf %490, %490 : vector<8x128xf32>
    %506 = arith.mulf %492, %492 : vector<8x128xf32>
    %507 = arith.addf %505, %506 : vector<8x128xf32>
    %cst_326 = arith.constant 0.0360007733 : f32
    %508 = vector.broadcast %cst_326 : f32 to vector<8x128xf32>
    %509 = arith.mulf %508, %507 : vector<8x128xf32>
    %510 = arith.addf %476, %509 : vector<8x128xf32>
    %511 = arith.mulf %494, %494 : vector<8x128xf32>
    %512 = arith.mulf %496, %496 : vector<8x128xf32>
    %513 = arith.addf %511, %512 : vector<8x128xf32>
    %cst_327 = arith.constant 0.0360007733 : f32
    %514 = vector.broadcast %cst_327 : f32 to vector<8x128xf32>
    %515 = arith.mulf %514, %513 : vector<8x128xf32>
    %516 = arith.addf %482, %515 : vector<8x128xf32>
    %517 = arith.mulf %490, %494 : vector<8x128xf32>
    %518 = arith.mulf %492, %496 : vector<8x128xf32>
    %519 = arith.addf %517, %518 : vector<8x128xf32>
    %cst_328 = arith.constant 0.0360007733 : f32
    %520 = vector.broadcast %cst_328 : f32 to vector<8x128xf32>
    %521 = arith.mulf %520, %519 : vector<8x128xf32>
    %522 = arith.addf %488, %521 : vector<8x128xf32>
    %c0_329 = arith.constant 0 : index
    %c0_330 = arith.constant 0 : index
    %c16_331 = arith.constant 16 : index
    %c3_332 = arith.constant 3 : index
    %523 = vector.load %arg2[%c0_329, %c0_330, %c16_331, %c3_332] : memref<1x1x32x256xf32, #tpu.memory_space<vmem>>, vector<1x1x8x128xf32>
    %524 = vector.shape_cast %523 : vector<1x1x8x128xf32> to vector<8x128xf32>
    %c0_333 = arith.constant 0 : index
    %c0_334 = arith.constant 0 : index
    %c16_335 = arith.constant 16 : index
    %c7_336 = arith.constant 7 : index
    %525 = vector.load %arg2[%c0_333, %c0_334, %c16_335, %c7_336] : memref<1x1x32x256xf32, #tpu.memory_space<vmem>>, vector<1x1x8x128xf32>
    %526 = vector.shape_cast %525 : vector<1x1x8x128xf32> to vector<8x128xf32>
    %c0_337 = arith.constant 0 : index
    %c0_338 = arith.constant 0 : index
    %c16_339 = arith.constant 16 : index
    %c3_340 = arith.constant 3 : index
    %527 = vector.load %arg3[%c0_337, %c0_338, %c16_339, %c3_340] : memref<1x1x32x256xf32, #tpu.memory_space<vmem>>, vector<1x1x8x128xf32>
    %528 = vector.shape_cast %527 : vector<1x1x8x128xf32> to vector<8x128xf32>
    %c0_341 = arith.constant 0 : index
    %c0_342 = arith.constant 0 : index
    %c16_343 = arith.constant 16 : index
    %c7_344 = arith.constant 7 : index
    %529 = vector.load %arg3[%c0_341, %c0_342, %c16_343, %c7_344] : memref<1x1x32x256xf32, #tpu.memory_space<vmem>>, vector<1x1x8x128xf32>
    %530 = vector.shape_cast %529 : vector<1x1x8x128xf32> to vector<8x128xf32>
    %531 = arith.addf %524, %526 : vector<8x128xf32>
    %cst_345 = arith.constant 0.109360687 : f32
    %532 = vector.broadcast %cst_345 : f32 to vector<8x128xf32>
    %533 = arith.mulf %532, %531 : vector<8x128xf32>
    %534 = arith.addf %500, %533 : vector<8x128xf32>
    %535 = arith.addf %528, %530 : vector<8x128xf32>
    %cst_346 = arith.constant 0.109360687 : f32
    %536 = vector.broadcast %cst_346 : f32 to vector<8x128xf32>
    %537 = arith.mulf %536, %535 : vector<8x128xf32>
    %538 = arith.addf %504, %537 : vector<8x128xf32>
    %539 = arith.mulf %524, %524 : vector<8x128xf32>
    %540 = arith.mulf %526, %526 : vector<8x128xf32>
    %541 = arith.addf %539, %540 : vector<8x128xf32>
    %cst_347 = arith.constant 0.109360687 : f32
    %542 = vector.broadcast %cst_347 : f32 to vector<8x128xf32>
    %543 = arith.mulf %542, %541 : vector<8x128xf32>
    %544 = arith.addf %510, %543 : vector<8x128xf32>
    %545 = arith.mulf %528, %528 : vector<8x128xf32>
    %546 = arith.mulf %530, %530 : vector<8x128xf32>
    %547 = arith.addf %545, %546 : vector<8x128xf32>
    %cst_348 = arith.constant 0.109360687 : f32
    %548 = vector.broadcast %cst_348 : f32 to vector<8x128xf32>
    %549 = arith.mulf %548, %547 : vector<8x128xf32>
    %550 = arith.addf %516, %549 : vector<8x128xf32>
    %551 = arith.mulf %524, %528 : vector<8x128xf32>
    %552 = arith.mulf %526, %530 : vector<8x128xf32>
    %553 = arith.addf %551, %552 : vector<8x128xf32>
    %cst_349 = arith.constant 0.109360687 : f32
    %554 = vector.broadcast %cst_349 : f32 to vector<8x128xf32>
    %555 = arith.mulf %554, %553 : vector<8x128xf32>
    %556 = arith.addf %522, %555 : vector<8x128xf32>
    %c0_350 = arith.constant 0 : index
    %c0_351 = arith.constant 0 : index
    %c16_352 = arith.constant 16 : index
    %c4_353 = arith.constant 4 : index
    %557 = vector.load %arg2[%c0_350, %c0_351, %c16_352, %c4_353] : memref<1x1x32x256xf32, #tpu.memory_space<vmem>>, vector<1x1x8x128xf32>
    %558 = vector.shape_cast %557 : vector<1x1x8x128xf32> to vector<8x128xf32>
    %c0_354 = arith.constant 0 : index
    %c0_355 = arith.constant 0 : index
    %c16_356 = arith.constant 16 : index
    %c6_357 = arith.constant 6 : index
    %559 = vector.load %arg2[%c0_354, %c0_355, %c16_356, %c6_357] : memref<1x1x32x256xf32, #tpu.memory_space<vmem>>, vector<1x1x8x128xf32>
    %560 = vector.shape_cast %559 : vector<1x1x8x128xf32> to vector<8x128xf32>
    %c0_358 = arith.constant 0 : index
    %c0_359 = arith.constant 0 : index
    %c16_360 = arith.constant 16 : index
    %c4_361 = arith.constant 4 : index
    %561 = vector.load %arg3[%c0_358, %c0_359, %c16_360, %c4_361] : memref<1x1x32x256xf32, #tpu.memory_space<vmem>>, vector<1x1x8x128xf32>
    %562 = vector.shape_cast %561 : vector<1x1x8x128xf32> to vector<8x128xf32>
    %c0_362 = arith.constant 0 : index
    %c0_363 = arith.constant 0 : index
    %c16_364 = arith.constant 16 : index
    %c6_365 = arith.constant 6 : index
    %563 = vector.load %arg3[%c0_362, %c0_363, %c16_364, %c6_365] : memref<1x1x32x256xf32, #tpu.memory_space<vmem>>, vector<1x1x8x128xf32>
    %564 = vector.shape_cast %563 : vector<1x1x8x128xf32> to vector<8x128xf32>
    %565 = arith.addf %558, %560 : vector<8x128xf32>
    %cst_366 = arith.constant 0.213005543 : f32
    %566 = vector.broadcast %cst_366 : f32 to vector<8x128xf32>
    %567 = arith.mulf %566, %565 : vector<8x128xf32>
    %568 = arith.addf %534, %567 : vector<8x128xf32>
    %569 = arith.addf %562, %564 : vector<8x128xf32>
    %cst_367 = arith.constant 0.213005543 : f32
    %570 = vector.broadcast %cst_367 : f32 to vector<8x128xf32>
    %571 = arith.mulf %570, %569 : vector<8x128xf32>
    %572 = arith.addf %538, %571 : vector<8x128xf32>
    %573 = arith.mulf %558, %558 : vector<8x128xf32>
    %574 = arith.mulf %560, %560 : vector<8x128xf32>
    %575 = arith.addf %573, %574 : vector<8x128xf32>
    %cst_368 = arith.constant 0.213005543 : f32
    %576 = vector.broadcast %cst_368 : f32 to vector<8x128xf32>
    %577 = arith.mulf %576, %575 : vector<8x128xf32>
    %578 = arith.addf %544, %577 : vector<8x128xf32>
    %579 = arith.mulf %562, %562 : vector<8x128xf32>
    %580 = arith.mulf %564, %564 : vector<8x128xf32>
    %581 = arith.addf %579, %580 : vector<8x128xf32>
    %cst_369 = arith.constant 0.213005543 : f32
    %582 = vector.broadcast %cst_369 : f32 to vector<8x128xf32>
    %583 = arith.mulf %582, %581 : vector<8x128xf32>
    %584 = arith.addf %550, %583 : vector<8x128xf32>
    %585 = arith.mulf %558, %562 : vector<8x128xf32>
    %586 = arith.mulf %560, %564 : vector<8x128xf32>
    %587 = arith.addf %585, %586 : vector<8x128xf32>
    %cst_370 = arith.constant 0.213005543 : f32
    %588 = vector.broadcast %cst_370 : f32 to vector<8x128xf32>
    %589 = arith.mulf %588, %587 : vector<8x128xf32>
    %590 = arith.addf %556, %589 : vector<8x128xf32>
    %c0_371 = arith.constant 0 : index
    %c16_372 = arith.constant 16 : index
    %c0_373 = arith.constant 0 : index
    %591 = vector.load %arg5[%c0_371, %c16_372, %c0_373] : memref<5x32x128xf32, #tpu.memory_space<vmem>>, vector<1x8x128xf32>
    %592 = vector.shape_cast %591 : vector<1x8x128xf32> to vector<8x128xf32>
    %593 = vector.shape_cast %568 : vector<8x128xf32> to vector<1x8x128xf32>
    tpu.vector_store %arg5[%c0_371, %c16_372, %c0_373], %593 {strides = array<i32>} : memref<5x32x128xf32, #tpu.memory_space<vmem>>, vector<1x8x128xf32>,
    %c1_374 = arith.constant 1 : index
    %c16_375 = arith.constant 16 : index
    %c0_376 = arith.constant 0 : index
    %594 = vector.load %arg5[%c1_374, %c16_375, %c0_376] : memref<5x32x128xf32, #tpu.memory_space<vmem>>, vector<1x8x128xf32>
    %595 = vector.shape_cast %594 : vector<1x8x128xf32> to vector<8x128xf32>
    %596 = vector.shape_cast %572 : vector<8x128xf32> to vector<1x8x128xf32>
    tpu.vector_store %arg5[%c1_374, %c16_375, %c0_376], %596 {strides = array<i32>} : memref<5x32x128xf32, #tpu.memory_space<vmem>>, vector<1x8x128xf32>,
    %c2_377 = arith.constant 2 : index
    %c16_378 = arith.constant 16 : index
    %c0_379 = arith.constant 0 : index
    %597 = vector.load %arg5[%c2_377, %c16_378, %c0_379] : memref<5x32x128xf32, #tpu.memory_space<vmem>>, vector<1x8x128xf32>
    %598 = vector.shape_cast %597 : vector<1x8x128xf32> to vector<8x128xf32>
    %599 = vector.shape_cast %578 : vector<8x128xf32> to vector<1x8x128xf32>
    tpu.vector_store %arg5[%c2_377, %c16_378, %c0_379], %599 {strides = array<i32>} : memref<5x32x128xf32, #tpu.memory_space<vmem>>, vector<1x8x128xf32>,
    %c3_380 = arith.constant 3 : index
    %c16_381 = arith.constant 16 : index
    %c0_382 = arith.constant 0 : index
    %600 = vector.load %arg5[%c3_380, %c16_381, %c0_382] : memref<5x32x128xf32, #tpu.memory_space<vmem>>, vector<1x8x128xf32>
    %601 = vector.shape_cast %600 : vector<1x8x128xf32> to vector<8x128xf32>
    %602 = vector.shape_cast %584 : vector<8x128xf32> to vector<1x8x128xf32>
    tpu.vector_store %arg5[%c3_380, %c16_381, %c0_382], %602 {strides = array<i32>} : memref<5x32x128xf32, #tpu.memory_space<vmem>>, vector<1x8x128xf32>,
    %c4_383 = arith.constant 4 : index
    %c16_384 = arith.constant 16 : index
    %c0_385 = arith.constant 0 : index
    %603 = vector.load %arg5[%c4_383, %c16_384, %c0_385] : memref<5x32x128xf32, #tpu.memory_space<vmem>>, vector<1x8x128xf32>
    %604 = vector.shape_cast %603 : vector<1x8x128xf32> to vector<8x128xf32>
    %605 = vector.shape_cast %590 : vector<8x128xf32> to vector<1x8x128xf32>
    tpu.vector_store %arg5[%c4_383, %c16_384, %c0_385], %605 {strides = array<i32>} : memref<5x32x128xf32, #tpu.memory_space<vmem>>, vector<1x8x128xf32>,
    %c0_386 = arith.constant 0 : index
    %c0_387 = arith.constant 0 : index
    %c24 = arith.constant 24 : index
    %c5_388 = arith.constant 5 : index
    %606 = vector.load %arg2[%c0_386, %c0_387, %c24, %c5_388] : memref<1x1x32x256xf32, #tpu.memory_space<vmem>>, vector<1x1x8x128xf32>
    %607 = vector.shape_cast %606 : vector<1x1x8x128xf32> to vector<8x128xf32>
    %c0_389 = arith.constant 0 : index
    %c0_390 = arith.constant 0 : index
    %c24_391 = arith.constant 24 : index
    %c5_392 = arith.constant 5 : index
    %608 = vector.load %arg3[%c0_389, %c0_390, %c24_391, %c5_392] : memref<1x1x32x256xf32, #tpu.memory_space<vmem>>, vector<1x1x8x128xf32>
    %609 = vector.shape_cast %608 : vector<1x1x8x128xf32> to vector<8x128xf32>
    %cst_393 = arith.constant 0.266011715 : f32
    %610 = vector.broadcast %cst_393 : f32 to vector<8x128xf32>
    %611 = arith.mulf %610, %607 : vector<8x128xf32>
    %cst_394 = arith.constant 0.266011715 : f32
    %612 = vector.broadcast %cst_394 : f32 to vector<8x128xf32>
    %613 = arith.mulf %612, %609 : vector<8x128xf32>
    %614 = arith.mulf %607, %607 : vector<8x128xf32>
    %cst_395 = arith.constant 0.266011715 : f32
    %615 = vector.broadcast %cst_395 : f32 to vector<8x128xf32>
    %616 = arith.mulf %615, %614 : vector<8x128xf32>
    %617 = arith.mulf %609, %609 : vector<8x128xf32>
    %cst_396 = arith.constant 0.266011715 : f32
    %618 = vector.broadcast %cst_396 : f32 to vector<8x128xf32>
    %619 = arith.mulf %618, %617 : vector<8x128xf32>
    %620 = arith.mulf %607, %609 : vector<8x128xf32>
    %cst_397 = arith.constant 0.266011715 : f32
    %621 = vector.broadcast %cst_397 : f32 to vector<8x128xf32>
    %622 = arith.mulf %621, %620 : vector<8x128xf32>
    %c0_398 = arith.constant 0 : index
    %c0_399 = arith.constant 0 : index
    %c24_400 = arith.constant 24 : index
    %c0_401 = arith.constant 0 : index
    %623 = vector.load %arg2[%c0_398, %c0_399, %c24_400, %c0_401] : memref<1x1x32x256xf32, #tpu.memory_space<vmem>>, vector<1x1x8x128xf32>
    %624 = vector.shape_cast %623 : vector<1x1x8x128xf32> to vector<8x128xf32>
    %c0_402 = arith.constant 0 : index
    %c0_403 = arith.constant 0 : index
    %c24_404 = arith.constant 24 : index
    %c10_405 = arith.constant 10 : index
    %625 = vector.load %arg2[%c0_402, %c0_403, %c24_404, %c10_405] : memref<1x1x32x256xf32, #tpu.memory_space<vmem>>, vector<1x1x8x128xf32>
    %626 = vector.shape_cast %625 : vector<1x1x8x128xf32> to vector<8x128xf32>
    %c0_406 = arith.constant 0 : index
    %c0_407 = arith.constant 0 : index
    %c24_408 = arith.constant 24 : index
    %c0_409 = arith.constant 0 : index
    %627 = vector.load %arg3[%c0_406, %c0_407, %c24_408, %c0_409] : memref<1x1x32x256xf32, #tpu.memory_space<vmem>>, vector<1x1x8x128xf32>
    %628 = vector.shape_cast %627 : vector<1x1x8x128xf32> to vector<8x128xf32>
    %c0_410 = arith.constant 0 : index
    %c0_411 = arith.constant 0 : index
    %c24_412 = arith.constant 24 : index
    %c10_413 = arith.constant 10 : index
    %629 = vector.load %arg3[%c0_410, %c0_411, %c24_412, %c10_413] : memref<1x1x32x256xf32, #tpu.memory_space<vmem>>, vector<1x1x8x128xf32>
    %630 = vector.shape_cast %629 : vector<1x1x8x128xf32> to vector<8x128xf32>
    %631 = arith.addf %624, %626 : vector<8x128xf32>
    %cst_414 = arith.constant 0.00102838012 : f32
    %632 = vector.broadcast %cst_414 : f32 to vector<8x128xf32>
    %633 = arith.mulf %632, %631 : vector<8x128xf32>
    %634 = arith.addf %611, %633 : vector<8x128xf32>
    %635 = arith.addf %628, %630 : vector<8x128xf32>
    %cst_415 = arith.constant 0.00102838012 : f32
    %636 = vector.broadcast %cst_415 : f32 to vector<8x128xf32>
    %637 = arith.mulf %636, %635 : vector<8x128xf32>
    %638 = arith.addf %613, %637 : vector<8x128xf32>
    %639 = arith.mulf %624, %624 : vector<8x128xf32>
    %640 = arith.mulf %626, %626 : vector<8x128xf32>
    %641 = arith.addf %639, %640 : vector<8x128xf32>
    %cst_416 = arith.constant 0.00102838012 : f32
    %642 = vector.broadcast %cst_416 : f32 to vector<8x128xf32>
    %643 = arith.mulf %642, %641 : vector<8x128xf32>
    %644 = arith.addf %616, %643 : vector<8x128xf32>
    %645 = arith.mulf %628, %628 : vector<8x128xf32>
    %646 = arith.mulf %630, %630 : vector<8x128xf32>
    %647 = arith.addf %645, %646 : vector<8x128xf32>
    %cst_417 = arith.constant 0.00102838012 : f32
    %648 = vector.broadcast %cst_417 : f32 to vector<8x128xf32>
    %649 = arith.mulf %648, %647 : vector<8x128xf32>
    %650 = arith.addf %619, %649 : vector<8x128xf32>
    %651 = arith.mulf %624, %628 : vector<8x128xf32>
    %652 = arith.mulf %626, %630 : vector<8x128xf32>
    %653 = arith.addf %651, %652 : vector<8x128xf32>
    %cst_418 = arith.constant 0.00102838012 : f32
    %654 = vector.broadcast %cst_418 : f32 to vector<8x128xf32>
    %655 = arith.mulf %654, %653 : vector<8x128xf32>
    %656 = arith.addf %622, %655 : vector<8x128xf32>
    %c0_419 = arith.constant 0 : index
    %c0_420 = arith.constant 0 : index
    %c24_421 = arith.constant 24 : index
    %c1_422 = arith.constant 1 : index
    %657 = vector.load %arg2[%c0_419, %c0_420, %c24_421, %c1_422] : memref<1x1x32x256xf32, #tpu.memory_space<vmem>>, vector<1x1x8x128xf32>
    %658 = vector.shape_cast %657 : vector<1x1x8x128xf32> to vector<8x128xf32>
    %c0_423 = arith.constant 0 : index
    %c0_424 = arith.constant 0 : index
    %c24_425 = arith.constant 24 : index
    %c9_426 = arith.constant 9 : index
    %659 = vector.load %arg2[%c0_423, %c0_424, %c24_425, %c9_426] : memref<1x1x32x256xf32, #tpu.memory_space<vmem>>, vector<1x1x8x128xf32>
    %660 = vector.shape_cast %659 : vector<1x1x8x128xf32> to vector<8x128xf32>
    %c0_427 = arith.constant 0 : index
    %c0_428 = arith.constant 0 : index
    %c24_429 = arith.constant 24 : index
    %c1_430 = arith.constant 1 : index
    %661 = vector.load %arg3[%c0_427, %c0_428, %c24_429, %c1_430] : memref<1x1x32x256xf32, #tpu.memory_space<vmem>>, vector<1x1x8x128xf32>
    %662 = vector.shape_cast %661 : vector<1x1x8x128xf32> to vector<8x128xf32>
    %c0_431 = arith.constant 0 : index
    %c0_432 = arith.constant 0 : index
    %c24_433 = arith.constant 24 : index
    %c9_434 = arith.constant 9 : index
    %663 = vector.load %arg3[%c0_431, %c0_432, %c24_433, %c9_434] : memref<1x1x32x256xf32, #tpu.memory_space<vmem>>, vector<1x1x8x128xf32>
    %664 = vector.shape_cast %663 : vector<1x1x8x128xf32> to vector<8x128xf32>
    %665 = arith.addf %658, %660 : vector<8x128xf32>
    %cst_435 = arith.constant 0.00759875821 : f32
    %666 = vector.broadcast %cst_435 : f32 to vector<8x128xf32>
    %667 = arith.mulf %666, %665 : vector<8x128xf32>
    %668 = arith.addf %634, %667 : vector<8x128xf32>
    %669 = arith.addf %662, %664 : vector<8x128xf32>
    %cst_436 = arith.constant 0.00759875821 : f32
    %670 = vector.broadcast %cst_436 : f32 to vector<8x128xf32>
    %671 = arith.mulf %670, %669 : vector<8x128xf32>
    %672 = arith.addf %638, %671 : vector<8x128xf32>
    %673 = arith.mulf %658, %658 : vector<8x128xf32>
    %674 = arith.mulf %660, %660 : vector<8x128xf32>
    %675 = arith.addf %673, %674 : vector<8x128xf32>
    %cst_437 = arith.constant 0.00759875821 : f32
    %676 = vector.broadcast %cst_437 : f32 to vector<8x128xf32>
    %677 = arith.mulf %676, %675 : vector<8x128xf32>
    %678 = arith.addf %644, %677 : vector<8x128xf32>
    %679 = arith.mulf %662, %662 : vector<8x128xf32>
    %680 = arith.mulf %664, %664 : vector<8x128xf32>
    %681 = arith.addf %679, %680 : vector<8x128xf32>
    %cst_438 = arith.constant 0.00759875821 : f32
    %682 = vector.broadcast %cst_438 : f32 to vector<8x128xf32>
    %683 = arith.mulf %682, %681 : vector<8x128xf32>
    %684 = arith.addf %650, %683 : vector<8x128xf32>
    %685 = arith.mulf %658, %662 : vector<8x128xf32>
    %686 = arith.mulf %660, %664 : vector<8x128xf32>
    %687 = arith.addf %685, %686 : vector<8x128xf32>
    %cst_439 = arith.constant 0.00759875821 : f32
    %688 = vector.broadcast %cst_439 : f32 to vector<8x128xf32>
    %689 = arith.mulf %688, %687 : vector<8x128xf32>
    %690 = arith.addf %656, %689 : vector<8x128xf32>
    %c0_440 = arith.constant 0 : index
    %c0_441 = arith.constant 0 : index
    %c24_442 = arith.constant 24 : index
    %c2_443 = arith.constant 2 : index
    %691 = vector.load %arg2[%c0_440, %c0_441, %c24_442, %c2_443] : memref<1x1x32x256xf32, #tpu.memory_space<vmem>>, vector<1x1x8x128xf32>
    %692 = vector.shape_cast %691 : vector<1x1x8x128xf32> to vector<8x128xf32>
    %c0_444 = arith.constant 0 : index
    %c0_445 = arith.constant 0 : index
    %c24_446 = arith.constant 24 : index
    %c8_447 = arith.constant 8 : index
    %693 = vector.load %arg2[%c0_444, %c0_445, %c24_446, %c8_447] : memref<1x1x32x256xf32, #tpu.memory_space<vmem>>, vector<1x1x8x128xf32>
    %694 = vector.shape_cast %693 : vector<1x1x8x128xf32> to vector<8x128xf32>
    %c0_448 = arith.constant 0 : index
    %c0_449 = arith.constant 0 : index
    %c24_450 = arith.constant 24 : index
    %c2_451 = arith.constant 2 : index
    %695 = vector.load %arg3[%c0_448, %c0_449, %c24_450, %c2_451] : memref<1x1x32x256xf32, #tpu.memory_space<vmem>>, vector<1x1x8x128xf32>
    %696 = vector.shape_cast %695 : vector<1x1x8x128xf32> to vector<8x128xf32>
    %c0_452 = arith.constant 0 : index
    %c0_453 = arith.constant 0 : index
    %c24_454 = arith.constant 24 : index
    %c8_455 = arith.constant 8 : index
    %697 = vector.load %arg3[%c0_452, %c0_453, %c24_454, %c8_455] : memref<1x1x32x256xf32, #tpu.memory_space<vmem>>, vector<1x1x8x128xf32>
    %698 = vector.shape_cast %697 : vector<1x1x8x128xf32> to vector<8x128xf32>
    %699 = arith.addf %692, %694 : vector<8x128xf32>
    %cst_456 = arith.constant 0.0360007733 : f32
    %700 = vector.broadcast %cst_456 : f32 to vector<8x128xf32>
    %701 = arith.mulf %700, %699 : vector<8x128xf32>
    %702 = arith.addf %668, %701 : vector<8x128xf32>
    %703 = arith.addf %696, %698 : vector<8x128xf32>
    %cst_457 = arith.constant 0.0360007733 : f32
    %704 = vector.broadcast %cst_457 : f32 to vector<8x128xf32>
    %705 = arith.mulf %704, %703 : vector<8x128xf32>
    %706 = arith.addf %672, %705 : vector<8x128xf32>
    %707 = arith.mulf %692, %692 : vector<8x128xf32>
    %708 = arith.mulf %694, %694 : vector<8x128xf32>
    %709 = arith.addf %707, %708 : vector<8x128xf32>
    %cst_458 = arith.constant 0.0360007733 : f32
    %710 = vector.broadcast %cst_458 : f32 to vector<8x128xf32>
    %711 = arith.mulf %710, %709 : vector<8x128xf32>
    %712 = arith.addf %678, %711 : vector<8x128xf32>
    %713 = arith.mulf %696, %696 : vector<8x128xf32>
    %714 = arith.mulf %698, %698 : vector<8x128xf32>
    %715 = arith.addf %713, %714 : vector<8x128xf32>
    %cst_459 = arith.constant 0.0360007733 : f32
    %716 = vector.broadcast %cst_459 : f32 to vector<8x128xf32>
    %717 = arith.mulf %716, %715 : vector<8x128xf32>
    %718 = arith.addf %684, %717 : vector<8x128xf32>
    %719 = arith.mulf %692, %696 : vector<8x128xf32>
    %720 = arith.mulf %694, %698 : vector<8x128xf32>
    %721 = arith.addf %719, %720 : vector<8x128xf32>
    %cst_460 = arith.constant 0.0360007733 : f32
    %722 = vector.broadcast %cst_460 : f32 to vector<8x128xf32>
    %723 = arith.mulf %722, %721 : vector<8x128xf32>
    %724 = arith.addf %690, %723 : vector<8x128xf32>
    %c0_461 = arith.constant 0 : index
    %c0_462 = arith.constant 0 : index
    %c24_463 = arith.constant 24 : index
    %c3_464 = arith.constant 3 : index
    %725 = vector.load %arg2[%c0_461, %c0_462, %c24_463, %c3_464] : memref<1x1x32x256xf32, #tpu.memory_space<vmem>>, vector<1x1x8x128xf32>
    %726 = vector.shape_cast %725 : vector<1x1x8x128xf32> to vector<8x128xf32>
    %c0_465 = arith.constant 0 : index
    %c0_466 = arith.constant 0 : index
    %c24_467 = arith.constant 24 : index
    %c7_468 = arith.constant 7 : index
    %727 = vector.load %arg2[%c0_465, %c0_466, %c24_467, %c7_468] : memref<1x1x32x256xf32, #tpu.memory_space<vmem>>, vector<1x1x8x128xf32>
    %728 = vector.shape_cast %727 : vector<1x1x8x128xf32> to vector<8x128xf32>
    %c0_469 = arith.constant 0 : index
    %c0_470 = arith.constant 0 : index
    %c24_471 = arith.constant 24 : index
    %c3_472 = arith.constant 3 : index
    %729 = vector.load %arg3[%c0_469, %c0_470, %c24_471, %c3_472] : memref<1x1x32x256xf32, #tpu.memory_space<vmem>>, vector<1x1x8x128xf32>
    %730 = vector.shape_cast %729 : vector<1x1x8x128xf32> to vector<8x128xf32>
    %c0_473 = arith.constant 0 : index
    %c0_474 = arith.constant 0 : index
    %c24_475 = arith.constant 24 : index
    %c7_476 = arith.constant 7 : index
    %731 = vector.load %arg3[%c0_473, %c0_474, %c24_475, %c7_476] : memref<1x1x32x256xf32, #tpu.memory_space<vmem>>, vector<1x1x8x128xf32>
    %732 = vector.shape_cast %731 : vector<1x1x8x128xf32> to vector<8x128xf32>
    %733 = arith.addf %726, %728 : vector<8x128xf32>
    %cst_477 = arith.constant 0.109360687 : f32
    %734 = vector.broadcast %cst_477 : f32 to vector<8x128xf32>
    %735 = arith.mulf %734, %733 : vector<8x128xf32>
    %736 = arith.addf %702, %735 : vector<8x128xf32>
    %737 = arith.addf %730, %732 : vector<8x128xf32>
    %cst_478 = arith.constant 0.109360687 : f32
    %738 = vector.broadcast %cst_478 : f32 to vector<8x128xf32>
    %739 = arith.mulf %738, %737 : vector<8x128xf32>
    %740 = arith.addf %706, %739 : vector<8x128xf32>
    %741 = arith.mulf %726, %726 : vector<8x128xf32>
    %742 = arith.mulf %728, %728 : vector<8x128xf32>
    %743 = arith.addf %741, %742 : vector<8x128xf32>
    %cst_479 = arith.constant 0.109360687 : f32
    %744 = vector.broadcast %cst_479 : f32 to vector<8x128xf32>
    %745 = arith.mulf %744, %743 : vector<8x128xf32>
    %746 = arith.addf %712, %745 : vector<8x128xf32>
    %747 = arith.mulf %730, %730 : vector<8x128xf32>
    %748 = arith.mulf %732, %732 : vector<8x128xf32>
    %749 = arith.addf %747, %748 : vector<8x128xf32>
    %cst_480 = arith.constant 0.109360687 : f32
    %750 = vector.broadcast %cst_480 : f32 to vector<8x128xf32>
    %751 = arith.mulf %750, %749 : vector<8x128xf32>
    %752 = arith.addf %718, %751 : vector<8x128xf32>
    %753 = arith.mulf %726, %730 : vector<8x128xf32>
    %754 = arith.mulf %728, %732 : vector<8x128xf32>
    %755 = arith.addf %753, %754 : vector<8x128xf32>
    %cst_481 = arith.constant 0.109360687 : f32
    %756 = vector.broadcast %cst_481 : f32 to vector<8x128xf32>
    %757 = arith.mulf %756, %755 : vector<8x128xf32>
    %758 = arith.addf %724, %757 : vector<8x128xf32>
    %c0_482 = arith.constant 0 : index
    %c0_483 = arith.constant 0 : index
    %c24_484 = arith.constant 24 : index
    %c4_485 = arith.constant 4 : index
    %759 = vector.load %arg2[%c0_482, %c0_483, %c24_484, %c4_485] : memref<1x1x32x256xf32, #tpu.memory_space<vmem>>, vector<1x1x8x128xf32>
    %760 = vector.shape_cast %759 : vector<1x1x8x128xf32> to vector<8x128xf32>
    %c0_486 = arith.constant 0 : index
    %c0_487 = arith.constant 0 : index
    %c24_488 = arith.constant 24 : index
    %c6_489 = arith.constant 6 : index
    %761 = vector.load %arg2[%c0_486, %c0_487, %c24_488, %c6_489] : memref<1x1x32x256xf32, #tpu.memory_space<vmem>>, vector<1x1x8x128xf32>
    %762 = vector.shape_cast %761 : vector<1x1x8x128xf32> to vector<8x128xf32>
    %c0_490 = arith.constant 0 : index
    %c0_491 = arith.constant 0 : index
    %c24_492 = arith.constant 24 : index
    %c4_493 = arith.constant 4 : index
    %763 = vector.load %arg3[%c0_490, %c0_491, %c24_492, %c4_493] : memref<1x1x32x256xf32, #tpu.memory_space<vmem>>, vector<1x1x8x128xf32>
    %764 = vector.shape_cast %763 : vector<1x1x8x128xf32> to vector<8x128xf32>
    %c0_494 = arith.constant 0 : index
    %c0_495 = arith.constant 0 : index
    %c24_496 = arith.constant 24 : index
    %c6_497 = arith.constant 6 : index
    %765 = vector.load %arg3[%c0_494, %c0_495, %c24_496, %c6_497] : memref<1x1x32x256xf32, #tpu.memory_space<vmem>>, vector<1x1x8x128xf32>
    %766 = vector.shape_cast %765 : vector<1x1x8x128xf32> to vector<8x128xf32>
    %767 = arith.addf %760, %762 : vector<8x128xf32>
    %cst_498 = arith.constant 0.213005543 : f32
    %768 = vector.broadcast %cst_498 : f32 to vector<8x128xf32>
    %769 = arith.mulf %768, %767 : vector<8x128xf32>
    %770 = arith.addf %736, %769 : vector<8x128xf32>
    %771 = arith.addf %764, %766 : vector<8x128xf32>
    %cst_499 = arith.constant 0.213005543 : f32
    %772 = vector.broadcast %cst_499 : f32 to vector<8x128xf32>
    %773 = arith.mulf %772, %771 : vector<8x128xf32>
    %774 = arith.addf %740, %773 : vector<8x128xf32>
    %775 = arith.mulf %760, %760 : vector<8x128xf32>
    %776 = arith.mulf %762, %762 : vector<8x128xf32>
    %777 = arith.addf %775, %776 : vector<8x128xf32>
    %cst_500 = arith.constant 0.213005543 : f32
    %778 = vector.broadcast %cst_500 : f32 to vector<8x128xf32>
    %779 = arith.mulf %778, %777 : vector<8x128xf32>
    %780 = arith.addf %746, %779 : vector<8x128xf32>
    %781 = arith.mulf %764, %764 : vector<8x128xf32>
    %782 = arith.mulf %766, %766 : vector<8x128xf32>
    %783 = arith.addf %781, %782 : vector<8x128xf32>
    %cst_501 = arith.constant 0.213005543 : f32
    %784 = vector.broadcast %cst_501 : f32 to vector<8x128xf32>
    %785 = arith.mulf %784, %783 : vector<8x128xf32>
    %786 = arith.addf %752, %785 : vector<8x128xf32>
    %787 = arith.mulf %760, %764 : vector<8x128xf32>
    %788 = arith.mulf %762, %766 : vector<8x128xf32>
    %789 = arith.addf %787, %788 : vector<8x128xf32>
    %cst_502 = arith.constant 0.213005543 : f32
    %790 = vector.broadcast %cst_502 : f32 to vector<8x128xf32>
    %791 = arith.mulf %790, %789 : vector<8x128xf32>
    %792 = arith.addf %758, %791 : vector<8x128xf32>
    %c0_503 = arith.constant 0 : index
    %c24_504 = arith.constant 24 : index
    %c0_505 = arith.constant 0 : index
    %793 = vector.load %arg5[%c0_503, %c24_504, %c0_505] : memref<5x32x128xf32, #tpu.memory_space<vmem>>, vector<1x8x128xf32>
    %794 = vector.shape_cast %793 : vector<1x8x128xf32> to vector<8x128xf32>
    %795 = vector.shape_cast %770 : vector<8x128xf32> to vector<1x8x128xf32>
    tpu.vector_store %arg5[%c0_503, %c24_504, %c0_505], %795 {strides = array<i32>} : memref<5x32x128xf32, #tpu.memory_space<vmem>>, vector<1x8x128xf32>,
    %c1_506 = arith.constant 1 : index
    %c24_507 = arith.constant 24 : index
    %c0_508 = arith.constant 0 : index
    %796 = vector.load %arg5[%c1_506, %c24_507, %c0_508] : memref<5x32x128xf32, #tpu.memory_space<vmem>>, vector<1x8x128xf32>
    %797 = vector.shape_cast %796 : vector<1x8x128xf32> to vector<8x128xf32>
    %798 = vector.shape_cast %774 : vector<8x128xf32> to vector<1x8x128xf32>
    tpu.vector_store %arg5[%c1_506, %c24_507, %c0_508], %798 {strides = array<i32>} : memref<5x32x128xf32, #tpu.memory_space<vmem>>, vector<1x8x128xf32>,
    %c2_509 = arith.constant 2 : index
    %c24_510 = arith.constant 24 : index
    %c0_511 = arith.constant 0 : index
    %799 = vector.load %arg5[%c2_509, %c24_510, %c0_511] : memref<5x32x128xf32, #tpu.memory_space<vmem>>, vector<1x8x128xf32>
    %800 = vector.shape_cast %799 : vector<1x8x128xf32> to vector<8x128xf32>
    %801 = vector.shape_cast %780 : vector<8x128xf32> to vector<1x8x128xf32>
    tpu.vector_store %arg5[%c2_509, %c24_510, %c0_511], %801 {strides = array<i32>} : memref<5x32x128xf32, #tpu.memory_space<vmem>>, vector<1x8x128xf32>,
    %c3_512 = arith.constant 3 : index
    %c24_513 = arith.constant 24 : index
    %c0_514 = arith.constant 0 : index
    %802 = vector.load %arg5[%c3_512, %c24_513, %c0_514] : memref<5x32x128xf32, #tpu.memory_space<vmem>>, vector<1x8x128xf32>
    %803 = vector.shape_cast %802 : vector<1x8x128xf32> to vector<8x128xf32>
    %804 = vector.shape_cast %786 : vector<8x128xf32> to vector<1x8x128xf32>
    tpu.vector_store %arg5[%c3_512, %c24_513, %c0_514], %804 {strides = array<i32>} : memref<5x32x128xf32, #tpu.memory_space<vmem>>, vector<1x8x128xf32>,
    %c4_515 = arith.constant 4 : index
    %c24_516 = arith.constant 24 : index
    %c0_517 = arith.constant 0 : index
    %805 = vector.load %arg5[%c4_515, %c24_516, %c0_517] : memref<5x32x128xf32, #tpu.memory_space<vmem>>, vector<1x8x128xf32>
    %806 = vector.shape_cast %805 : vector<1x8x128xf32> to vector<8x128xf32>
    %807 = vector.shape_cast %792 : vector<8x128xf32> to vector<1x8x128xf32>
    tpu.vector_store %arg5[%c4_515, %c24_516, %c0_517], %807 {strides = array<i32>} : memref<5x32x128xf32, #tpu.memory_space<vmem>>, vector<1x8x128xf32>,
    %808 = tpu.iota {dimensions = array<i32: 1>} : vector<8x128xi32>
    %c16_i32 = arith.constant 16 : i32
    %809 = vector.broadcast %c16_i32 : i32 to vector<8x128xi32>
    %810 = arith.cmpi slt, %808, %809 : vector<8x128xi32>
    %811 = tpu.iota {dimensions = array<i32: 0>} : vector<8x128xi32>
    %cst_518 = arith.constant 0.000000e+00 : f32
    %812 = vector.broadcast %cst_518 : f32 to vector<8x128xf32>
    %c0_519 = arith.constant 0 : index
    %c5_520 = arith.constant 5 : index
    %c0_521 = arith.constant 0 : index
    %813 = vector.load %arg5[%c0_519, %c5_520, %c0_521] : memref<5x32x128xf32, #tpu.memory_space<vmem>>, vector<1x8x128xf32>
    %814 = vector.shape_cast %813 : vector<1x8x128xf32> to vector<8x128xf32>
    %cst_522 = arith.constant 0.266011715 : f32
    %815 = vector.broadcast %cst_522 : f32 to vector<8x128xf32>
    %816 = arith.mulf %815, %814 : vector<8x128xf32>
    %c0_523 = arith.constant 0 : index
    %c0_524 = arith.constant 0 : index
    %c0_525 = arith.constant 0 : index
    %817 = vector.load %arg5[%c0_523, %c0_524, %c0_525] : memref<5x32x128xf32, #tpu.memory_space<vmem>>, vector<1x8x128xf32>
    %818 = vector.shape_cast %817 : vector<1x8x128xf32> to vector<8x128xf32>
    %c0_526 = arith.constant 0 : index
    %c10_527 = arith.constant 10 : index
    %c0_528 = arith.constant 0 : index
    %819 = vector.load %arg5[%c0_526, %c10_527, %c0_528] : memref<5x32x128xf32, #tpu.memory_space<vmem>>, vector<1x8x128xf32>
    %820 = vector.shape_cast %819 : vector<1x8x128xf32> to vector<8x128xf32>
    %821 = arith.addf %818, %820 : vector<8x128xf32>
    %cst_529 = arith.constant 0.00102838012 : f32
    %822 = vector.broadcast %cst_529 : f32 to vector<8x128xf32>
    %823 = arith.mulf %822, %821 : vector<8x128xf32>
    %824 = arith.addf %816, %823 : vector<8x128xf32>
    %c0_530 = arith.constant 0 : index
    %c1_531 = arith.constant 1 : index
    %c0_532 = arith.constant 0 : index
    %825 = vector.load %arg5[%c0_530, %c1_531, %c0_532] : memref<5x32x128xf32, #tpu.memory_space<vmem>>, vector<1x8x128xf32>
    %826 = vector.shape_cast %825 : vector<1x8x128xf32> to vector<8x128xf32>
    %c0_533 = arith.constant 0 : index
    %c9_534 = arith.constant 9 : index
    %c0_535 = arith.constant 0 : index
    %827 = vector.load %arg5[%c0_533, %c9_534, %c0_535] : memref<5x32x128xf32, #tpu.memory_space<vmem>>, vector<1x8x128xf32>
    %828 = vector.shape_cast %827 : vector<1x8x128xf32> to vector<8x128xf32>
    %829 = arith.addf %826, %828 : vector<8x128xf32>
    %cst_536 = arith.constant 0.00759875821 : f32
    %830 = vector.broadcast %cst_536 : f32 to vector<8x128xf32>
    %831 = arith.mulf %830, %829 : vector<8x128xf32>
    %832 = arith.addf %824, %831 : vector<8x128xf32>
    %c0_537 = arith.constant 0 : index
    %c2_538 = arith.constant 2 : index
    %c0_539 = arith.constant 0 : index
    %833 = vector.load %arg5[%c0_537, %c2_538, %c0_539] : memref<5x32x128xf32, #tpu.memory_space<vmem>>, vector<1x8x128xf32>
    %834 = vector.shape_cast %833 : vector<1x8x128xf32> to vector<8x128xf32>
    %c0_540 = arith.constant 0 : index
    %c8_541 = arith.constant 8 : index
    %c0_542 = arith.constant 0 : index
    %835 = vector.load %arg5[%c0_540, %c8_541, %c0_542] : memref<5x32x128xf32, #tpu.memory_space<vmem>>, vector<1x8x128xf32>
    %836 = vector.shape_cast %835 : vector<1x8x128xf32> to vector<8x128xf32>
    %837 = arith.addf %834, %836 : vector<8x128xf32>
    %cst_543 = arith.constant 0.0360007733 : f32
    %838 = vector.broadcast %cst_543 : f32 to vector<8x128xf32>
    %839 = arith.mulf %838, %837 : vector<8x128xf32>
    %840 = arith.addf %832, %839 : vector<8x128xf32>
    %c0_544 = arith.constant 0 : index
    %c3_545 = arith.constant 3 : index
    %c0_546 = arith.constant 0 : index
    %841 = vector.load %arg5[%c0_544, %c3_545, %c0_546] : memref<5x32x128xf32, #tpu.memory_space<vmem>>, vector<1x8x128xf32>
    %842 = vector.shape_cast %841 : vector<1x8x128xf32> to vector<8x128xf32>
    %c0_547 = arith.constant 0 : index
    %c7_548 = arith.constant 7 : index
    %c0_549 = arith.constant 0 : index
    %843 = vector.load %arg5[%c0_547, %c7_548, %c0_549] : memref<5x32x128xf32, #tpu.memory_space<vmem>>, vector<1x8x128xf32>
    %844 = vector.shape_cast %843 : vector<1x8x128xf32> to vector<8x128xf32>
    %845 = arith.addf %842, %844 : vector<8x128xf32>
    %cst_550 = arith.constant 0.109360687 : f32
    %846 = vector.broadcast %cst_550 : f32 to vector<8x128xf32>
    %847 = arith.mulf %846, %845 : vector<8x128xf32>
    %848 = arith.addf %840, %847 : vector<8x128xf32>
    %c0_551 = arith.constant 0 : index
    %c4_552 = arith.constant 4 : index
    %c0_553 = arith.constant 0 : index
    %849 = vector.load %arg5[%c0_551, %c4_552, %c0_553] : memref<5x32x128xf32, #tpu.memory_space<vmem>>, vector<1x8x128xf32>
    %850 = vector.shape_cast %849 : vector<1x8x128xf32> to vector<8x128xf32>
    %c0_554 = arith.constant 0 : index
    %c6_555 = arith.constant 6 : index
    %c0_556 = arith.constant 0 : index
    %851 = vector.load %arg5[%c0_554, %c6_555, %c0_556] : memref<5x32x128xf32, #tpu.memory_space<vmem>>, vector<1x8x128xf32>
    %852 = vector.shape_cast %851 : vector<1x8x128xf32> to vector<8x128xf32>
    %853 = arith.addf %850, %852 : vector<8x128xf32>
    %cst_557 = arith.constant 0.213005543 : f32
    %854 = vector.broadcast %cst_557 : f32 to vector<8x128xf32>
    %855 = arith.mulf %854, %853 : vector<8x128xf32>
    %856 = arith.addf %848, %855 : vector<8x128xf32>
    %c1_558 = arith.constant 1 : index
    %c5_559 = arith.constant 5 : index
    %c0_560 = arith.constant 0 : index
    %857 = vector.load %arg5[%c1_558, %c5_559, %c0_560] : memref<5x32x128xf32, #tpu.memory_space<vmem>>, vector<1x8x128xf32>
    %858 = vector.shape_cast %857 : vector<1x8x128xf32> to vector<8x128xf32>
    %cst_561 = arith.constant 0.266011715 : f32
    %859 = vector.broadcast %cst_561 : f32 to vector<8x128xf32>
    %860 = arith.mulf %859, %858 : vector<8x128xf32>
    %c1_562 = arith.constant 1 : index
    %c0_563 = arith.constant 0 : index
    %c0_564 = arith.constant 0 : index
    %861 = vector.load %arg5[%c1_562, %c0_563, %c0_564] : memref<5x32x128xf32, #tpu.memory_space<vmem>>, vector<1x8x128xf32>
    %862 = vector.shape_cast %861 : vector<1x8x128xf32> to vector<8x128xf32>
    %c1_565 = arith.constant 1 : index
    %c10_566 = arith.constant 10 : index
    %c0_567 = arith.constant 0 : index
    %863 = vector.load %arg5[%c1_565, %c10_566, %c0_567] : memref<5x32x128xf32, #tpu.memory_space<vmem>>, vector<1x8x128xf32>
    %864 = vector.shape_cast %863 : vector<1x8x128xf32> to vector<8x128xf32>
    %865 = arith.addf %862, %864 : vector<8x128xf32>
    %cst_568 = arith.constant 0.00102838012 : f32
    %866 = vector.broadcast %cst_568 : f32 to vector<8x128xf32>
    %867 = arith.mulf %866, %865 : vector<8x128xf32>
    %868 = arith.addf %860, %867 : vector<8x128xf32>
    %c1_569 = arith.constant 1 : index
    %c1_570 = arith.constant 1 : index
    %c0_571 = arith.constant 0 : index
    %869 = vector.load %arg5[%c1_569, %c1_570, %c0_571] : memref<5x32x128xf32, #tpu.memory_space<vmem>>, vector<1x8x128xf32>
    %870 = vector.shape_cast %869 : vector<1x8x128xf32> to vector<8x128xf32>
    %c1_572 = arith.constant 1 : index
    %c9_573 = arith.constant 9 : index
    %c0_574 = arith.constant 0 : index
    %871 = vector.load %arg5[%c1_572, %c9_573, %c0_574] : memref<5x32x128xf32, #tpu.memory_space<vmem>>, vector<1x8x128xf32>
    %872 = vector.shape_cast %871 : vector<1x8x128xf32> to vector<8x128xf32>
    %873 = arith.addf %870, %872 : vector<8x128xf32>
    %cst_575 = arith.constant 0.00759875821 : f32
    %874 = vector.broadcast %cst_575 : f32 to vector<8x128xf32>
    %875 = arith.mulf %874, %873 : vector<8x128xf32>
    %876 = arith.addf %868, %875 : vector<8x128xf32>
    %c1_576 = arith.constant 1 : index
    %c2_577 = arith.constant 2 : index
    %c0_578 = arith.constant 0 : index
    %877 = vector.load %arg5[%c1_576, %c2_577, %c0_578] : memref<5x32x128xf32, #tpu.memory_space<vmem>>, vector<1x8x128xf32>
    %878 = vector.shape_cast %877 : vector<1x8x128xf32> to vector<8x128xf32>
    %c1_579 = arith.constant 1 : index
    %c8_580 = arith.constant 8 : index
    %c0_581 = arith.constant 0 : index
    %879 = vector.load %arg5[%c1_579, %c8_580, %c0_581] : memref<5x32x128xf32, #tpu.memory_space<vmem>>, vector<1x8x128xf32>
    %880 = vector.shape_cast %879 : vector<1x8x128xf32> to vector<8x128xf32>
    %881 = arith.addf %878, %880 : vector<8x128xf32>
    %cst_582 = arith.constant 0.0360007733 : f32
    %882 = vector.broadcast %cst_582 : f32 to vector<8x128xf32>
    %883 = arith.mulf %882, %881 : vector<8x128xf32>
    %884 = arith.addf %876, %883 : vector<8x128xf32>
    %c1_583 = arith.constant 1 : index
    %c3_584 = arith.constant 3 : index
    %c0_585 = arith.constant 0 : index
    %885 = vector.load %arg5[%c1_583, %c3_584, %c0_585] : memref<5x32x128xf32, #tpu.memory_space<vmem>>, vector<1x8x128xf32>
    %886 = vector.shape_cast %885 : vector<1x8x128xf32> to vector<8x128xf32>
    %c1_586 = arith.constant 1 : index
    %c7_587 = arith.constant 7 : index
    %c0_588 = arith.constant 0 : index
    %887 = vector.load %arg5[%c1_586, %c7_587, %c0_588] : memref<5x32x128xf32, #tpu.memory_space<vmem>>, vector<1x8x128xf32>
    %888 = vector.shape_cast %887 : vector<1x8x128xf32> to vector<8x128xf32>
    %889 = arith.addf %886, %888 : vector<8x128xf32>
    %cst_589 = arith.constant 0.109360687 : f32
    %890 = vector.broadcast %cst_589 : f32 to vector<8x128xf32>
    %891 = arith.mulf %890, %889 : vector<8x128xf32>
    %892 = arith.addf %884, %891 : vector<8x128xf32>
    %c1_590 = arith.constant 1 : index
    %c4_591 = arith.constant 4 : index
    %c0_592 = arith.constant 0 : index
    %893 = vector.load %arg5[%c1_590, %c4_591, %c0_592] : memref<5x32x128xf32, #tpu.memory_space<vmem>>, vector<1x8x128xf32>
    %894 = vector.shape_cast %893 : vector<1x8x128xf32> to vector<8x128xf32>
    %c1_593 = arith.constant 1 : index
    %c6_594 = arith.constant 6 : index
    %c0_595 = arith.constant 0 : index
    %895 = vector.load %arg5[%c1_593, %c6_594, %c0_595] : memref<5x32x128xf32, #tpu.memory_space<vmem>>, vector<1x8x128xf32>
    %896 = vector.shape_cast %895 : vector<1x8x128xf32> to vector<8x128xf32>
    %897 = arith.addf %894, %896 : vector<8x128xf32>
    %cst_596 = arith.constant 0.213005543 : f32
    %898 = vector.broadcast %cst_596 : f32 to vector<8x128xf32>
    %899 = arith.mulf %898, %897 : vector<8x128xf32>
    %900 = arith.addf %892, %899 : vector<8x128xf32>
    %c2_597 = arith.constant 2 : index
    %c5_598 = arith.constant 5 : index
    %c0_599 = arith.constant 0 : index
    %901 = vector.load %arg5[%c2_597, %c5_598, %c0_599] : memref<5x32x128xf32, #tpu.memory_space<vmem>>, vector<1x8x128xf32>
    %902 = vector.shape_cast %901 : vector<1x8x128xf32> to vector<8x128xf32>
    %cst_600 = arith.constant 0.266011715 : f32
    %903 = vector.broadcast %cst_600 : f32 to vector<8x128xf32>
    %904 = arith.mulf %903, %902 : vector<8x128xf32>
    %c2_601 = arith.constant 2 : index
    %c0_602 = arith.constant 0 : index
    %c0_603 = arith.constant 0 : index
    %905 = vector.load %arg5[%c2_601, %c0_602, %c0_603] : memref<5x32x128xf32, #tpu.memory_space<vmem>>, vector<1x8x128xf32>
    %906 = vector.shape_cast %905 : vector<1x8x128xf32> to vector<8x128xf32>
    %c2_604 = arith.constant 2 : index
    %c10_605 = arith.constant 10 : index
    %c0_606 = arith.constant 0 : index
    %907 = vector.load %arg5[%c2_604, %c10_605, %c0_606] : memref<5x32x128xf32, #tpu.memory_space<vmem>>, vector<1x8x128xf32>
    %908 = vector.shape_cast %907 : vector<1x8x128xf32> to vector<8x128xf32>
    %909 = arith.addf %906, %908 : vector<8x128xf32>
    %cst_607 = arith.constant 0.00102838012 : f32
    %910 = vector.broadcast %cst_607 : f32 to vector<8x128xf32>
    %911 = arith.mulf %910, %909 : vector<8x128xf32>
    %912 = arith.addf %904, %911 : vector<8x128xf32>
    %c2_608 = arith.constant 2 : index
    %c1_609 = arith.constant 1 : index
    %c0_610 = arith.constant 0 : index
    %913 = vector.load %arg5[%c2_608, %c1_609, %c0_610] : memref<5x32x128xf32, #tpu.memory_space<vmem>>, vector<1x8x128xf32>
    %914 = vector.shape_cast %913 : vector<1x8x128xf32> to vector<8x128xf32>
    %c2_611 = arith.constant 2 : index
    %c9_612 = arith.constant 9 : index
    %c0_613 = arith.constant 0 : index
    %915 = vector.load %arg5[%c2_611, %c9_612, %c0_613] : memref<5x32x128xf32, #tpu.memory_space<vmem>>, vector<1x8x128xf32>
    %916 = vector.shape_cast %915 : vector<1x8x128xf32> to vector<8x128xf32>
    %917 = arith.addf %914, %916 : vector<8x128xf32>
    %cst_614 = arith.constant 0.00759875821 : f32
    %918 = vector.broadcast %cst_614 : f32 to vector<8x128xf32>
    %919 = arith.mulf %918, %917 : vector<8x128xf32>
    %920 = arith.addf %912, %919 : vector<8x128xf32>
    %c2_615 = arith.constant 2 : index
    %c2_616 = arith.constant 2 : index
    %c0_617 = arith.constant 0 : index
    %921 = vector.load %arg5[%c2_615, %c2_616, %c0_617] : memref<5x32x128xf32, #tpu.memory_space<vmem>>, vector<1x8x128xf32>
    %922 = vector.shape_cast %921 : vector<1x8x128xf32> to vector<8x128xf32>
    %c2_618 = arith.constant 2 : index
    %c8_619 = arith.constant 8 : index
    %c0_620 = arith.constant 0 : index
    %923 = vector.load %arg5[%c2_618, %c8_619, %c0_620] : memref<5x32x128xf32, #tpu.memory_space<vmem>>, vector<1x8x128xf32>
    %924 = vector.shape_cast %923 : vector<1x8x128xf32> to vector<8x128xf32>
    %925 = arith.addf %922, %924 : vector<8x128xf32>
    %cst_621 = arith.constant 0.0360007733 : f32
    %926 = vector.broadcast %cst_621 : f32 to vector<8x128xf32>
    %927 = arith.mulf %926, %925 : vector<8x128xf32>
    %928 = arith.addf %920, %927 : vector<8x128xf32>
    %c2_622 = arith.constant 2 : index
    %c3_623 = arith.constant 3 : index
    %c0_624 = arith.constant 0 : index
    %929 = vector.load %arg5[%c2_622, %c3_623, %c0_624] : memref<5x32x128xf32, #tpu.memory_space<vmem>>, vector<1x8x128xf32>
    %930 = vector.shape_cast %929 : vector<1x8x128xf32> to vector<8x128xf32>
    %c2_625 = arith.constant 2 : index
    %c7_626 = arith.constant 7 : index
    %c0_627 = arith.constant 0 : index
    %931 = vector.load %arg5[%c2_625, %c7_626, %c0_627] : memref<5x32x128xf32, #tpu.memory_space<vmem>>, vector<1x8x128xf32>
    %932 = vector.shape_cast %931 : vector<1x8x128xf32> to vector<8x128xf32>
    %933 = arith.addf %930, %932 : vector<8x128xf32>
    %cst_628 = arith.constant 0.109360687 : f32
    %934 = vector.broadcast %cst_628 : f32 to vector<8x128xf32>
    %935 = arith.mulf %934, %933 : vector<8x128xf32>
    %936 = arith.addf %928, %935 : vector<8x128xf32>
    %c2_629 = arith.constant 2 : index
    %c4_630 = arith.constant 4 : index
    %c0_631 = arith.constant 0 : index
    %937 = vector.load %arg5[%c2_629, %c4_630, %c0_631] : memref<5x32x128xf32, #tpu.memory_space<vmem>>, vector<1x8x128xf32>
    %938 = vector.shape_cast %937 : vector<1x8x128xf32> to vector<8x128xf32>
    %c2_632 = arith.constant 2 : index
    %c6_633 = arith.constant 6 : index
    %c0_634 = arith.constant 0 : index
    %939 = vector.load %arg5[%c2_632, %c6_633, %c0_634] : memref<5x32x128xf32, #tpu.memory_space<vmem>>, vector<1x8x128xf32>
    %940 = vector.shape_cast %939 : vector<1x8x128xf32> to vector<8x128xf32>
    %941 = arith.addf %938, %940 : vector<8x128xf32>
    %cst_635 = arith.constant 0.213005543 : f32
    %942 = vector.broadcast %cst_635 : f32 to vector<8x128xf32>
    %943 = arith.mulf %942, %941 : vector<8x128xf32>
    %944 = arith.addf %936, %943 : vector<8x128xf32>
    %c3_636 = arith.constant 3 : index
    %c5_637 = arith.constant 5 : index
    %c0_638 = arith.constant 0 : index
    %945 = vector.load %arg5[%c3_636, %c5_637, %c0_638] : memref<5x32x128xf32, #tpu.memory_space<vmem>>, vector<1x8x128xf32>
    %946 = vector.shape_cast %945 : vector<1x8x128xf32> to vector<8x128xf32>
    %cst_639 = arith.constant 0.266011715 : f32
    %947 = vector.broadcast %cst_639 : f32 to vector<8x128xf32>
    %948 = arith.mulf %947, %946 : vector<8x128xf32>
    %c3_640 = arith.constant 3 : index
    %c0_641 = arith.constant 0 : index
    %c0_642 = arith.constant 0 : index
    %949 = vector.load %arg5[%c3_640, %c0_641, %c0_642] : memref<5x32x128xf32, #tpu.memory_space<vmem>>, vector<1x8x128xf32>
    %950 = vector.shape_cast %949 : vector<1x8x128xf32> to vector<8x128xf32>
    %c3_643 = arith.constant 3 : index
    %c10_644 = arith.constant 10 : index
    %c0_645 = arith.constant 0 : index
    %951 = vector.load %arg5[%c3_643, %c10_644, %c0_645] : memref<5x32x128xf32, #tpu.memory_space<vmem>>, vector<1x8x128xf32>
    %952 = vector.shape_cast %951 : vector<1x8x128xf32> to vector<8x128xf32>
    %953 = arith.addf %950, %952 : vector<8x128xf32>
    %cst_646 = arith.constant 0.00102838012 : f32
    %954 = vector.broadcast %cst_646 : f32 to vector<8x128xf32>
    %955 = arith.mulf %954, %953 : vector<8x128xf32>
    %956 = arith.addf %948, %955 : vector<8x128xf32>
    %c3_647 = arith.constant 3 : index
    %c1_648 = arith.constant 1 : index
    %c0_649 = arith.constant 0 : index
    %957 = vector.load %arg5[%c3_647, %c1_648, %c0_649] : memref<5x32x128xf32, #tpu.memory_space<vmem>>, vector<1x8x128xf32>
    %958 = vector.shape_cast %957 : vector<1x8x128xf32> to vector<8x128xf32>
    %c3_650 = arith.constant 3 : index
    %c9_651 = arith.constant 9 : index
    %c0_652 = arith.constant 0 : index
    %959 = vector.load %arg5[%c3_650, %c9_651, %c0_652] : memref<5x32x128xf32, #tpu.memory_space<vmem>>, vector<1x8x128xf32>
    %960 = vector.shape_cast %959 : vector<1x8x128xf32> to vector<8x128xf32>
    %961 = arith.addf %958, %960 : vector<8x128xf32>
    %cst_653 = arith.constant 0.00759875821 : f32
    %962 = vector.broadcast %cst_653 : f32 to vector<8x128xf32>
    %963 = arith.mulf %962, %961 : vector<8x128xf32>
    %964 = arith.addf %956, %963 : vector<8x128xf32>
    %c3_654 = arith.constant 3 : index
    %c2_655 = arith.constant 2 : index
    %c0_656 = arith.constant 0 : index
    %965 = vector.load %arg5[%c3_654, %c2_655, %c0_656] : memref<5x32x128xf32, #tpu.memory_space<vmem>>, vector<1x8x128xf32>
    %966 = vector.shape_cast %965 : vector<1x8x128xf32> to vector<8x128xf32>
    %c3_657 = arith.constant 3 : index
    %c8_658 = arith.constant 8 : index
    %c0_659 = arith.constant 0 : index
    %967 = vector.load %arg5[%c3_657, %c8_658, %c0_659] : memref<5x32x128xf32, #tpu.memory_space<vmem>>, vector<1x8x128xf32>
    %968 = vector.shape_cast %967 : vector<1x8x128xf32> to vector<8x128xf32>
    %969 = arith.addf %966, %968 : vector<8x128xf32>
    %cst_660 = arith.constant 0.0360007733 : f32
    %970 = vector.broadcast %cst_660 : f32 to vector<8x128xf32>
    %971 = arith.mulf %970, %969 : vector<8x128xf32>
    %972 = arith.addf %964, %971 : vector<8x128xf32>
    %c3_661 = arith.constant 3 : index
    %c3_662 = arith.constant 3 : index
    %c0_663 = arith.constant 0 : index
    %973 = vector.load %arg5[%c3_661, %c3_662, %c0_663] : memref<5x32x128xf32, #tpu.memory_space<vmem>>, vector<1x8x128xf32>
    %974 = vector.shape_cast %973 : vector<1x8x128xf32> to vector<8x128xf32>
    %c3_664 = arith.constant 3 : index
    %c7_665 = arith.constant 7 : index
    %c0_666 = arith.constant 0 : index
    %975 = vector.load %arg5[%c3_664, %c7_665, %c0_666] : memref<5x32x128xf32, #tpu.memory_space<vmem>>, vector<1x8x128xf32>
    %976 = vector.shape_cast %975 : vector<1x8x128xf32> to vector<8x128xf32>
    %977 = arith.addf %974, %976 : vector<8x128xf32>
    %cst_667 = arith.constant 0.109360687 : f32
    %978 = vector.broadcast %cst_667 : f32 to vector<8x128xf32>
    %979 = arith.mulf %978, %977 : vector<8x128xf32>
    %980 = arith.addf %972, %979 : vector<8x128xf32>
    %c3_668 = arith.constant 3 : index
    %c4_669 = arith.constant 4 : index
    %c0_670 = arith.constant 0 : index
    %981 = vector.load %arg5[%c3_668, %c4_669, %c0_670] : memref<5x32x128xf32, #tpu.memory_space<vmem>>, vector<1x8x128xf32>
    %982 = vector.shape_cast %981 : vector<1x8x128xf32> to vector<8x128xf32>
    %c3_671 = arith.constant 3 : index
    %c6_672 = arith.constant 6 : index
    %c0_673 = arith.constant 0 : index
    %983 = vector.load %arg5[%c3_671, %c6_672, %c0_673] : memref<5x32x128xf32, #tpu.memory_space<vmem>>, vector<1x8x128xf32>
    %984 = vector.shape_cast %983 : vector<1x8x128xf32> to vector<8x128xf32>
    %985 = arith.addf %982, %984 : vector<8x128xf32>
    %cst_674 = arith.constant 0.213005543 : f32
    %986 = vector.broadcast %cst_674 : f32 to vector<8x128xf32>
    %987 = arith.mulf %986, %985 : vector<8x128xf32>
    %988 = arith.addf %980, %987 : vector<8x128xf32>
    %c4_675 = arith.constant 4 : index
    %c5_676 = arith.constant 5 : index
    %c0_677 = arith.constant 0 : index
    %989 = vector.load %arg5[%c4_675, %c5_676, %c0_677] : memref<5x32x128xf32, #tpu.memory_space<vmem>>, vector<1x8x128xf32>
    %990 = vector.shape_cast %989 : vector<1x8x128xf32> to vector<8x128xf32>
    %cst_678 = arith.constant 0.266011715 : f32
    %991 = vector.broadcast %cst_678 : f32 to vector<8x128xf32>
    %992 = arith.mulf %991, %990 : vector<8x128xf32>
    %c4_679 = arith.constant 4 : index
    %c0_680 = arith.constant 0 : index
    %c0_681 = arith.constant 0 : index
    %993 = vector.load %arg5[%c4_679, %c0_680, %c0_681] : memref<5x32x128xf32, #tpu.memory_space<vmem>>, vector<1x8x128xf32>
    %994 = vector.shape_cast %993 : vector<1x8x128xf32> to vector<8x128xf32>
    %c4_682 = arith.constant 4 : index
    %c10_683 = arith.constant 10 : index
    %c0_684 = arith.constant 0 : index
    %995 = vector.load %arg5[%c4_682, %c10_683, %c0_684] : memref<5x32x128xf32, #tpu.memory_space<vmem>>, vector<1x8x128xf32>
    %996 = vector.shape_cast %995 : vector<1x8x128xf32> to vector<8x128xf32>
    %997 = arith.addf %994, %996 : vector<8x128xf32>
    %cst_685 = arith.constant 0.00102838012 : f32
    %998 = vector.broadcast %cst_685 : f32 to vector<8x128xf32>
    %999 = arith.mulf %998, %997 : vector<8x128xf32>
    %1000 = arith.addf %992, %999 : vector<8x128xf32>
    %c4_686 = arith.constant 4 : index
    %c1_687 = arith.constant 1 : index
    %c0_688 = arith.constant 0 : index
    %1001 = vector.load %arg5[%c4_686, %c1_687, %c0_688] : memref<5x32x128xf32, #tpu.memory_space<vmem>>, vector<1x8x128xf32>
    %1002 = vector.shape_cast %1001 : vector<1x8x128xf32> to vector<8x128xf32>
    %c4_689 = arith.constant 4 : index
    %c9_690 = arith.constant 9 : index
    %c0_691 = arith.constant 0 : index
    %1003 = vector.load %arg5[%c4_689, %c9_690, %c0_691] : memref<5x32x128xf32, #tpu.memory_space<vmem>>, vector<1x8x128xf32>
    %1004 = vector.shape_cast %1003 : vector<1x8x128xf32> to vector<8x128xf32>
    %1005 = arith.addf %1002, %1004 : vector<8x128xf32>
    %cst_692 = arith.constant 0.00759875821 : f32
    %1006 = vector.broadcast %cst_692 : f32 to vector<8x128xf32>
    %1007 = arith.mulf %1006, %1005 : vector<8x128xf32>
    %1008 = arith.addf %1000, %1007 : vector<8x128xf32>
    %c4_693 = arith.constant 4 : index
    %c2_694 = arith.constant 2 : index
    %c0_695 = arith.constant 0 : index
    %1009 = vector.load %arg5[%c4_693, %c2_694, %c0_695] : memref<5x32x128xf32, #tpu.memory_space<vmem>>, vector<1x8x128xf32>
    %1010 = vector.shape_cast %1009 : vector<1x8x128xf32> to vector<8x128xf32>
    %c4_696 = arith.constant 4 : index
    %c8_697 = arith.constant 8 : index
    %c0_698 = arith.constant 0 : index
    %1011 = vector.load %arg5[%c4_696, %c8_697, %c0_698] : memref<5x32x128xf32, #tpu.memory_space<vmem>>, vector<1x8x128xf32>
    %1012 = vector.shape_cast %1011 : vector<1x8x128xf32> to vector<8x128xf32>
    %1013 = arith.addf %1010, %1012 : vector<8x128xf32>
    %cst_699 = arith.constant 0.0360007733 : f32
    %1014 = vector.broadcast %cst_699 : f32 to vector<8x128xf32>
    %1015 = arith.mulf %1014, %1013 : vector<8x128xf32>
    %1016 = arith.addf %1008, %1015 : vector<8x128xf32>
    %c4_700 = arith.constant 4 : index
    %c3_701 = arith.constant 3 : index
    %c0_702 = arith.constant 0 : index
    %1017 = vector.load %arg5[%c4_700, %c3_701, %c0_702] : memref<5x32x128xf32, #tpu.memory_space<vmem>>, vector<1x8x128xf32>
    %1018 = vector.shape_cast %1017 : vector<1x8x128xf32> to vector<8x128xf32>
    %c4_703 = arith.constant 4 : index
    %c7_704 = arith.constant 7 : index
    %c0_705 = arith.constant 0 : index
    %1019 = vector.load %arg5[%c4_703, %c7_704, %c0_705] : memref<5x32x128xf32, #tpu.memory_space<vmem>>, vector<1x8x128xf32>
    %1020 = vector.shape_cast %1019 : vector<1x8x128xf32> to vector<8x128xf32>
    %1021 = arith.addf %1018, %1020 : vector<8x128xf32>
    %cst_706 = arith.constant 0.109360687 : f32
    %1022 = vector.broadcast %cst_706 : f32 to vector<8x128xf32>
    %1023 = arith.mulf %1022, %1021 : vector<8x128xf32>
    %1024 = arith.addf %1016, %1023 : vector<8x128xf32>
    %c4_707 = arith.constant 4 : index
    %c4_708 = arith.constant 4 : index
    %c0_709 = arith.constant 0 : index
    %1025 = vector.load %arg5[%c4_707, %c4_708, %c0_709] : memref<5x32x128xf32, #tpu.memory_space<vmem>>, vector<1x8x128xf32>
    %1026 = vector.shape_cast %1025 : vector<1x8x128xf32> to vector<8x128xf32>
    %c4_710 = arith.constant 4 : index
    %c6_711 = arith.constant 6 : index
    %c0_712 = arith.constant 0 : index
    %1027 = vector.load %arg5[%c4_710, %c6_711, %c0_712] : memref<5x32x128xf32, #tpu.memory_space<vmem>>, vector<1x8x128xf32>
    %1028 = vector.shape_cast %1027 : vector<1x8x128xf32> to vector<8x128xf32>
    %1029 = arith.addf %1026, %1028 : vector<8x128xf32>
    %cst_713 = arith.constant 0.213005543 : f32
    %1030 = vector.broadcast %cst_713 : f32 to vector<8x128xf32>
    %1031 = arith.mulf %1030, %1029 : vector<8x128xf32>
    %1032 = arith.addf %1024, %1031 : vector<8x128xf32>
    %1033 = arith.mulf %856, %856 : vector<8x128xf32>
    %1034 = arith.mulf %900, %900 : vector<8x128xf32>
    %1035 = arith.mulf %856, %900 : vector<8x128xf32>
    %1036 = arith.subf %944, %1033 : vector<8x128xf32>
    %1037 = arith.subf %988, %1034 : vector<8x128xf32>
    %1038 = arith.subf %1032, %1035 : vector<8x128xf32>
    %cst_714 = arith.constant 2.000000e+00 : f32
    %1039 = vector.broadcast %cst_714 : f32 to vector<8x128xf32>
    %1040 = arith.mulf %1039, %1035 : vector<8x128xf32>
    %cst_715 = arith.constant 9.99999974E-5 : f32
    %1041 = vector.broadcast %cst_715 : f32 to vector<8x128xf32>
    %1042 = arith.addf %1040, %1041 : vector<8x128xf32>
    %cst_716 = arith.constant 2.000000e+00 : f32
    %1043 = vector.broadcast %cst_716 : f32 to vector<8x128xf32>
    %1044 = arith.mulf %1043, %1038 : vector<8x128xf32>
    %cst_717 = arith.constant 8.99999984E-4 : f32
    %1045 = vector.broadcast %cst_717 : f32 to vector<8x128xf32>
    %1046 = arith.addf %1044, %1045 : vector<8x128xf32>
    %1047 = arith.mulf %1042, %1046 : vector<8x128xf32>
    %1048 = arith.addf %1033, %1034 : vector<8x128xf32>
    %cst_718 = arith.constant 9.99999974E-5 : f32
    %1049 = vector.broadcast %cst_718 : f32 to vector<8x128xf32>
    %1050 = arith.addf %1048, %1049 : vector<8x128xf32>
    %1051 = arith.addf %1036, %1037 : vector<8x128xf32>
    %cst_719 = arith.constant 8.99999984E-4 : f32
    %1052 = vector.broadcast %cst_719 : f32 to vector<8x128xf32>
    %1053 = arith.addf %1051, %1052 : vector<8x128xf32>
    %1054 = arith.mulf %1050, %1053 : vector<8x128xf32>
    %1055 = arith.divf %1047, %1054 : vector<8x128xf32>
    %c16_i32_720 = arith.constant 16 : i32
    %1056 = arith.muli %arg1, %c16_i32_720 : i32
    %c0_i32 = arith.constant 0 : i32
    %1057 = arith.addi %1056, %c0_i32 : i32
    %1058 = vector.broadcast %1057 : i32 to vector<8x128xi32>
    %1059 = arith.addi %811, %1058 : vector<8x128xi32>
    %c16_i32_721 = arith.constant 16 : i32
    %1060 = vector.broadcast %c16_i32_721 : i32 to vector<8x128xi32>
    %1061 = arith.cmpi slt, %1059, %1060 : vector<8x128xi32>
    %1062 = arith.andi %1061, %810 : vector<8x128xi1>
    %cst_722 = arith.constant 0.000000e+00 : f32
    %1063 = vector.broadcast %cst_722 : f32 to vector<8x128xf32>
    %1064 = arith.select %1062, %1055, %1063 : vector<8x128xi1>, vector<8x128xf32>
    %1065 = arith.addf %812, %1064 : vector<8x128xf32>
    %c0_723 = arith.constant 0 : index
    %c13 = arith.constant 13 : index
    %c0_724 = arith.constant 0 : index
    %1066 = vector.load %arg5[%c0_723, %c13, %c0_724] : memref<5x32x128xf32, #tpu.memory_space<vmem>>, vector<1x8x128xf32>
    %1067 = vector.shape_cast %1066 : vector<1x8x128xf32> to vector<8x128xf32>
    %cst_725 = arith.constant 0.266011715 : f32
    %1068 = vector.broadcast %cst_725 : f32 to vector<8x128xf32>
    %1069 = arith.mulf %1068, %1067 : vector<8x128xf32>
    %c0_726 = arith.constant 0 : index
    %c8_727 = arith.constant 8 : index
    %c0_728 = arith.constant 0 : index
    %1070 = vector.load %arg5[%c0_726, %c8_727, %c0_728] : memref<5x32x128xf32, #tpu.memory_space<vmem>>, vector<1x8x128xf32>
    %1071 = vector.shape_cast %1070 : vector<1x8x128xf32> to vector<8x128xf32>
    %c0_729 = arith.constant 0 : index
    %c18 = arith.constant 18 : index
    %c0_730 = arith.constant 0 : index
    %1072 = vector.load %arg5[%c0_729, %c18, %c0_730] : memref<5x32x128xf32, #tpu.memory_space<vmem>>, vector<1x8x128xf32>
    %1073 = vector.shape_cast %1072 : vector<1x8x128xf32> to vector<8x128xf32>
    %1074 = arith.addf %1071, %1073 : vector<8x128xf32>
    %cst_731 = arith.constant 0.00102838012 : f32
    %1075 = vector.broadcast %cst_731 : f32 to vector<8x128xf32>
    %1076 = arith.mulf %1075, %1074 : vector<8x128xf32>
    %1077 = arith.addf %1069, %1076 : vector<8x128xf32>
    %c0_732 = arith.constant 0 : index
    %c9_733 = arith.constant 9 : index
    %c0_734 = arith.constant 0 : index
    %1078 = vector.load %arg5[%c0_732, %c9_733, %c0_734] : memref<5x32x128xf32, #tpu.memory_space<vmem>>, vector<1x8x128xf32>
    %1079 = vector.shape_cast %1078 : vector<1x8x128xf32> to vector<8x128xf32>
    %c0_735 = arith.constant 0 : index
    %c17 = arith.constant 17 : index
    %c0_736 = arith.constant 0 : index
    %1080 = vector.load %arg5[%c0_735, %c17, %c0_736] : memref<5x32x128xf32, #tpu.memory_space<vmem>>, vector<1x8x128xf32>
    %1081 = vector.shape_cast %1080 : vector<1x8x128xf32> to vector<8x128xf32>
    %1082 = arith.addf %1079, %1081 : vector<8x128xf32>
    %cst_737 = arith.constant 0.00759875821 : f32
    %1083 = vector.broadcast %cst_737 : f32 to vector<8x128xf32>
    %1084 = arith.mulf %1083, %1082 : vector<8x128xf32>
    %1085 = arith.addf %1077, %1084 : vector<8x128xf32>
    %c0_738 = arith.constant 0 : index
    %c10_739 = arith.constant 10 : index
    %c0_740 = arith.constant 0 : index
    %1086 = vector.load %arg5[%c0_738, %c10_739, %c0_740] : memref<5x32x128xf32, #tpu.memory_space<vmem>>, vector<1x8x128xf32>
    %1087 = vector.shape_cast %1086 : vector<1x8x128xf32> to vector<8x128xf32>
    %c0_741 = arith.constant 0 : index
    %c16_742 = arith.constant 16 : index
    %c0_743 = arith.constant 0 : index
    %1088 = vector.load %arg5[%c0_741, %c16_742, %c0_743] : memref<5x32x128xf32, #tpu.memory_space<vmem>>, vector<1x8x128xf32>
    %1089 = vector.shape_cast %1088 : vector<1x8x128xf32> to vector<8x128xf32>
    %1090 = arith.addf %1087, %1089 : vector<8x128xf32>
    %cst_744 = arith.constant 0.0360007733 : f32
    %1091 = vector.broadcast %cst_744 : f32 to vector<8x128xf32>
    %1092 = arith.mulf %1091, %1090 : vector<8x128xf32>
    %1093 = arith.addf %1085, %1092 : vector<8x128xf32>
    %c0_745 = arith.constant 0 : index
    %c11 = arith.constant 11 : index
    %c0_746 = arith.constant 0 : index
    %1094 = vector.load %arg5[%c0_745, %c11, %c0_746] : memref<5x32x128xf32, #tpu.memory_space<vmem>>, vector<1x8x128xf32>
    %1095 = vector.shape_cast %1094 : vector<1x8x128xf32> to vector<8x128xf32>
    %c0_747 = arith.constant 0 : index
    %c15 = arith.constant 15 : index
    %c0_748 = arith.constant 0 : index
    %1096 = vector.load %arg5[%c0_747, %c15, %c0_748] : memref<5x32x128xf32, #tpu.memory_space<vmem>>, vector<1x8x128xf32>
    %1097 = vector.shape_cast %1096 : vector<1x8x128xf32> to vector<8x128xf32>
    %1098 = arith.addf %1095, %1097 : vector<8x128xf32>
    %cst_749 = arith.constant 0.109360687 : f32
    %1099 = vector.broadcast %cst_749 : f32 to vector<8x128xf32>
    %1100 = arith.mulf %1099, %1098 : vector<8x128xf32>
    %1101 = arith.addf %1093, %1100 : vector<8x128xf32>
    %c0_750 = arith.constant 0 : index
    %c12 = arith.constant 12 : index
    %c0_751 = arith.constant 0 : index
    %1102 = vector.load %arg5[%c0_750, %c12, %c0_751] : memref<5x32x128xf32, #tpu.memory_space<vmem>>, vector<1x8x128xf32>
    %1103 = vector.shape_cast %1102 : vector<1x8x128xf32> to vector<8x128xf32>
    %c0_752 = arith.constant 0 : index
    %c14 = arith.constant 14 : index
    %c0_753 = arith.constant 0 : index
    %1104 = vector.load %arg5[%c0_752, %c14, %c0_753] : memref<5x32x128xf32, #tpu.memory_space<vmem>>, vector<1x8x128xf32>
    %1105 = vector.shape_cast %1104 : vector<1x8x128xf32> to vector<8x128xf32>
    %1106 = arith.addf %1103, %1105 : vector<8x128xf32>
    %cst_754 = arith.constant 0.213005543 : f32
    %1107 = vector.broadcast %cst_754 : f32 to vector<8x128xf32>
    %1108 = arith.mulf %1107, %1106 : vector<8x128xf32>
    %1109 = arith.addf %1101, %1108 : vector<8x128xf32>
    %c1_755 = arith.constant 1 : index
    %c13_756 = arith.constant 13 : index
    %c0_757 = arith.constant 0 : index
    %1110 = vector.load %arg5[%c1_755, %c13_756, %c0_757] : memref<5x32x128xf32, #tpu.memory_space<vmem>>, vector<1x8x128xf32>
    %1111 = vector.shape_cast %1110 : vector<1x8x128xf32> to vector<8x128xf32>
    %cst_758 = arith.constant 0.266011715 : f32
    %1112 = vector.broadcast %cst_758 : f32 to vector<8x128xf32>
    %1113 = arith.mulf %1112, %1111 : vector<8x128xf32>
    %c1_759 = arith.constant 1 : index
    %c8_760 = arith.constant 8 : index
    %c0_761 = arith.constant 0 : index
    %1114 = vector.load %arg5[%c1_759, %c8_760, %c0_761] : memref<5x32x128xf32, #tpu.memory_space<vmem>>, vector<1x8x128xf32>
    %1115 = vector.shape_cast %1114 : vector<1x8x128xf32> to vector<8x128xf32>
    %c1_762 = arith.constant 1 : index
    %c18_763 = arith.constant 18 : index
    %c0_764 = arith.constant 0 : index
    %1116 = vector.load %arg5[%c1_762, %c18_763, %c0_764] : memref<5x32x128xf32, #tpu.memory_space<vmem>>, vector<1x8x128xf32>
    %1117 = vector.shape_cast %1116 : vector<1x8x128xf32> to vector<8x128xf32>
    %1118 = arith.addf %1115, %1117 : vector<8x128xf32>
    %cst_765 = arith.constant 0.00102838012 : f32
    %1119 = vector.broadcast %cst_765 : f32 to vector<8x128xf32>
    %1120 = arith.mulf %1119, %1118 : vector<8x128xf32>
    %1121 = arith.addf %1113, %1120 : vector<8x128xf32>
    %c1_766 = arith.constant 1 : index
    %c9_767 = arith.constant 9 : index
    %c0_768 = arith.constant 0 : index
    %1122 = vector.load %arg5[%c1_766, %c9_767, %c0_768] : memref<5x32x128xf32, #tpu.memory_space<vmem>>, vector<1x8x128xf32>
    %1123 = vector.shape_cast %1122 : vector<1x8x128xf32> to vector<8x128xf32>
    %c1_769 = arith.constant 1 : index
    %c17_770 = arith.constant 17 : index
    %c0_771 = arith.constant 0 : index
    %1124 = vector.load %arg5[%c1_769, %c17_770, %c0_771] : memref<5x32x128xf32, #tpu.memory_space<vmem>>, vector<1x8x128xf32>
    %1125 = vector.shape_cast %1124 : vector<1x8x128xf32> to vector<8x128xf32>
    %1126 = arith.addf %1123, %1125 : vector<8x128xf32>
    %cst_772 = arith.constant 0.00759875821 : f32
    %1127 = vector.broadcast %cst_772 : f32 to vector<8x128xf32>
    %1128 = arith.mulf %1127, %1126 : vector<8x128xf32>
    %1129 = arith.addf %1121, %1128 : vector<8x128xf32>
    %c1_773 = arith.constant 1 : index
    %c10_774 = arith.constant 10 : index
    %c0_775 = arith.constant 0 : index
    %1130 = vector.load %arg5[%c1_773, %c10_774, %c0_775] : memref<5x32x128xf32, #tpu.memory_space<vmem>>, vector<1x8x128xf32>
    %1131 = vector.shape_cast %1130 : vector<1x8x128xf32> to vector<8x128xf32>
    %c1_776 = arith.constant 1 : index
    %c16_777 = arith.constant 16 : index
    %c0_778 = arith.constant 0 : index
    %1132 = vector.load %arg5[%c1_776, %c16_777, %c0_778] : memref<5x32x128xf32, #tpu.memory_space<vmem>>, vector<1x8x128xf32>
    %1133 = vector.shape_cast %1132 : vector<1x8x128xf32> to vector<8x128xf32>
    %1134 = arith.addf %1131, %1133 : vector<8x128xf32>
    %cst_779 = arith.constant 0.0360007733 : f32
    %1135 = vector.broadcast %cst_779 : f32 to vector<8x128xf32>
    %1136 = arith.mulf %1135, %1134 : vector<8x128xf32>
    %1137 = arith.addf %1129, %1136 : vector<8x128xf32>
    %c1_780 = arith.constant 1 : index
    %c11_781 = arith.constant 11 : index
    %c0_782 = arith.constant 0 : index
    %1138 = vector.load %arg5[%c1_780, %c11_781, %c0_782] : memref<5x32x128xf32, #tpu.memory_space<vmem>>, vector<1x8x128xf32>
    %1139 = vector.shape_cast %1138 : vector<1x8x128xf32> to vector<8x128xf32>
    %c1_783 = arith.constant 1 : index
    %c15_784 = arith.constant 15 : index
    %c0_785 = arith.constant 0 : index
    %1140 = vector.load %arg5[%c1_783, %c15_784, %c0_785] : memref<5x32x128xf32, #tpu.memory_space<vmem>>, vector<1x8x128xf32>
    %1141 = vector.shape_cast %1140 : vector<1x8x128xf32> to vector<8x128xf32>
    %1142 = arith.addf %1139, %1141 : vector<8x128xf32>
    %cst_786 = arith.constant 0.109360687 : f32
    %1143 = vector.broadcast %cst_786 : f32 to vector<8x128xf32>
    %1144 = arith.mulf %1143, %1142 : vector<8x128xf32>
    %1145 = arith.addf %1137, %1144 : vector<8x128xf32>
    %c1_787 = arith.constant 1 : index
    %c12_788 = arith.constant 12 : index
    %c0_789 = arith.constant 0 : index
    %1146 = vector.load %arg5[%c1_787, %c12_788, %c0_789] : memref<5x32x128xf32, #tpu.memory_space<vmem>>, vector<1x8x128xf32>
    %1147 = vector.shape_cast %1146 : vector<1x8x128xf32> to vector<8x128xf32>
    %c1_790 = arith.constant 1 : index
    %c14_791 = arith.constant 14 : index
    %c0_792 = arith.constant 0 : index
    %1148 = vector.load %arg5[%c1_790, %c14_791, %c0_792] : memref<5x32x128xf32, #tpu.memory_space<vmem>>, vector<1x8x128xf32>
    %1149 = vector.shape_cast %1148 : vector<1x8x128xf32> to vector<8x128xf32>
    %1150 = arith.addf %1147, %1149 : vector<8x128xf32>
    %cst_793 = arith.constant 0.213005543 : f32
    %1151 = vector.broadcast %cst_793 : f32 to vector<8x128xf32>
    %1152 = arith.mulf %1151, %1150 : vector<8x128xf32>
    %1153 = arith.addf %1145, %1152 : vector<8x128xf32>
    %c2_794 = arith.constant 2 : index
    %c13_795 = arith.constant 13 : index
    %c0_796 = arith.constant 0 : index
    %1154 = vector.load %arg5[%c2_794, %c13_795, %c0_796] : memref<5x32x128xf32, #tpu.memory_space<vmem>>, vector<1x8x128xf32>
    %1155 = vector.shape_cast %1154 : vector<1x8x128xf32> to vector<8x128xf32>
    %cst_797 = arith.constant 0.266011715 : f32
    %1156 = vector.broadcast %cst_797 : f32 to vector<8x128xf32>
    %1157 = arith.mulf %1156, %1155 : vector<8x128xf32>
    %c2_798 = arith.constant 2 : index
    %c8_799 = arith.constant 8 : index
    %c0_800 = arith.constant 0 : index
    %1158 = vector.load %arg5[%c2_798, %c8_799, %c0_800] : memref<5x32x128xf32, #tpu.memory_space<vmem>>, vector<1x8x128xf32>
    %1159 = vector.shape_cast %1158 : vector<1x8x128xf32> to vector<8x128xf32>
    %c2_801 = arith.constant 2 : index
    %c18_802 = arith.constant 18 : index
    %c0_803 = arith.constant 0 : index
    %1160 = vector.load %arg5[%c2_801, %c18_802, %c0_803] : memref<5x32x128xf32, #tpu.memory_space<vmem>>, vector<1x8x128xf32>
    %1161 = vector.shape_cast %1160 : vector<1x8x128xf32> to vector<8x128xf32>
    %1162 = arith.addf %1159, %1161 : vector<8x128xf32>
    %cst_804 = arith.constant 0.00102838012 : f32
    %1163 = vector.broadcast %cst_804 : f32 to vector<8x128xf32>
    %1164 = arith.mulf %1163, %1162 : vector<8x128xf32>
    %1165 = arith.addf %1157, %1164 : vector<8x128xf32>
    %c2_805 = arith.constant 2 : index
    %c9_806 = arith.constant 9 : index
    %c0_807 = arith.constant 0 : index
    %1166 = vector.load %arg5[%c2_805, %c9_806, %c0_807] : memref<5x32x128xf32, #tpu.memory_space<vmem>>, vector<1x8x128xf32>
    %1167 = vector.shape_cast %1166 : vector<1x8x128xf32> to vector<8x128xf32>
    %c2_808 = arith.constant 2 : index
    %c17_809 = arith.constant 17 : index
    %c0_810 = arith.constant 0 : index
    %1168 = vector.load %arg5[%c2_808, %c17_809, %c0_810] : memref<5x32x128xf32, #tpu.memory_space<vmem>>, vector<1x8x128xf32>
    %1169 = vector.shape_cast %1168 : vector<1x8x128xf32> to vector<8x128xf32>
    %1170 = arith.addf %1167, %1169 : vector<8x128xf32>
    %cst_811 = arith.constant 0.00759875821 : f32
    %1171 = vector.broadcast %cst_811 : f32 to vector<8x128xf32>
    %1172 = arith.mulf %1171, %1170 : vector<8x128xf32>
    %1173 = arith.addf %1165, %1172 : vector<8x128xf32>
    %c2_812 = arith.constant 2 : index
    %c10_813 = arith.constant 10 : index
    %c0_814 = arith.constant 0 : index
    %1174 = vector.load %arg5[%c2_812, %c10_813, %c0_814] : memref<5x32x128xf32, #tpu.memory_space<vmem>>, vector<1x8x128xf32>
    %1175 = vector.shape_cast %1174 : vector<1x8x128xf32> to vector<8x128xf32>
    %c2_815 = arith.constant 2 : index
    %c16_816 = arith.constant 16 : index
    %c0_817 = arith.constant 0 : index
    %1176 = vector.load %arg5[%c2_815, %c16_816, %c0_817] : memref<5x32x128xf32, #tpu.memory_space<vmem>>, vector<1x8x128xf32>
    %1177 = vector.shape_cast %1176 : vector<1x8x128xf32> to vector<8x128xf32>
    %1178 = arith.addf %1175, %1177 : vector<8x128xf32>
    %cst_818 = arith.constant 0.0360007733 : f32
    %1179 = vector.broadcast %cst_818 : f32 to vector<8x128xf32>
    %1180 = arith.mulf %1179, %1178 : vector<8x128xf32>
    %1181 = arith.addf %1173, %1180 : vector<8x128xf32>
    %c2_819 = arith.constant 2 : index
    %c11_820 = arith.constant 11 : index
    %c0_821 = arith.constant 0 : index
    %1182 = vector.load %arg5[%c2_819, %c11_820, %c0_821] : memref<5x32x128xf32, #tpu.memory_space<vmem>>, vector<1x8x128xf32>
    %1183 = vector.shape_cast %1182 : vector<1x8x128xf32> to vector<8x128xf32>
    %c2_822 = arith.constant 2 : index
    %c15_823 = arith.constant 15 : index
    %c0_824 = arith.constant 0 : index
    %1184 = vector.load %arg5[%c2_822, %c15_823, %c0_824] : memref<5x32x128xf32, #tpu.memory_space<vmem>>, vector<1x8x128xf32>
    %1185 = vector.shape_cast %1184 : vector<1x8x128xf32> to vector<8x128xf32>
    %1186 = arith.addf %1183, %1185 : vector<8x128xf32>
    %cst_825 = arith.constant 0.109360687 : f32
    %1187 = vector.broadcast %cst_825 : f32 to vector<8x128xf32>
    %1188 = arith.mulf %1187, %1186 : vector<8x128xf32>
    %1189 = arith.addf %1181, %1188 : vector<8x128xf32>
    %c2_826 = arith.constant 2 : index
    %c12_827 = arith.constant 12 : index
    %c0_828 = arith.constant 0 : index
    %1190 = vector.load %arg5[%c2_826, %c12_827, %c0_828] : memref<5x32x128xf32, #tpu.memory_space<vmem>>, vector<1x8x128xf32>
    %1191 = vector.shape_cast %1190 : vector<1x8x128xf32> to vector<8x128xf32>
    %c2_829 = arith.constant 2 : index
    %c14_830 = arith.constant 14 : index
    %c0_831 = arith.constant 0 : index
    %1192 = vector.load %arg5[%c2_829, %c14_830, %c0_831] : memref<5x32x128xf32, #tpu.memory_space<vmem>>, vector<1x8x128xf32>
    %1193 = vector.shape_cast %1192 : vector<1x8x128xf32> to vector<8x128xf32>
    %1194 = arith.addf %1191, %1193 : vector<8x128xf32>
    %cst_832 = arith.constant 0.213005543 : f32
    %1195 = vector.broadcast %cst_832 : f32 to vector<8x128xf32>
    %1196 = arith.mulf %1195, %1194 : vector<8x128xf32>
    %1197 = arith.addf %1189, %1196 : vector<8x128xf32>
    %c3_833 = arith.constant 3 : index
    %c13_834 = arith.constant 13 : index
    %c0_835 = arith.constant 0 : index
    %1198 = vector.load %arg5[%c3_833, %c13_834, %c0_835] : memref<5x32x128xf32, #tpu.memory_space<vmem>>, vector<1x8x128xf32>
    %1199 = vector.shape_cast %1198 : vector<1x8x128xf32> to vector<8x128xf32>
    %cst_836 = arith.constant 0.266011715 : f32
    %1200 = vector.broadcast %cst_836 : f32 to vector<8x128xf32>
    %1201 = arith.mulf %1200, %1199 : vector<8x128xf32>
    %c3_837 = arith.constant 3 : index
    %c8_838 = arith.constant 8 : index
    %c0_839 = arith.constant 0 : index
    %1202 = vector.load %arg5[%c3_837, %c8_838, %c0_839] : memref<5x32x128xf32, #tpu.memory_space<vmem>>, vector<1x8x128xf32>
    %1203 = vector.shape_cast %1202 : vector<1x8x128xf32> to vector<8x128xf32>
    %c3_840 = arith.constant 3 : index
    %c18_841 = arith.constant 18 : index
    %c0_842 = arith.constant 0 : index
    %1204 = vector.load %arg5[%c3_840, %c18_841, %c0_842] : memref<5x32x128xf32, #tpu.memory_space<vmem>>, vector<1x8x128xf32>
    %1205 = vector.shape_cast %1204 : vector<1x8x128xf32> to vector<8x128xf32>
    %1206 = arith.addf %1203, %1205 : vector<8x128xf32>
    %cst_843 = arith.constant 0.00102838012 : f32
    %1207 = vector.broadcast %cst_843 : f32 to vector<8x128xf32>
    %1208 = arith.mulf %1207, %1206 : vector<8x128xf32>
    %1209 = arith.addf %1201, %1208 : vector<8x128xf32>
    %c3_844 = arith.constant 3 : index
    %c9_845 = arith.constant 9 : index
    %c0_846 = arith.constant 0 : index
    %1210 = vector.load %arg5[%c3_844, %c9_845, %c0_846] : memref<5x32x128xf32, #tpu.memory_space<vmem>>, vector<1x8x128xf32>
    %1211 = vector.shape_cast %1210 : vector<1x8x128xf32> to vector<8x128xf32>
    %c3_847 = arith.constant 3 : index
    %c17_848 = arith.constant 17 : index
    %c0_849 = arith.constant 0 : index
    %1212 = vector.load %arg5[%c3_847, %c17_848, %c0_849] : memref<5x32x128xf32, #tpu.memory_space<vmem>>, vector<1x8x128xf32>
    %1213 = vector.shape_cast %1212 : vector<1x8x128xf32> to vector<8x128xf32>
    %1214 = arith.addf %1211, %1213 : vector<8x128xf32>
    %cst_850 = arith.constant 0.00759875821 : f32
    %1215 = vector.broadcast %cst_850 : f32 to vector<8x128xf32>
    %1216 = arith.mulf %1215, %1214 : vector<8x128xf32>
    %1217 = arith.addf %1209, %1216 : vector<8x128xf32>
    %c3_851 = arith.constant 3 : index
    %c10_852 = arith.constant 10 : index
    %c0_853 = arith.constant 0 : index
    %1218 = vector.load %arg5[%c3_851, %c10_852, %c0_853] : memref<5x32x128xf32, #tpu.memory_space<vmem>>, vector<1x8x128xf32>
    %1219 = vector.shape_cast %1218 : vector<1x8x128xf32> to vector<8x128xf32>
    %c3_854 = arith.constant 3 : index
    %c16_855 = arith.constant 16 : index
    %c0_856 = arith.constant 0 : index
    %1220 = vector.load %arg5[%c3_854, %c16_855, %c0_856] : memref<5x32x128xf32, #tpu.memory_space<vmem>>, vector<1x8x128xf32>
    %1221 = vector.shape_cast %1220 : vector<1x8x128xf32> to vector<8x128xf32>
    %1222 = arith.addf %1219, %1221 : vector<8x128xf32>
    %cst_857 = arith.constant 0.0360007733 : f32
    %1223 = vector.broadcast %cst_857 : f32 to vector<8x128xf32>
    %1224 = arith.mulf %1223, %1222 : vector<8x128xf32>
    %1225 = arith.addf %1217, %1224 : vector<8x128xf32>
    %c3_858 = arith.constant 3 : index
    %c11_859 = arith.constant 11 : index
    %c0_860 = arith.constant 0 : index
    %1226 = vector.load %arg5[%c3_858, %c11_859, %c0_860] : memref<5x32x128xf32, #tpu.memory_space<vmem>>, vector<1x8x128xf32>
    %1227 = vector.shape_cast %1226 : vector<1x8x128xf32> to vector<8x128xf32>
    %c3_861 = arith.constant 3 : index
    %c15_862 = arith.constant 15 : index
    %c0_863 = arith.constant 0 : index
    %1228 = vector.load %arg5[%c3_861, %c15_862, %c0_863] : memref<5x32x128xf32, #tpu.memory_space<vmem>>, vector<1x8x128xf32>
    %1229 = vector.shape_cast %1228 : vector<1x8x128xf32> to vector<8x128xf32>
    %1230 = arith.addf %1227, %1229 : vector<8x128xf32>
    %cst_864 = arith.constant 0.109360687 : f32
    %1231 = vector.broadcast %cst_864 : f32 to vector<8x128xf32>
    %1232 = arith.mulf %1231, %1230 : vector<8x128xf32>
    %1233 = arith.addf %1225, %1232 : vector<8x128xf32>
    %c3_865 = arith.constant 3 : index
    %c12_866 = arith.constant 12 : index
    %c0_867 = arith.constant 0 : index
    %1234 = vector.load %arg5[%c3_865, %c12_866, %c0_867] : memref<5x32x128xf32, #tpu.memory_space<vmem>>, vector<1x8x128xf32>
    %1235 = vector.shape_cast %1234 : vector<1x8x128xf32> to vector<8x128xf32>
    %c3_868 = arith.constant 3 : index
    %c14_869 = arith.constant 14 : index
    %c0_870 = arith.constant 0 : index
    %1236 = vector.load %arg5[%c3_868, %c14_869, %c0_870] : memref<5x32x128xf32, #tpu.memory_space<vmem>>, vector<1x8x128xf32>
    %1237 = vector.shape_cast %1236 : vector<1x8x128xf32> to vector<8x128xf32>
    %1238 = arith.addf %1235, %1237 : vector<8x128xf32>
    %cst_871 = arith.constant 0.213005543 : f32
    %1239 = vector.broadcast %cst_871 : f32 to vector<8x128xf32>
    %1240 = arith.mulf %1239, %1238 : vector<8x128xf32>
    %1241 = arith.addf %1233, %1240 : vector<8x128xf32>
    %c4_872 = arith.constant 4 : index
    %c13_873 = arith.constant 13 : index
    %c0_874 = arith.constant 0 : index
    %1242 = vector.load %arg5[%c4_872, %c13_873, %c0_874] : memref<5x32x128xf32, #tpu.memory_space<vmem>>, vector<1x8x128xf32>
    %1243 = vector.shape_cast %1242 : vector<1x8x128xf32> to vector<8x128xf32>
    %cst_875 = arith.constant 0.266011715 : f32
    %1244 = vector.broadcast %cst_875 : f32 to vector<8x128xf32>
    %1245 = arith.mulf %1244, %1243 : vector<8x128xf32>
    %c4_876 = arith.constant 4 : index
    %c8_877 = arith.constant 8 : index
    %c0_878 = arith.constant 0 : index
    %1246 = vector.load %arg5[%c4_876, %c8_877, %c0_878] : memref<5x32x128xf32, #tpu.memory_space<vmem>>, vector<1x8x128xf32>
    %1247 = vector.shape_cast %1246 : vector<1x8x128xf32> to vector<8x128xf32>
    %c4_879 = arith.constant 4 : index
    %c18_880 = arith.constant 18 : index
    %c0_881 = arith.constant 0 : index
    %1248 = vector.load %arg5[%c4_879, %c18_880, %c0_881] : memref<5x32x128xf32, #tpu.memory_space<vmem>>, vector<1x8x128xf32>
    %1249 = vector.shape_cast %1248 : vector<1x8x128xf32> to vector<8x128xf32>
    %1250 = arith.addf %1247, %1249 : vector<8x128xf32>
    %cst_882 = arith.constant 0.00102838012 : f32
    %1251 = vector.broadcast %cst_882 : f32 to vector<8x128xf32>
    %1252 = arith.mulf %1251, %1250 : vector<8x128xf32>
    %1253 = arith.addf %1245, %1252 : vector<8x128xf32>
    %c4_883 = arith.constant 4 : index
    %c9_884 = arith.constant 9 : index
    %c0_885 = arith.constant 0 : index
    %1254 = vector.load %arg5[%c4_883, %c9_884, %c0_885] : memref<5x32x128xf32, #tpu.memory_space<vmem>>, vector<1x8x128xf32>
    %1255 = vector.shape_cast %1254 : vector<1x8x128xf32> to vector<8x128xf32>
    %c4_886 = arith.constant 4 : index
    %c17_887 = arith.constant 17 : index
    %c0_888 = arith.constant 0 : index
    %1256 = vector.load %arg5[%c4_886, %c17_887, %c0_888] : memref<5x32x128xf32, #tpu.memory_space<vmem>>, vector<1x8x128xf32>
    %1257 = vector.shape_cast %1256 : vector<1x8x128xf32> to vector<8x128xf32>
    %1258 = arith.addf %1255, %1257 : vector<8x128xf32>
    %cst_889 = arith.constant 0.00759875821 : f32
    %1259 = vector.broadcast %cst_889 : f32 to vector<8x128xf32>
    %1260 = arith.mulf %1259, %1258 : vector<8x128xf32>
    %1261 = arith.addf %1253, %1260 : vector<8x128xf32>
    %c4_890 = arith.constant 4 : index
    %c10_891 = arith.constant 10 : index
    %c0_892 = arith.constant 0 : index
    %1262 = vector.load %arg5[%c4_890, %c10_891, %c0_892] : memref<5x32x128xf32, #tpu.memory_space<vmem>>, vector<1x8x128xf32>
    %1263 = vector.shape_cast %1262 : vector<1x8x128xf32> to vector<8x128xf32>
    %c4_893 = arith.constant 4 : index
    %c16_894 = arith.constant 16 : index
    %c0_895 = arith.constant 0 : index
    %1264 = vector.load %arg5[%c4_893, %c16_894, %c0_895] : memref<5x32x128xf32, #tpu.memory_space<vmem>>, vector<1x8x128xf32>
    %1265 = vector.shape_cast %1264 : vector<1x8x128xf32> to vector<8x128xf32>
    %1266 = arith.addf %1263, %1265 : vector<8x128xf32>
    %cst_896 = arith.constant 0.0360007733 : f32
    %1267 = vector.broadcast %cst_896 : f32 to vector<8x128xf32>
    %1268 = arith.mulf %1267, %1266 : vector<8x128xf32>
    %1269 = arith.addf %1261, %1268 : vector<8x128xf32>
    %c4_897 = arith.constant 4 : index
    %c11_898 = arith.constant 11 : index
    %c0_899 = arith.constant 0 : index
    %1270 = vector.load %arg5[%c4_897, %c11_898, %c0_899] : memref<5x32x128xf32, #tpu.memory_space<vmem>>, vector<1x8x128xf32>
    %1271 = vector.shape_cast %1270 : vector<1x8x128xf32> to vector<8x128xf32>
    %c4_900 = arith.constant 4 : index
    %c15_901 = arith.constant 15 : index
    %c0_902 = arith.constant 0 : index
    %1272 = vector.load %arg5[%c4_900, %c15_901, %c0_902] : memref<5x32x128xf32, #tpu.memory_space<vmem>>, vector<1x8x128xf32>
    %1273 = vector.shape_cast %1272 : vector<1x8x128xf32> to vector<8x128xf32>
    %1274 = arith.addf %1271, %1273 : vector<8x128xf32>
    %cst_903 = arith.constant 0.109360687 : f32
    %1275 = vector.broadcast %cst_903 : f32 to vector<8x128xf32>
    %1276 = arith.mulf %1275, %1274 : vector<8x128xf32>
    %1277 = arith.addf %1269, %1276 : vector<8x128xf32>
    %c4_904 = arith.constant 4 : index
    %c12_905 = arith.constant 12 : index
    %c0_906 = arith.constant 0 : index
    %1278 = vector.load %arg5[%c4_904, %c12_905, %c0_906] : memref<5x32x128xf32, #tpu.memory_space<vmem>>, vector<1x8x128xf32>
    %1279 = vector.shape_cast %1278 : vector<1x8x128xf32> to vector<8x128xf32>
    %c4_907 = arith.constant 4 : index
    %c14_908 = arith.constant 14 : index
    %c0_909 = arith.constant 0 : index
    %1280 = vector.load %arg5[%c4_907, %c14_908, %c0_909] : memref<5x32x128xf32, #tpu.memory_space<vmem>>, vector<1x8x128xf32>
    %1281 = vector.shape_cast %1280 : vector<1x8x128xf32> to vector<8x128xf32>
    %1282 = arith.addf %1279, %1281 : vector<8x128xf32>
    %cst_910 = arith.constant 0.213005543 : f32
    %1283 = vector.broadcast %cst_910 : f32 to vector<8x128xf32>
    %1284 = arith.mulf %1283, %1282 : vector<8x128xf32>
    %1285 = arith.addf %1277, %1284 : vector<8x128xf32>
    %1286 = arith.mulf %1109, %1109 : vector<8x128xf32>
    %1287 = arith.mulf %1153, %1153 : vector<8x128xf32>
    %1288 = arith.mulf %1109, %1153 : vector<8x128xf32>
    %1289 = arith.subf %1197, %1286 : vector<8x128xf32>
    %1290 = arith.subf %1241, %1287 : vector<8x128xf32>
    %1291 = arith.subf %1285, %1288 : vector<8x128xf32>
    %cst_911 = arith.constant 2.000000e+00 : f32
    %1292 = vector.broadcast %cst_911 : f32 to vector<8x128xf32>
    %1293 = arith.mulf %1292, %1288 : vector<8x128xf32>
    %cst_912 = arith.constant 9.99999974E-5 : f32
    %1294 = vector.broadcast %cst_912 : f32 to vector<8x128xf32>
    %1295 = arith.addf %1293, %1294 : vector<8x128xf32>
    %cst_913 = arith.constant 2.000000e+00 : f32
    %1296 = vector.broadcast %cst_913 : f32 to vector<8x128xf32>
    %1297 = arith.mulf %1296, %1291 : vector<8x128xf32>
    %cst_914 = arith.constant 8.99999984E-4 : f32
    %1298 = vector.broadcast %cst_914 : f32 to vector<8x128xf32>
    %1299 = arith.addf %1297, %1298 : vector<8x128xf32>
    %1300 = arith.mulf %1295, %1299 : vector<8x128xf32>
    %1301 = arith.addf %1286, %1287 : vector<8x128xf32>
    %cst_915 = arith.constant 9.99999974E-5 : f32
    %1302 = vector.broadcast %cst_915 : f32 to vector<8x128xf32>
    %1303 = arith.addf %1301, %1302 : vector<8x128xf32>
    %1304 = arith.addf %1289, %1290 : vector<8x128xf32>
    %cst_916 = arith.constant 8.99999984E-4 : f32
    %1305 = vector.broadcast %cst_916 : f32 to vector<8x128xf32>
    %1306 = arith.addf %1304, %1305 : vector<8x128xf32>
    %1307 = arith.mulf %1303, %1306 : vector<8x128xf32>
    %1308 = arith.divf %1300, %1307 : vector<8x128xf32>
    %c16_i32_917 = arith.constant 16 : i32
    %1309 = arith.muli %arg1, %c16_i32_917 : i32
    %c8_i32 = arith.constant 8 : i32
    %1310 = arith.addi %1309, %c8_i32 : i32
    %1311 = vector.broadcast %1310 : i32 to vector<8x128xi32>
    %1312 = arith.addi %811, %1311 : vector<8x128xi32>
    %c16_i32_918 = arith.constant 16 : i32
    %1313 = vector.broadcast %c16_i32_918 : i32 to vector<8x128xi32>
    %1314 = arith.cmpi slt, %1312, %1313 : vector<8x128xi32>
    %1315 = arith.andi %1314, %810 : vector<8x128xi1>
    %cst_919 = arith.constant 0.000000e+00 : f32
    %1316 = vector.broadcast %cst_919 : f32 to vector<8x128xf32>
    %1317 = arith.select %1315, %1308, %1316 : vector<8x128xi1>, vector<8x128xf32>
    %1318 = arith.addf %1065, %1317 : vector<8x128xf32>
    %1319 = vector.shape_cast %1318 : vector<8x128xf32> to vector<1x8x128xf32>
    %cst_920 = arith.constant dense<0.000000e+00> : vector<1xf32>
    %1320 = vector.multi_reduction <add>, %1319, %cst_920 [1, 2] : vector<1x8x128xf32> to vector<1xf32>
    %1321 = vector.shape_cast %1320 : vector<1xf32> to vector<1x1x1xf32>
    %1322 = vector.extract %1321[0, 0, 0] : f32 from vector<1x1x1xf32>
    %1323 = vector.broadcast %1322 : f32 to vector<8x128xf32>
    %c0_921 = arith.constant 0 : index
    %c0_922 = arith.constant 0 : index
    %c0_923 = arith.constant 0 : index
    %c0_924 = arith.constant 0 : index
    %1324 = vector.load %arg4[%c0_921, %c0_922, %c0_923, %c0_924] : memref<1x1x8x128xf32, #tpu.memory_space<vmem>>, vector<1x1x8x128xf32>
    %1325 = vector.shape_cast %1324 : vector<1x1x8x128xf32> to vector<8x128xf32>
    %1326 = vector.shape_cast %1323 : vector<8x128xf32> to vector<1x1x8x128xf32>
    tpu.vector_store %arg4[%c0_921, %c0_922, %c0_923, %c0_924], %1326 {strides = array<i32>} : memref<1x1x8x128xf32, #tpu.memory_space<vmem>>, vector<1x1x8x128xf32>,
    return
  }
  func.func @transform_0(%arg0: i32, %arg1: i32) -> (i32, i32, i32, i32) {
    %c0_i32 = arith.constant 0 : i32
    %c0_i32_0 = arith.constant 0 : i32
    %c0_i32_1 = arith.constant 0 : i32
    return %arg0, %arg1, %c0_i32, %c0_i32_0 : i32, i32, i32, i32
  }
  func.func @transform_1(%arg0: i32, %arg1: i32) -> (i32, i32, i32, i32) {
    %c0_i32 = arith.constant 0 : i32
    %c0_i32_0 = arith.constant 0 : i32
    %c0_i32_1 = arith.constant 0 : i32
    return %arg0, %arg1, %c0_i32, %c0_i32_0 : i32, i32, i32, i32
  }
  func.func @transform_2(%arg0: i32, %arg1: i32) -> (i32, i32, i32, i32) {
    %c0_i32 = arith.constant 0 : i32
    %c0_i32_0 = arith.constant 0 : i32
    %c0_i32_1 = arith.constant 0 : i32
    return %arg0, %arg1, %c0_i32, %c0_i32_0 : i32, i32, i32, i32
  }
}

</mosaic_0001>

<llo_original>
// kernel: ssim.1
$region0: #{ssim.1}
  #allocation0 [shape = 'u32[]', space=smem, size = 0x4, offset = 0x4, fixed_abs, tag = 'smem constant byte address 0x4 - core index']
  #allocation1 [shape = 'u32[144,128]{1,0:T(1,128)}', space=vmem, size = 0x12000, scoped, tag = 'internal scratch']
  #allocation2 [shape = 'f32[5,32,128]{2,1,0:T(8,128)}', space=vmem, size = 0x14000, scoped, tag = 'scratch operand']
  %s0 = inlined_call_operand.vmem [shape: f32[1,1,32,256], index: 0, kind: input, shape index: {}]
  %s1 = inlined_call_operand.vmem [shape: f32[1,1,32,256], index: 1, kind: input, shape index: {}]
  %s2 = inlined_call_operand.vmem [shape: f32[1,1,8,128], index: 2, kind: output, shape index: {}]
  %s3 = sld [smem:[#allocation0]]
  $region18: #{ssim.1} parent=0
    _
  %s5 = ssub.s32 1, %s3
  %s6 = scalar_select 0, %s5, %s3
  // Predicated region
  $region2: #{ssim.1} parent=0 // pred_check
    _
  $region3: #{ssim.1} parent=0 // pred_check_branch
    %8 = sbr.rel (0) target = $region5
  $region4: #{ssim.1} parent=0 // pred_region
    _
  $region5: #{ssim.1} parent=0 // pred_fallthru
    _
  // Predicated region
  $region6: #{ssim.1} parent=0 // pred_check
    _
  $region7: #{ssim.1} parent=0 // pred_check_branch
    %10 = sbr.rel (0) target = $region9
  $region8: #{ssim.1} parent=0 // pred_region
    _
  $region9: #{ssim.1} parent=0 // pred_fallthru
    _
  %v11 = vld [vmem:[%s0] sm:$0xff]
  %v12 = vld [vmem:[%s0 + $0x8] sm:$0xff]
  %v13 = vld [vmem:[%s1] sm:$0xff]
  %v14 = vld [vmem:[%s1 + $0x8] sm:$0xff]
  %v15 = vmul.f32 %v11, 0.26601171
  %v16 = vmul.f32 %v12, 0.26601171
  %v17 = vmul.f32 %v13, 0.26601171
  %v18 = vmul.f32 %v14, 0.26601171
  %v19 = vmul.f32 %v11, %v11
  %v20 = vmul.f32 %v12, %v12
  %v21 = vmul.f32 %v19, 0.26601171
  %v22 = vmul.f32 %v20, 0.26601171
  %v23 = vmul.f32 %v13, %v13
  %v24 = vmul.f32 %v14, %v14
  %v25 = vmul.f32 %v23, 0.26601171
  %v26 = vmul.f32 %v24, 0.26601171
  %v27 = vmul.f32 %v11, %v13
  %v28 = vmul.f32 %v12, %v14
  %v29 = vmul.f32 %v27, 0.26601171
  %v30 = vmul.f32 %v28, 0.26601171
  %33 = vrot.lane.b32.xlu0 %v11, 118
  %v34 = vpop.permute.xlu0 %33
  %35 = vrot.lane.b32.xlu0 %v12, 118
  %v36 = vpop.permute.xlu0 %35
  %vm37 = vcmask 965632
  %v38 = vsel %vm37, %v34, %v36
  %v40 = vadd.f32 %v11, %v38
  %v41 = vmul.f32 %v40, 0.0010283801
  %43 = vrot.lane.b32.xlu0 %v41, 5
  %v44 = vpop.permute.xlu0 %43
  %v46 = vadd.f32 %v15, %v44
  %v47 = vadd.f32 %v16, %v44
  %50 = vrot.lane.b32.xlu0 %v13, 118
  %v51 = vpop.permute.xlu0 %50
  %52 = vrot.lane.b32.xlu0 %v14, 118
  %v53 = vpop.permute.xlu0 %52
  %v54 = vsel %vm37, %v51, %v53
  %v56 = vadd.f32 %v13, %v54
  %v57 = vmul.f32 %v56, 0.0010283801
  %59 = vrot.lane.b32.xlu0 %v57, 5
  %v60 = vpop.permute.xlu0 %59
  %v62 = vadd.f32 %v17, %v60
  %v63 = vadd.f32 %v18, %v60
  %66 = vrot.lane.b32.xlu0 %v19, 118
  %v67 = vpop.permute.xlu0 %66
  %68 = vrot.lane.b32.xlu0 %v20, 118
  %v69 = vpop.permute.xlu0 %68
  %v70 = vsel %vm37, %v67, %v69
  %v72 = vadd.f32 %v19, %v70
  %v73 = vmul.f32 %v72, 0.0010283801
  %75 = vrot.lane.b32.xlu0 %v73, 5
  %v76 = vpop.permute.xlu0 %75
  %v78 = vadd.f32 %v21, %v76
  %v79 = vadd.f32 %v22, %v76
  %82 = vrot.lane.b32.xlu0 %v23, 118
  %v83 = vpop.permute.xlu0 %82
  %84 = vrot.lane.b32.xlu0 %v24, 118
  %v85 = vpop.permute.xlu0 %84
  %v86 = vsel %vm37, %v83, %v85
  %v88 = vadd.f32 %v23, %v86
  %v89 = vmul.f32 %v88, 0.0010283801
  %91 = vrot.lane.b32.xlu0 %v89, 5
  %v92 = vpop.permute.xlu0 %91
  %v94 = vadd.f32 %v25, %v92
  %v95 = vadd.f32 %v26, %v92
  %98 = vrot.lane.b32.xlu0 %v27, 118
  %v99 = vpop.permute.xlu0 %98
  %100 = vrot.lane.b32.xlu0 %v28, 118
  %v101 = vpop.permute.xlu0 %100
  %v102 = vsel %vm37, %v99, %v101
  %v104 = vadd.f32 %v27, %v102
  %v105 = vmul.f32 %v104, 0.0010283801
  %107 = vrot.lane.b32.xlu0 %v105, 5
  %v108 = vpop.permute.xlu0 %107
  %v110 = vadd.f32 %v29, %v108
  %v111 = vadd.f32 %v30, %v108
  %112 = vrot.lane.b32.xlu0 %v11, 120
  %v113 = vpop.permute.xlu0 %112
  %114 = vrot.lane.b32.xlu0 %v12, 120
  %v115 = vpop.permute.xlu0 %114
  %vm116 = vcmask 982016
  %v117 = vsel %vm116, %v113, %v115
  %v120 = vadd.f32 %v11, %v117
  %v121 = vadd.f32 %v12, %v115
  %v122 = vmul.f32 %v120, 0.007598758
  %v123 = vmul.f32 %v121, 0.007598758
  %126 = vrot.lane.b32.xlu0 %v122, 4
  %v127 = vpop.permute.xlu0 %126
  %128 = vrot.lane.b32.xlu0 %v123, 4
  %v129 = vpop.permute.xlu0 %128
  %vm130 = vcmask 31744
  %v131 = vsel %vm130, %v127, %v129
  %v134 = vadd.f32 %v46, %v127
  %v135 = vadd.f32 %v47, %v131
  %136 = vrot.lane.b32.xlu0 %v13, 120
  %v137 = vpop.permute.xlu0 %136
  %138 = vrot.lane.b32.xlu0 %v14, 120
  %v139 = vpop.permute.xlu0 %138
  %v140 = vsel %vm116, %v137, %v139
  %v143 = vadd.f32 %v13, %v140
  %v144 = vadd.f32 %v14, %v139
  %v145 = vmul.f32 %v143, 0.007598758
  %v146 = vmul.f32 %v144, 0.007598758
  %149 = vrot.lane.b32.xlu0 %v145, 4
  %v150 = vpop.permute.xlu0 %149
  %151 = vrot.lane.b32.xlu0 %v146, 4
  %v152 = vpop.permute.xlu0 %151
  %v153 = vsel %vm130, %v150, %v152
  %v156 = vadd.f32 %v62, %v150
  %v157 = vadd.f32 %v63, %v153
  %158 = vrot.lane.b32.xlu0 %v19, 120
  %v159 = vpop.permute.xlu0 %158
  %160 = vrot.lane.b32.xlu0 %v20, 120
  %v161 = vpop.permute.xlu0 %160
  %v162 = vsel %vm116, %v159, %v161
  %v165 = vadd.f32 %v19, %v162
  %v166 = vadd.f32 %v20, %v161
  %v167 = vmul.f32 %v165, 0.007598758
  %v168 = vmul.f32 %v166, 0.007598758
  %171 = vrot.lane.b32.xlu0 %v167, 4
  %v172 = vpop.permute.xlu0 %171
  %173 = vrot.lane.b32.xlu0 %v168, 4
  %v174 = vpop.permute.xlu0 %173
  %v175 = vsel %vm130, %v172, %v174
  %v178 = vadd.f32 %v78, %v172
  %v179 = vadd.f32 %v79, %v175
  %180 = vrot.lane.b32.xlu0 %v23, 120
  %v181 = vpop.permute.xlu0 %180
  %182 = vrot.lane.b32.xlu0 %v24, 120
  %v183 = vpop.permute.xlu0 %182
  %v184 = vsel %vm116, %v181, %v183
  %v187 = vadd.f32 %v23, %v184
  %v188 = vadd.f32 %v24, %v183
  %v189 = vmul.f32 %v187, 0.007598758
  %v190 = vmul.f32 %v188, 0.007598758
  %193 = vrot.lane.b32.xlu0 %v189, 4
  %v194 = vpop.permute.xlu0 %193
  %195 = vrot.lane.b32.xlu0 %v190, 4
  %v196 = vpop.permute.xlu0 %195
  %v197 = vsel %vm130, %v194, %v196
  %v200 = vadd.f32 %v94, %v194
  %v201 = vadd.f32 %v95, %v197
  %202 = vrot.lane.b32.xlu0 %v27, 120
  %v203 = vpop.permute.xlu0 %202
  %204 = vrot.lane.b32.xlu0 %v28, 120
  %v205 = vpop.permute.xlu0 %204
  %v206 = vsel %vm116, %v203, %v205
  %v209 = vadd.f32 %v27, %v206
  %v210 = vadd.f32 %v28, %v205
  %v211 = vmul.f32 %v209, 0.007598758
  %v212 = vmul.f32 %v210, 0.007598758
  %215 = vrot.lane.b32.xlu0 %v211, 4
  %v216 = vpop.permute.xlu0 %215
  %217 = vrot.lane.b32.xlu0 %v212, 4
  %v218 = vpop.permute.xlu0 %217
  %v219 = vsel %vm130, %v216, %v218
  %v222 = vadd.f32 %v110, %v216
  %v223 = vadd.f32 %v111, %v219
  %224 = vrot.lane.b32.xlu0 %v11, 122
  %v225 = vpop.permute.xlu0 %224
  %226 = vrot.lane.b32.xlu0 %v12, 122
  %v227 = vpop.permute.xlu0 %226
  %vm228 = vcmask 998400
  %v229 = vsel %vm228, %v225, %v227
  %v232 = vadd.f32 %v11, %v229
  %v233 = vadd.f32 %v12, %v227
  %v234 = vmul.f32 %v232, 0.036000773
  %v235 = vmul.f32 %v233, 0.036000773
  %238 = vrot.lane.b32.xlu0 %v234, 3
  %v239 = vpop.permute.xlu0 %238
  %240 = vrot.lane.b32.xlu0 %v235, 3
  %v241 = vpop.permute.xlu0 %240
  %vm242 = vcmask 23552
  %v243 = vsel %vm242, %v239, %v241
  %v246 = vadd.f32 %v134, %v239
  %v247 = vadd.f32 %v135, %v243
  %248 = vrot.lane.b32.xlu0 %v13, 122
  %v249 = vpop.permute.xlu0 %248
  %250 = vrot.lane.b32.xlu0 %v14, 122
  %v251 = vpop.permute.xlu0 %250
  %v252 = vsel %vm228, %v249, %v251
  %v255 = vadd.f32 %v13, %v252
  %v256 = vadd.f32 %v14, %v251
  %v257 = vmul.f32 %v255, 0.036000773
  %v258 = vmul.f32 %v256, 0.036000773
  %261 = vrot.lane.b32.xlu0 %v257, 3
  %v262 = vpop.permute.xlu0 %261
  %263 = vrot.lane.b32.xlu0 %v258, 3
  %v264 = vpop.permute.xlu0 %263
  %v265 = vsel %vm242, %v262, %v264
  %v268 = vadd.f32 %v156, %v262
  %v269 = vadd.f32 %v157, %v265
  %270 = vrot.lane.b32.xlu0 %v19, 122
  %v271 = vpop.permute.xlu0 %270
  %272 = vrot.lane.b32.xlu0 %v20, 122
  %v273 = vpop.permute.xlu0 %272
  %v274 = vsel %vm228, %v271, %v273
  %v277 = vadd.f32 %v19, %v274
  %v278 = vadd.f32 %v20, %v273
  %v279 = vmul.f32 %v277, 0.036000773
  %v280 = vmul.f32 %v278, 0.036000773
  %283 = vrot.lane.b32.xlu0 %v279, 3
  %v284 = vpop.permute.xlu0 %283
  %285 = vrot.lane.b32.xlu0 %v280, 3
  %v286 = vpop.permute.xlu0 %285
  %v287 = vsel %vm242, %v284, %v286
  %v290 = vadd.f32 %v178, %v284
  %v291 = vadd.f32 %v179, %v287
  %292 = vrot.lane.b32.xlu0 %v23, 122
  %v293 = vpop.permute.xlu0 %292
  %294 = vrot.lane.b32.xlu0 %v24, 122
  %v295 = vpop.permute.xlu0 %294
  %v296 = vsel %vm228, %v293, %v295
  %v299 = vadd.f32 %v23, %v296
  %v300 = vadd.f32 %v24, %v295
  %v301 = vmul.f32 %v299, 0.036000773
  %v302 = vmul.f32 %v300, 0.036000773
  %305 = vrot.lane.b32.xlu0 %v301, 3
  %v306 = vpop.permute.xlu0 %305
  %307 = vrot.lane.b32.xlu0 %v302, 3
  %v308 = vpop.permute.xlu0 %307
  %v309 = vsel %vm242, %v306, %v308
  %v312 = vadd.f32 %v200, %v306
  %v313 = vadd.f32 %v201, %v309
  %314 = vrot.lane.b32.xlu0 %v27, 122
  %v315 = vpop.permute.xlu0 %314
  %316 = vrot.lane.b32.xlu0 %v28, 122
  %v317 = vpop.permute.xlu0 %316
  %v318 = vsel %vm228, %v315, %v317
  %v321 = vadd.f32 %v27, %v318
  %v322 = vadd.f32 %v28, %v317
  %v323 = vmul.f32 %v321, 0.036000773
  %v324 = vmul.f32 %v322, 0.036000773
  %327 = vrot.lane.b32.xlu0 %v323, 3
  %v328 = vpop.permute.xlu0 %327
  %329 = vrot.lane.b32.xlu0 %v324, 3
  %v330 = vpop.permute.xlu0 %329
  %v331 = vsel %vm242, %v328, %v330
  %v334 = vadd.f32 %v222, %v328
  %v335 = vadd.f32 %v223, %v331
  %336 = vrot.lane.b32.xlu0 %v11, 124
  %v337 = vpop.permute.xlu0 %336
  %338 = vrot.lane.b32.xlu0 %v12, 124
  %v339 = vpop.permute.xlu0 %338
  %vm340 = vcmask 1014784
  %v341 = vsel %vm340, %v337, %v339
  %v344 = vadd.f32 %v11, %v341
  %v345 = vadd.f32 %v12, %v339
  %v346 = vmul.f32 %v344, 0.10936069
  %v347 = vmul.f32 %v345, 0.10936069
  %350 = vrot.lane.b32.xlu0 %v346, 2
  %v351 = vpop.permute.xlu0 %350
  %352 = vrot.lane.b32.xlu0 %v347, 2
  %v353 = vpop.permute.xlu0 %352
  %vm354 = vcmask 15360
  %v355 = vsel %vm354, %v351, %v353
  %v358 = vadd.f32 %v246, %v351
  %v359 = vadd.f32 %v247, %v355
  %360 = vrot.lane.b32.xlu0 %v13, 124
  %v361 = vpop.permute.xlu0 %360
  %362 = vrot.lane.b32.xlu0 %v14, 124
  %v363 = vpop.permute.xlu0 %362
  %v364 = vsel %vm340, %v361, %v363
  %v367 = vadd.f32 %v13, %v364
  %v368 = vadd.f32 %v14, %v363
  %v369 = vmul.f32 %v367, 0.10936069
  %v370 = vmul.f32 %v368, 0.10936069
  %373 = vrot.lane.b32.xlu0 %v369, 2
  %v374 = vpop.permute.xlu0 %373
  %375 = vrot.lane.b32.xlu0 %v370, 2
  %v376 = vpop.permute.xlu0 %375
  %v377 = vsel %vm354, %v374, %v376
  %v380 = vadd.f32 %v268, %v374
  %v381 = vadd.f32 %v269, %v377
  %382 = vrot.lane.b32.xlu0 %v19, 124
  %v383 = vpop.permute.xlu0 %382
  %384 = vrot.lane.b32.xlu0 %v20, 124
  %v385 = vpop.permute.xlu0 %384
  %v386 = vsel %vm340, %v383, %v385
  %v389 = vadd.f32 %v19, %v386
  %v390 = vadd.f32 %v20, %v385
  %v391 = vmul.f32 %v389, 0.10936069
  %v392 = vmul.f32 %v390, 0.10936069
  %395 = vrot.lane.b32.xlu0 %v391, 2
  %v396 = vpop.permute.xlu0 %395
  %397 = vrot.lane.b32.xlu0 %v392, 2
  %v398 = vpop.permute.xlu0 %397
  %v399 = vsel %vm354, %v396, %v398
  %v402 = vadd.f32 %v290, %v396
  %v403 = vadd.f32 %v291, %v399
  %404 = vrot.lane.b32.xlu0 %v23, 124
  %v405 = vpop.permute.xlu0 %404
  %406 = vrot.lane.b32.xlu0 %v24, 124
  %v407 = vpop.permute.xlu0 %406
  %v408 = vsel %vm340, %v405, %v407
  %v411 = vadd.f32 %v23, %v408
  %v412 = vadd.f32 %v24, %v407
  %v413 = vmul.f32 %v411, 0.10936069
  %v414 = vmul.f32 %v412, 0.10936069
  %417 = vrot.lane.b32.xlu0 %v413, 2
  %v418 = vpop.permute.xlu0 %417
  %419 = vrot.lane.b32.xlu0 %v414, 2
  %v420 = vpop.permute.xlu0 %419
  %v421 = vsel %vm354, %v418, %v420
  %v424 = vadd.f32 %v312, %v418
  %v425 = vadd.f32 %v313, %v421
  %426 = vrot.lane.b32.xlu0 %v27, 124
  %v427 = vpop.permute.xlu0 %426
  %428 = vrot.lane.b32.xlu0 %v28, 124
  %v429 = vpop.permute.xlu0 %428
  %v430 = vsel %vm340, %v427, %v429
  %v433 = vadd.f32 %v27, %v430
  %v434 = vadd.f32 %v28, %v429
  %v435 = vmul.f32 %v433, 0.10936069
  %v436 = vmul.f32 %v434, 0.10936069
  %439 = vrot.lane.b32.xlu0 %v435, 2
  %v440 = vpop.permute.xlu0 %439
  %441 = vrot.lane.b32.xlu0 %v436, 2
  %v442 = vpop.permute.xlu0 %441
  %v443 = vsel %vm354, %v440, %v442
  %v446 = vadd.f32 %v334, %v440
  %v447 = vadd.f32 %v335, %v443
  %448 = vrot.lane.b32.xlu0 %v11, 126
  %v449 = vpop.permute.xlu0 %448
  %450 = vrot.lane.b32.xlu0 %v12, 126
  %v451 = vpop.permute.xlu0 %450
  %vm452 = vcmask 1031168
  %v453 = vsel %vm452, %v449, %v451
  %v456 = vadd.f32 %v11, %v453
  %v457 = vadd.f32 %v12, %v451
  %v458 = vmul.f32 %v456, 0.21300554
  %v459 = vmul.f32 %v457, 0.21300554
  %462 = vrot.lane.b32.xlu0 %v458, 1
  %v463 = vpop.permute.xlu0 %462
  %464 = vrot.lane.b32.xlu0 %v459, 1
  %v465 = vpop.permute.xlu0 %464
  %vm466 = vcmask 7168
  %v467 = vsel %vm466, %v463, %v465
  %v470 = vadd.f32 %v358, %v463
  %v471 = vadd.f32 %v359, %v467
  %472 = vrot.lane.b32.xlu0 %v13, 126
  %v473 = vpop.permute.xlu0 %472
  %474 = vrot.lane.b32.xlu0 %v14, 126
  %v475 = vpop.permute.xlu0 %474
  %v476 = vsel %vm452, %v473, %v475
  %v479 = vadd.f32 %v13, %v476
  %v480 = vadd.f32 %v14, %v475
  %v481 = vmul.f32 %v479, 0.21300554
  %v482 = vmul.f32 %v480, 0.21300554
  %485 = vrot.lane.b32.xlu0 %v481, 1
  %v486 = vpop.permute.xlu0 %485
  %487 = vrot.lane.b32.xlu0 %v482, 1
  %v488 = vpop.permute.xlu0 %487
  %v489 = vsel %vm466, %v486, %v488
  %v492 = vadd.f32 %v380, %v486
  %v493 = vadd.f32 %v381, %v489
  %494 = vrot.lane.b32.xlu0 %v19, 126
  %v495 = vpop.permute.xlu0 %494
  %496 = vrot.lane.b32.xlu0 %v20, 126
  %v497 = vpop.permute.xlu0 %496
  %v498 = vsel %vm452, %v495, %v497
  %v501 = vadd.f32 %v19, %v498
  %v502 = vadd.f32 %v20, %v497
  %v503 = vmul.f32 %v501, 0.21300554
  %v504 = vmul.f32 %v502, 0.21300554
  %507 = vrot.lane.b32.xlu0 %v503, 1
  %v508 = vpop.permute.xlu0 %507
  %509 = vrot.lane.b32.xlu0 %v504, 1
  %v510 = vpop.permute.xlu0 %509
  %v511 = vsel %vm466, %v508, %v510
  %v514 = vadd.f32 %v402, %v508
  %v515 = vadd.f32 %v403, %v511
  %516 = vrot.lane.b32.xlu0 %v23, 126
  %v517 = vpop.permute.xlu0 %516
  %518 = vrot.lane.b32.xlu0 %v24, 126
  %v519 = vpop.permute.xlu0 %518
  %v520 = vsel %vm452, %v517, %v519
  %v523 = vadd.f32 %v23, %v520
  %v524 = vadd.f32 %v24, %v519
  %v525 = vmul.f32 %v523, 0.21300554
  %v526 = vmul.f32 %v524, 0.21300554
  %529 = vrot.lane.b32.xlu0 %v525, 1
  %v530 = vpop.permute.xlu0 %529
  %531 = vrot.lane.b32.xlu0 %v526, 1
  %v532 = vpop.permute.xlu0 %531
  %v533 = vsel %vm466, %v530, %v532
  %v536 = vadd.f32 %v424, %v530
  %v537 = vadd.f32 %v425, %v533
  %538 = vrot.lane.b32.xlu0 %v27, 126
  %v539 = vpop.permute.xlu0 %538
  %540 = vrot.lane.b32.xlu0 %v28, 126
  %v541 = vpop.permute.xlu0 %540
  %v542 = vsel %vm452, %v539, %v541
  %v545 = vadd.f32 %v27, %v542
  %v546 = vadd.f32 %v28, %v541
  %v547 = vmul.f32 %v545, 0.21300554
  %v548 = vmul.f32 %v546, 0.21300554
  %551 = vrot.lane.b32.xlu0 %v547, 1
  %v552 = vpop.permute.xlu0 %551
  %553 = vrot.lane.b32.xlu0 %v548, 1
  %v554 = vpop.permute.xlu0 %553
  %v555 = vsel %vm466, %v552, %v554
  %v558 = vadd.f32 %v446, %v552
  %v559 = vadd.f32 %v447, %v555
  %562 = vrot.lane.b32.xlu0 %v470, 123
  %v563 = vpop.permute.xlu0 %562
  %564 = vrot.lane.b32.xlu0 %v471, 123
  %v565 = vpop.permute.xlu0 %564
  %vm566 = vcmask 1006592
  %v567 = vsel %vm566, %v563, %v565
  %569 = vst [vmem:[#allocation2] sm:$0xff] %v567
  %572 = vrot.lane.b32.xlu0 %v492, 123
  %v573 = vpop.permute.xlu0 %572
  %574 = vrot.lane.b32.xlu0 %v493, 123
  %v575 = vpop.permute.xlu0 %574
  %v576 = vsel %vm566, %v573, %v575
  %s578 = scalar_lea.vmem [#allocation2], 32
  %579 = vst [vmem:[%s578] sm:$0xff] %v576
  %582 = vrot.lane.b32.xlu0 %v514, 123
  %v583 = vpop.permute.xlu0 %582
  %584 = vrot.lane.b32.xlu0 %v515, 123
  %v585 = vpop.permute.xlu0 %584
  %v586 = vsel %vm566, %v583, %v585
  %s588 = scalar_lea.vmem [#allocation2], 64
  %589 = vst [vmem:[%s588] sm:$0xff] %v586
  %592 = vrot.lane.b32.xlu0 %v536, 123
  %v593 = vpop.permute.xlu0 %592
  %594 = vrot.lane.b32.xlu0 %v537, 123
  %v595 = vpop.permute.xlu0 %594
  %v596 = vsel %vm566, %v593, %v595
  %s598 = scalar_lea.vmem [#allocation2], 96
  %599 = vst [vmem:[%s598] sm:$0xff] %v596
  %602 = vrot.lane.b32.xlu0 %v558, 123
  %v603 = vpop.permute.xlu0 %602
  %604 = vrot.lane.b32.xlu0 %v559, 123
  %v605 = vpop.permute.xlu0 %604
  %v606 = vsel %vm566, %v603, %v605
  %s608 = scalar_lea.vmem [#allocation2], 128
  %609 = vst [vmem:[%s608] sm:$0xff] %v606
  %v610 = vld [vmem:[%s0 + $0x10] sm:$0xff]
  %v611 = vld [vmem:[%s0 + $0x18] sm:$0xff]
  %v612 = vld [vmem:[%s1 + $0x10] sm:$0xff]
  %v613 = vld [vmem:[%s1 + $0x18] sm:$0xff]
  %v614 = vmul.f32 %v610, 0.26601171
  %v615 = vmul.f32 %v611, 0.26601171
  %v616 = vmul.f32 %v612, 0.26601171
  %v617 = vmul.f32 %v613, 0.26601171
  %v618 = vmul.f32 %v610, %v610
  %v619 = vmul.f32 %v611, %v611
  %v620 = vmul.f32 %v618, 0.26601171
  %v621 = vmul.f32 %v619, 0.26601171
  %v622 = vmul.f32 %v612, %v612
  %v623 = vmul.f32 %v613, %v613
  %v624 = vmul.f32 %v622, 0.26601171
  %v625 = vmul.f32 %v623, 0.26601171
  %v626 = vmul.f32 %v610, %v612
  %v627 = vmul.f32 %v611, %v613
  %v628 = vmul.f32 %v626, 0.26601171
  %v629 = vmul.f32 %v627, 0.26601171
  %632 = vrot.lane.b32.xlu0 %v610, 118
  %v633 = vpop.permute.xlu0 %632
  %634 = vrot.lane.b32.xlu0 %v611, 118
  %v635 = vpop.permute.xlu0 %634
  %v636 = vsel %vm37, %v633, %v635
  %v638 = vadd.f32 %v610, %v636
  %v639 = vmul.f32 %v638, 0.0010283801
  %641 = vrot.lane.b32.xlu0 %v639, 5
  %v642 = vpop.permute.xlu0 %641
  %v644 = vadd.f32 %v614, %v642
  %v645 = vadd.f32 %v615, %v642
  %648 = vrot.lane.b32.xlu0 %v612, 118
  %v649 = vpop.permute.xlu0 %648
  %650 = vrot.lane.b32.xlu0 %v613, 118
  %v651 = vpop.permute.xlu0 %650
  %v652 = vsel %vm37, %v649, %v651
  %v654 = vadd.f32 %v612, %v652
  %v655 = vmul.f32 %v654, 0.0010283801
  %657 = vrot.lane.b32.xlu0 %v655, 5
  %v658 = vpop.permute.xlu0 %657
  %v660 = vadd.f32 %v616, %v658
  %v661 = vadd.f32 %v617, %v658
  %664 = vrot.lane.b32.xlu0 %v618, 118
  %v665 = vpop.permute.xlu0 %664
  %666 = vrot.lane.b32.xlu0 %v619, 118
  %v667 = vpop.permute.xlu0 %666
  %v668 = vsel %vm37, %v665, %v667
  %v670 = vadd.f32 %v618, %v668
  %v671 = vmul.f32 %v670, 0.0010283801
  %673 = vrot.lane.b32.xlu0 %v671, 5
  %v674 = vpop.permute.xlu0 %673
  %v676 = vadd.f32 %v620, %v674
  %v677 = vadd.f32 %v621, %v674
  %680 = vrot.lane.b32.xlu0 %v622, 118
  %v681 = vpop.permute.xlu0 %680
  %682 = vrot.lane.b32.xlu0 %v623, 118
  %v683 = vpop.permute.xlu0 %682
  %v684 = vsel %vm37, %v681, %v683
  %v686 = vadd.f32 %v622, %v684
  %v687 = vmul.f32 %v686, 0.0010283801
  %689 = vrot.lane.b32.xlu0 %v687, 5
  %v690 = vpop.permute.xlu0 %689
  %v692 = vadd.f32 %v624, %v690
  %v693 = vadd.f32 %v625, %v690
  %696 = vrot.lane.b32.xlu0 %v626, 118
  %v697 = vpop.permute.xlu0 %696
  %698 = vrot.lane.b32.xlu0 %v627, 118
  %v699 = vpop.permute.xlu0 %698
  %v700 = vsel %vm37, %v697, %v699
  %v702 = vadd.f32 %v626, %v700
  %v703 = vmul.f32 %v702, 0.0010283801
  %705 = vrot.lane.b32.xlu0 %v703, 5
  %v706 = vpop.permute.xlu0 %705
  %v708 = vadd.f32 %v628, %v706
  %v709 = vadd.f32 %v629, %v706
  %710 = vrot.lane.b32.xlu0 %v610, 120
  %v711 = vpop.permute.xlu0 %710
  %712 = vrot.lane.b32.xlu0 %v611, 120
  %v713 = vpop.permute.xlu0 %712
  %v714 = vsel %vm116, %v711, %v713
  %v717 = vadd.f32 %v610, %v714
  %v718 = vadd.f32 %v611, %v713
  %v719 = vmul.f32 %v717, 0.007598758
  %v720 = vmul.f32 %v718, 0.007598758
  %723 = vrot.lane.b32.xlu0 %v719, 4
  %v724 = vpop.permute.xlu0 %723
  %725 = vrot.lane.b32.xlu0 %v720, 4
  %v726 = vpop.permute.xlu0 %725
  %v727 = vsel %vm130, %v724, %v726
  %v730 = vadd.f32 %v644, %v724
  %v731 = vadd.f32 %v645, %v727
  %732 = vrot.lane.b32.xlu0 %v612, 120
  %v733 = vpop.permute.xlu0 %732
  %734 = vrot.lane.b32.xlu0 %v613, 120
  %v735 = vpop.permute.xlu0 %734
  %v736 = vsel %vm116, %v733, %v735
  %v739 = vadd.f32 %v612, %v736
  %v740 = vadd.f32 %v613, %v735
  %v741 = vmul.f32 %v739, 0.007598758
  %v742 = vmul.f32 %v740, 0.007598758
  %745 = vrot.lane.b32.xlu0 %v741, 4
  %v746 = vpop.permute.xlu0 %745
  %747 = vrot.lane.b32.xlu0 %v742, 4
  %v748 = vpop.permute.xlu0 %747
  %v749 = vsel %vm130, %v746, %v748
  %v752 = vadd.f32 %v660, %v746
  %v753 = vadd.f32 %v661, %v749
  %754 = vrot.lane.b32.xlu0 %v618, 120
  %v755 = vpop.permute.xlu0 %754
  %756 = vrot.lane.b32.xlu0 %v619, 120
  %v757 = vpop.permute.xlu0 %756
  %v758 = vsel %vm116, %v755, %v757
  %v761 = vadd.f32 %v618, %v758
  %v762 = vadd.f32 %v619, %v757
  %v763 = vmul.f32 %v761, 0.007598758
  %v764 = vmul.f32 %v762, 0.007598758
  %767 = vrot.lane.b32.xlu0 %v763, 4
  %v768 = vpop.permute.xlu0 %767
  %769 = vrot.lane.b32.xlu0 %v764, 4
  %v770 = vpop.permute.xlu0 %769
  %v771 = vsel %vm130, %v768, %v770
  %v774 = vadd.f32 %v676, %v768
  %v775 = vadd.f32 %v677, %v771
  %776 = vrot.lane.b32.xlu0 %v622, 120
  %v777 = vpop.permute.xlu0 %776
  %778 = vrot.lane.b32.xlu0 %v623, 120
  %v779 = vpop.permute.xlu0 %778
  %v780 = vsel %vm116, %v777, %v779
  %v783 = vadd.f32 %v622, %v780
  %v784 = vadd.f32 %v623, %v779
  %v785 = vmul.f32 %v783, 0.007598758
  %v786 = vmul.f32 %v784, 0.007598758
  %789 = vrot.lane.b32.xlu0 %v785, 4
  %v790 = vpop.permute.xlu0 %789
  %791 = vrot.lane.b32.xlu0 %v786, 4
  %v792 = vpop.permute.xlu0 %791
  %v793 = vsel %vm130, %v790, %v792
  %v796 = vadd.f32 %v692, %v790
  %v797 = vadd.f32 %v693, %v793
  %798 = vrot.lane.b32.xlu0 %v626, 120
  %v799 = vpop.permute.xlu0 %798
  %800 = vrot.lane.b32.xlu0 %v627, 120
  %v801 = vpop.permute.xlu0 %800
  %v802 = vsel %vm116, %v799, %v801
  %v805 = vadd.f32 %v626, %v802
  %v806 = vadd.f32 %v627, %v801
  %v807 = vmul.f32 %v805, 0.007598758
  %v808 = vmul.f32 %v806, 0.007598758
  %811 = vrot.lane.b32.xlu0 %v807, 4
  %v812 = vpop.permute.xlu0 %811
  %813 = vrot.lane.b32.xlu0 %v808, 4
  %v814 = vpop.permute.xlu0 %813
  %v815 = vsel %vm130, %v812, %v814
  %v818 = vadd.f32 %v708, %v812
  %v819 = vadd.f32 %v709, %v815
  %820 = vrot.lane.b32.xlu0 %v610, 122
  %v821 = vpop.permute.xlu0 %820
  %822 = vrot.lane.b32.xlu0 %v611, 122
  %v823 = vpop.permute.xlu0 %822
  %v824 = vsel %vm228, %v821, %v823
  %v827 = vadd.f32 %v610, %v824
  %v828 = vadd.f32 %v611, %v823
  %v829 = vmul.f32 %v827, 0.036000773
  %v830 = vmul.f32 %v828, 0.036000773
  %833 = vrot.lane.b32.xlu0 %v829, 3
  %v834 = vpop.permute.xlu0 %833
  %835 = vrot.lane.b32.xlu0 %v830, 3
  %v836 = vpop.permute.xlu0 %835
  %v837 = vsel %vm242, %v834, %v836
  %v840 = vadd.f32 %v730, %v834
  %v841 = vadd.f32 %v731, %v837
  %842 = vrot.lane.b32.xlu0 %v612, 122
  %v843 = vpop.permute.xlu0 %842
  %844 = vrot.lane.b32.xlu0 %v613, 122
  %v845 = vpop.permute.xlu0 %844
  %v846 = vsel %vm228, %v843, %v845
  %v849 = vadd.f32 %v612, %v846
  %v850 = vadd.f32 %v613, %v845
  %v851 = vmul.f32 %v849, 0.036000773
  %v852 = vmul.f32 %v850, 0.036000773
  %855 = vrot.lane.b32.xlu0 %v851, 3
  %v856 = vpop.permute.xlu0 %855
  %857 = vrot.lane.b32.xlu0 %v852, 3
  %v858 = vpop.permute.xlu0 %857
  %v859 = vsel %vm242, %v856, %v858
  %v862 = vadd.f32 %v752, %v856
  %v863 = vadd.f32 %v753, %v859
  %864 = vrot.lane.b32.xlu0 %v618, 122
  %v865 = vpop.permute.xlu0 %864
  %866 = vrot.lane.b32.xlu0 %v619, 122
  %v867 = vpop.permute.xlu0 %866
  %v868 = vsel %vm228, %v865, %v867
  %v871 = vadd.f32 %v618, %v868
  %v872 = vadd.f32 %v619, %v867
  %v873 = vmul.f32 %v871, 0.036000773
  %v874 = vmul.f32 %v872, 0.036000773
  %877 = vrot.lane.b32.xlu0 %v873, 3
  %v878 = vpop.permute.xlu0 %877
  %879 = vrot.lane.b32.xlu0 %v874, 3
  %v880 = vpop.permute.xlu0 %879
  %v881 = vsel %vm242, %v878, %v880
  %v884 = vadd.f32 %v774, %v878
  %v885 = vadd.f32 %v775, %v881
  %886 = vrot.lane.b32.xlu0 %v622, 122
  %v887 = vpop.permute.xlu0 %886
  %888 = vrot.lane.b32.xlu0 %v623, 122
  %v889 = vpop.permute.xlu0 %888
  %v890 = vsel %vm228, %v887, %v889
  %v893 = vadd.f32 %v622, %v890
  %v894 = vadd.f32 %v623, %v889
  %v895 = vmul.f32 %v893, 0.036000773
  %v896 = vmul.f32 %v894, 0.036000773
  %899 = vrot.lane.b32.xlu0 %v895, 3
  %v900 = vpop.permute.xlu0 %899
  %901 = vrot.lane.b32.xlu0 %v896, 3
  %v902 = vpop.permute.xlu0 %901
  %v903 = vsel %vm242, %v900, %v902
  %v906 = vadd.f32 %v796, %v900
  %v907 = vadd.f32 %v797, %v903
  %908 = vrot.lane.b32.xlu0 %v626, 122
  %v909 = vpop.permute.xlu0 %908
  %910 = vrot.lane.b32.xlu0 %v627, 122
  %v911 = vpop.permute.xlu0 %910
  %v912 = vsel %vm228, %v909, %v911
  %v915 = vadd.f32 %v626, %v912
  %v916 = vadd.f32 %v627, %v911
  %v917 = vmul.f32 %v915, 0.036000773
  %v918 = vmul.f32 %v916, 0.036000773
  %921 = vrot.lane.b32.xlu0 %v917, 3
  %v922 = vpop.permute.xlu0 %921
  %923 = vrot.lane.b32.xlu0 %v918, 3
  %v924 = vpop.permute.xlu0 %923
  %v925 = vsel %vm242, %v922, %v924
  %v928 = vadd.f32 %v818, %v922
  %v929 = vadd.f32 %v819, %v925
  %930 = vrot.lane.b32.xlu0 %v610, 124
  %v931 = vpop.permute.xlu0 %930
  %932 = vrot.lane.b32.xlu0 %v611, 124
  %v933 = vpop.permute.xlu0 %932
  %v934 = vsel %vm340, %v931, %v933
  %v937 = vadd.f32 %v610, %v934
  %v938 = vadd.f32 %v611, %v933
  %v939 = vmul.f32 %v937, 0.10936069
  %v940 = vmul.f32 %v938, 0.10936069
  %943 = vrot.lane.b32.xlu0 %v939, 2
  %v944 = vpop.permute.xlu0 %943
  %945 = vrot.lane.b32.xlu0 %v940, 2
  %v946 = vpop.permute.xlu0 %945
  %v947 = vsel %vm354, %v944, %v946
  %v950 = vadd.f32 %v840, %v944
  %v951 = vadd.f32 %v841, %v947
  %952 = vrot.lane.b32.xlu0 %v612, 124
  %v953 = vpop.permute.xlu0 %952
  %954 = vrot.lane.b32.xlu0 %v613, 124
  %v955 = vpop.permute.xlu0 %954
  %v956 = vsel %vm340, %v953, %v955
  %v959 = vadd.f32 %v612, %v956
  %v960 = vadd.f32 %v613, %v955
  %v961 = vmul.f32 %v959, 0.10936069
  %v962 = vmul.f32 %v960, 0.10936069
  %965 = vrot.lane.b32.xlu0 %v961, 2
  %v966 = vpop.permute.xlu0 %965
  %967 = vrot.lane.b32.xlu0 %v962, 2
  %v968 = vpop.permute.xlu0 %967
  %v969 = vsel %vm354, %v966, %v968
  %v972 = vadd.f32 %v862, %v966
  %v973 = vadd.f32 %v863, %v969
  %974 = vrot.lane.b32.xlu0 %v618, 124
  %v975 = vpop.permute.xlu0 %974
  %976 = vrot.lane.b32.xlu0 %v619, 124
  %v977 = vpop.permute.xlu0 %976
  %v978 = vsel %vm340, %v975, %v977
  %v981 = vadd.f32 %v618, %v978
  %v982 = vadd.f32 %v619, %v977
  %v983 = vmul.f32 %v981, 0.10936069
  %v984 = vmul.f32 %v982, 0.10936069
  %987 = vrot.lane.b32.xlu0 %v983, 2
  %v988 = vpop.permute.xlu0 %987
  %989 = vrot.lane.b32.xlu0 %v984, 2
  %v990 = vpop.permute.xlu0 %989
  %v991 = vsel %vm354, %v988, %v990
  %v994 = vadd.f32 %v884, %v988
  %v995 = vadd.f32 %v885, %v991
  %996 = vrot.lane.b32.xlu0 %v622, 124
  %v997 = vpop.permute.xlu0 %996
  %998 = vrot.lane.b32.xlu0 %v623, 124
  %v999 = vpop.permute.xlu0 %998
  %v1000 = vsel %vm340, %v997, %v999
  %v1003 = vadd.f32 %v622, %v1000
  %v1004 = vadd.f32 %v623, %v999
  %v1005 = vmul.f32 %v1003, 0.10936069
  %v1006 = vmul.f32 %v1004, 0.10936069
  %1009 = vrot.lane.b32.xlu0 %v1005, 2
  %v1010 = vpop.permute.xlu0 %1009
  %1011 = vrot.lane.b32.xlu0 %v1006, 2
  %v1012 = vpop.permute.xlu0 %1011
  %v1013 = vsel %vm354, %v1010, %v1012
  %v1016 = vadd.f32 %v906, %v1010
  %v1017 = vadd.f32 %v907, %v1013
  %1018 = vrot.lane.b32.xlu0 %v626, 124
  %v1019 = vpop.permute.xlu0 %1018
  %1020 = vrot.lane.b32.xlu0 %v627, 124
  %v1021 = vpop.permute.xlu0 %1020
  %v1022 = vsel %vm340, %v1019, %v1021
  %v1025 = vadd.f32 %v626, %v1022
  %v1026 = vadd.f32 %v627, %v1021
  %v1027 = vmul.f32 %v1025, 0.10936069
  %v1028 = vmul.f32 %v1026, 0.10936069
  %1031 = vrot.lane.b32.xlu0 %v1027, 2
  %v1032 = vpop.permute.xlu0 %1031
  %1033 = vrot.lane.b32.xlu0 %v1028, 2
  %v1034 = vpop.permute.xlu0 %1033
  %v1035 = vsel %vm354, %v1032, %v1034
  %v1038 = vadd.f32 %v928, %v1032
  %v1039 = vadd.f32 %v929, %v1035
  %1040 = vrot.lane.b32.xlu0 %v610, 126
  %v1041 = vpop.permute.xlu0 %1040
  %1042 = vrot.lane.b32.xlu0 %v611, 126
  %v1043 = vpop.permute.xlu0 %1042
  %v1044 = vsel %vm452, %v1041, %v1043
  %v1047 = vadd.f32 %v610, %v1044
  %v1048 = vadd.f32 %v611, %v1043
  %v1049 = vmul.f32 %v1047, 0.21300554
  %v1050 = vmul.f32 %v1048, 0.21300554
  %1053 = vrot.lane.b32.xlu0 %v1049, 1
  %v1054 = vpop.permute.xlu0 %1053
  %1055 = vrot.lane.b32.xlu0 %v1050, 1
  %v1056 = vpop.permute.xlu0 %1055
  %v1057 = vsel %vm466, %v1054, %v1056
  %v1060 = vadd.f32 %v950, %v1054
  %v1061 = vadd.f32 %v951, %v1057
  %1062 = vrot.lane.b32.xlu0 %v612, 126
  %v1063 = vpop.permute.xlu0 %1062
  %1064 = vrot.lane.b32.xlu0 %v613, 126
  %v1065 = vpop.permute.xlu0 %1064
  %v1066 = vsel %vm452, %v1063, %v1065
  %v1069 = vadd.f32 %v612, %v1066
  %v1070 = vadd.f32 %v613, %v1065
  %v1071 = vmul.f32 %v1069, 0.21300554
  %v1072 = vmul.f32 %v1070, 0.21300554
  %1075 = vrot.lane.b32.xlu0 %v1071, 1
  %v1076 = vpop.permute.xlu0 %1075
  %1077 = vrot.lane.b32.xlu0 %v1072, 1
  %v1078 = vpop.permute.xlu0 %1077
  %v1079 = vsel %vm466, %v1076, %v1078
  %v1082 = vadd.f32 %v972, %v1076
  %v1083 = vadd.f32 %v973, %v1079
  %1084 = vrot.lane.b32.xlu0 %v618, 126
  %v1085 = vpop.permute.xlu0 %1084
  %1086 = vrot.lane.b32.xlu0 %v619, 126
  %v1087 = vpop.permute.xlu0 %1086
  %v1088 = vsel %vm452, %v1085, %v1087
  %v1091 = vadd.f32 %v618, %v1088
  %v1092 = vadd.f32 %v619, %v1087
  %v1093 = vmul.f32 %v1091, 0.21300554
  %v1094 = vmul.f32 %v1092, 0.21300554
  %1097 = vrot.lane.b32.xlu0 %v1093, 1
  %v1098 = vpop.permute.xlu0 %1097
  %1099 = vrot.lane.b32.xlu0 %v1094, 1
  %v1100 = vpop.permute.xlu0 %1099
  %v1101 = vsel %vm466, %v1098, %v1100
  %v1104 = vadd.f32 %v994, %v1098
  %v1105 = vadd.f32 %v995, %v1101
  %1106 = vrot.lane.b32.xlu0 %v622, 126
  %v1107 = vpop.permute.xlu0 %1106
  %1108 = vrot.lane.b32.xlu0 %v623, 126
  %v1109 = vpop.permute.xlu0 %1108
  %v1110 = vsel %vm452, %v1107, %v1109
  %v1113 = vadd.f32 %v622, %v1110
  %v1114 = vadd.f32 %v623, %v1109
  %v1115 = vmul.f32 %v1113, 0.21300554
  %v1116 = vmul.f32 %v1114, 0.21300554
  %1119 = vrot.lane.b32.xlu0 %v1115, 1
  %v1120 = vpop.permute.xlu0 %1119
  %1121 = vrot.lane.b32.xlu0 %v1116, 1
  %v1122 = vpop.permute.xlu0 %1121
  %v1123 = vsel %vm466, %v1120, %v1122
  %v1126 = vadd.f32 %v1016, %v1120
  %v1127 = vadd.f32 %v1017, %v1123
  %1128 = vrot.lane.b32.xlu0 %v626, 126
  %v1129 = vpop.permute.xlu0 %1128
  %1130 = vrot.lane.b32.xlu0 %v627, 126
  %v1131 = vpop.permute.xlu0 %1130
  %v1132 = vsel %vm452, %v1129, %v1131
  %v1135 = vadd.f32 %v626, %v1132
  %v1136 = vadd.f32 %v627, %v1131
  %v1137 = vmul.f32 %v1135, 0.21300554
  %v1138 = vmul.f32 %v1136, 0.21300554
  %1141 = vrot.lane.b32.xlu0 %v1137, 1
  %v1142 = vpop.permute.xlu0 %1141
  %1143 = vrot.lane.b32.xlu0 %v1138, 1
  %v1144 = vpop.permute.xlu0 %1143
  %v1145 = vsel %vm466, %v1142, %v1144
  %v1148 = vadd.f32 %v1038, %v1142
  %v1149 = vadd.f32 %v1039, %v1145
  %1152 = vrot.lane.b32.xlu0 %v1060, 123
  %v1153 = vpop.permute.xlu0 %1152
  %1154 = vrot.lane.b32.xlu0 %v1061, 123
  %v1155 = vpop.permute.xlu0 %1154
  %v1156 = vsel %vm566, %v1153, %v1155
  %1158 = vst [vmem:[#allocation2 + $0x8] sm:$0xff] %v1156
  %1161 = vrot.lane.b32.xlu0 %v1082, 123
  %v1162 = vpop.permute.xlu0 %1161
  %1163 = vrot.lane.b32.xlu0 %v1083, 123
  %v1164 = vpop.permute.xlu0 %1163
  %v1165 = vsel %vm566, %v1162, %v1164
  %1167 = vst [vmem:[%s578 + $0x8] sm:$0xff] %v1165
  %1170 = vrot.lane.b32.xlu0 %v1104, 123
  %v1171 = vpop.permute.xlu0 %1170
  %1172 = vrot.lane.b32.xlu0 %v1105, 123
  %v1173 = vpop.permute.xlu0 %1172
  %v1174 = vsel %vm566, %v1171, %v1173
  %1176 = vst [vmem:[%s588 + $0x8] sm:$0xff] %v1174
  %1179 = vrot.lane.b32.xlu0 %v1126, 123
  %v1180 = vpop.permute.xlu0 %1179
  %1181 = vrot.lane.b32.xlu0 %v1127, 123
  %v1182 = vpop.permute.xlu0 %1181
  %v1183 = vsel %vm566, %v1180, %v1182
  %1185 = vst [vmem:[%s598 + $0x8] sm:$0xff] %v1183
  %1188 = vrot.lane.b32.xlu0 %v1148, 123
  %v1189 = vpop.permute.xlu0 %1188
  %1190 = vrot.lane.b32.xlu0 %v1149, 123
  %v1191 = vpop.permute.xlu0 %1190
  %v1192 = vsel %vm566, %v1189, %v1191
  %1194 = vst [vmem:[%s608 + $0x8] sm:$0xff] %v1192
  %v1195 = vld [vmem:[%s0 + $0x20] sm:$0xff]
  %v1196 = vld [vmem:[%s0 + $0x28] sm:$0xff]
  %v1197 = vld [vmem:[%s1 + $0x20] sm:$0xff]
  %v1198 = vld [vmem:[%s1 + $0x28] sm:$0xff]
  %v1199 = vmul.f32 %v1195, 0.26601171
  %v1200 = vmul.f32 %v1196, 0.26601171
  %v1201 = vmul.f32 %v1197, 0.26601171
  %v1202 = vmul.f32 %v1198, 0.26601171
  %v1203 = vmul.f32 %v1195, %v1195
  %v1204 = vmul.f32 %v1196, %v1196
  %v1205 = vmul.f32 %v1203, 0.26601171
  %v1206 = vmul.f32 %v1204, 0.26601171
  %v1207 = vmul.f32 %v1197, %v1197
  %v1208 = vmul.f32 %v1198, %v1198
  %v1209 = vmul.f32 %v1207, 0.26601171
  %v1210 = vmul.f32 %v1208, 0.26601171
  %v1211 = vmul.f32 %v1195, %v1197
  %v1212 = vmul.f32 %v1196, %v1198
  %v1213 = vmul.f32 %v1211, 0.26601171
  %v1214 = vmul.f32 %v1212, 0.26601171
  %1217 = vrot.lane.b32.xlu0 %v1195, 118
  %v1218 = vpop.permute.xlu0 %1217
  %1219 = vrot.lane.b32.xlu0 %v1196, 118
  %v1220 = vpop.permute.xlu0 %1219
  %v1221 = vsel %vm37, %v1218, %v1220
  %v1223 = vadd.f32 %v1195, %v1221
  %v1224 = vmul.f32 %v1223, 0.0010283801
  %1226 = vrot.lane.b32.xlu0 %v1224, 5
  %v1227 = vpop.permute.xlu0 %1226
  %v1229 = vadd.f32 %v1199, %v1227
  %v1230 = vadd.f32 %v1200, %v1227
  %1233 = vrot.lane.b32.xlu0 %v1197, 118
  %v1234 = vpop.permute.xlu0 %1233
  %1235 = vrot.lane.b32.xlu0 %v1198, 118
  %v1236 = vpop.permute.xlu0 %1235
  %v1237 = vsel %vm37, %v1234, %v1236
  %v1239 = vadd.f32 %v1197, %v1237
  %v1240 = vmul.f32 %v1239, 0.0010283801
  %1242 = vrot.lane.b32.xlu0 %v1240, 5
  %v1243 = vpop.permute.xlu0 %1242
  %v1245 = vadd.f32 %v1201, %v1243
  %v1246 = vadd.f32 %v1202, %v1243
  %1249 = vrot.lane.b32.xlu0 %v1203, 118
  %v1250 = vpop.permute.xlu0 %1249
  %1251 = vrot.lane.b32.xlu0 %v1204, 118
  %v1252 = vpop.permute.xlu0 %1251
  %v1253 = vsel %vm37, %v1250, %v1252
  %v1255 = vadd.f32 %v1203, %v1253
  %v1256 = vmul.f32 %v1255, 0.0010283801
  %1258 = vrot.lane.b32.xlu0 %v1256, 5
  %v1259 = vpop.permute.xlu0 %1258
  %v1261 = vadd.f32 %v1205, %v1259
  %v1262 = vadd.f32 %v1206, %v1259
  %1265 = vrot.lane.b32.xlu0 %v1207, 118
  %v1266 = vpop.permute.xlu0 %1265
  %1267 = vrot.lane.b32.xlu0 %v1208, 118
  %v1268 = vpop.permute.xlu0 %1267
  %v1269 = vsel %vm37, %v1266, %v1268
  %v1271 = vadd.f32 %v1207, %v1269
  %v1272 = vmul.f32 %v1271, 0.0010283801
  %1274 = vrot.lane.b32.xlu0 %v1272, 5
  %v1275 = vpop.permute.xlu0 %1274
  %v1277 = vadd.f32 %v1209, %v1275
  %v1278 = vadd.f32 %v1210, %v1275
  %1281 = vrot.lane.b32.xlu0 %v1211, 118
  %v1282 = vpop.permute.xlu0 %1281
  %1283 = vrot.lane.b32.xlu0 %v1212, 118
  %v1284 = vpop.permute.xlu0 %1283
  %v1285 = vsel %vm37, %v1282, %v1284
  %v1287 = vadd.f32 %v1211, %v1285
  %v1288 = vmul.f32 %v1287, 0.0010283801
  %1290 = vrot.lane.b32.xlu0 %v1288, 5
  %v1291 = vpop.permute.xlu0 %1290
  %v1293 = vadd.f32 %v1213, %v1291
  %v1294 = vadd.f32 %v1214, %v1291
  %1295 = vrot.lane.b32.xlu0 %v1195, 120
  %v1296 = vpop.permute.xlu0 %1295
  %1297 = vrot.lane.b32.xlu0 %v1196, 120
  %v1298 = vpop.permute.xlu0 %1297
  %v1299 = vsel %vm116, %v1296, %v1298
  %v1302 = vadd.f32 %v1195, %v1299
  %v1303 = vadd.f32 %v1196, %v1298
  %v1304 = vmul.f32 %v1302, 0.007598758
  %v1305 = vmul.f32 %v1303, 0.007598758
  %1308 = vrot.lane.b32.xlu0 %v1304, 4
  %v1309 = vpop.permute.xlu0 %1308
  %1310 = vrot.lane.b32.xlu0 %v1305, 4
  %v1311 = vpop.permute.xlu0 %1310
  %v1312 = vsel %vm130, %v1309, %v1311
  %v1315 = vadd.f32 %v1229, %v1309
  %v1316 = vadd.f32 %v1230, %v1312
  %1317 = vrot.lane.b32.xlu0 %v1197, 120
  %v1318 = vpop.permute.xlu0 %1317
  %1319 = vrot.lane.b32.xlu0 %v1198, 120
  %v1320 = vpop.permute.xlu0 %1319
  %v1321 = vsel %vm116, %v1318, %v1320
  %v1324 = vadd.f32 %v1197, %v1321
  %v1325 = vadd.f32 %v1198, %v1320
  %v1326 = vmul.f32 %v1324, 0.007598758
  %v1327 = vmul.f32 %v1325, 0.007598758
  %1330 = vrot.lane.b32.xlu0 %v1326, 4
  %v1331 = vpop.permute.xlu0 %1330
  %1332 = vrot.lane.b32.xlu0 %v1327, 4
  %v1333 = vpop.permute.xlu0 %1332
  %v1334 = vsel %vm130, %v1331, %v1333
  %v1337 = vadd.f32 %v1245, %v1331
  %v1338 = vadd.f32 %v1246, %v1334
  %1339 = vrot.lane.b32.xlu0 %v1203, 120
  %v1340 = vpop.permute.xlu0 %1339
  %1341 = vrot.lane.b32.xlu0 %v1204, 120
  %v1342 = vpop.permute.xlu0 %1341
  %v1343 = vsel %vm116, %v1340, %v1342
  %v1346 = vadd.f32 %v1203, %v1343
  %v1347 = vadd.f32 %v1204, %v1342
  %v1348 = vmul.f32 %v1346, 0.007598758
  %v1349 = vmul.f32 %v1347, 0.007598758
  %1352 = vrot.lane.b32.xlu0 %v1348, 4
  %v1353 = vpop.permute.xlu0 %1352
  %1354 = vrot.lane.b32.xlu0 %v1349, 4
  %v1355 = vpop.permute.xlu0 %1354
  %v1356 = vsel %vm130, %v1353, %v1355
  %v1359 = vadd.f32 %v1261, %v1353
  %v1360 = vadd.f32 %v1262, %v1356
  %1361 = vrot.lane.b32.xlu0 %v1207, 120
  %v1362 = vpop.permute.xlu0 %1361
  %1363 = vrot.lane.b32.xlu0 %v1208, 120
  %v1364 = vpop.permute.xlu0 %1363
  %v1365 = vsel %vm116, %v1362, %v1364
  %v1368 = vadd.f32 %v1207, %v1365
  %v1369 = vadd.f32 %v1208, %v1364
  %v1370 = vmul.f32 %v1368, 0.007598758
  %v1371 = vmul.f32 %v1369, 0.007598758
  %1374 = vrot.lane.b32.xlu0 %v1370, 4
  %v1375 = vpop.permute.xlu0 %1374
  %1376 = vrot.lane.b32.xlu0 %v1371, 4
  %v1377 = vpop.permute.xlu0 %1376
  %v1378 = vsel %vm130, %v1375, %v1377
  %v1381 = vadd.f32 %v1277, %v1375
  %v1382 = vadd.f32 %v1278, %v1378
  %1383 = vrot.lane.b32.xlu0 %v1211, 120
  %v1384 = vpop.permute.xlu0 %1383
  %1385 = vrot.lane.b32.xlu0 %v1212, 120
  %v1386 = vpop.permute.xlu0 %1385
  %v1387 = vsel %vm116, %v1384, %v1386
  %v1390 = vadd.f32 %v1211, %v1387
  %v1391 = vadd.f32 %v1212, %v1386
  %v1392 = vmul.f32 %v1390, 0.007598758
  %v1393 = vmul.f32 %v1391, 0.007598758
  %1396 = vrot.lane.b32.xlu0 %v1392, 4
  %v1397 = vpop.permute.xlu0 %1396
  %1398 = vrot.lane.b32.xlu0 %v1393, 4
  %v1399 = vpop.permute.xlu0 %1398
  %v1400 = vsel %vm130, %v1397, %v1399
  %v1403 = vadd.f32 %v1293, %v1397
  %v1404 = vadd.f32 %v1294, %v1400
  %1405 = vrot.lane.b32.xlu0 %v1195, 122
  %v1406 = vpop.permute.xlu0 %1405
  %1407 = vrot.lane.b32.xlu0 %v1196, 122
  %v1408 = vpop.permute.xlu0 %1407
  %v1409 = vsel %vm228, %v1406, %v1408
  %v1412 = vadd.f32 %v1195, %v1409
  %v1413 = vadd.f32 %v1196, %v1408
  %v1414 = vmul.f32 %v1412, 0.036000773
  %v1415 = vmul.f32 %v1413, 0.036000773
  %1418 = vrot.lane.b32.xlu0 %v1414, 3
  %v1419 = vpop.permute.xlu0 %1418
  %1420 = vrot.lane.b32.xlu0 %v1415, 3
  %v1421 = vpop.permute.xlu0 %1420
  %v1422 = vsel %vm242, %v1419, %v1421
  %v1425 = vadd.f32 %v1315, %v1419
  %v1426 = vadd.f32 %v1316, %v1422
  %1427 = vrot.lane.b32.xlu0 %v1197, 122
  %v1428 = vpop.permute.xlu0 %1427
  %1429 = vrot.lane.b32.xlu0 %v1198, 122
  %v1430 = vpop.permute.xlu0 %1429
  %v1431 = vsel %vm228, %v1428, %v1430
  %v1434 = vadd.f32 %v1197, %v1431
  %v1435 = vadd.f32 %v1198, %v1430
  %v1436 = vmul.f32 %v1434, 0.036000773
  %v1437 = vmul.f32 %v1435, 0.036000773
  %1440 = vrot.lane.b32.xlu0 %v1436, 3
  %v1441 = vpop.permute.xlu0 %1440
  %1442 = vrot.lane.b32.xlu0 %v1437, 3
  %v1443 = vpop.permute.xlu0 %1442
  %v1444 = vsel %vm242, %v1441, %v1443
  %v1447 = vadd.f32 %v1337, %v1441
  %v1448 = vadd.f32 %v1338, %v1444
  %1449 = vrot.lane.b32.xlu0 %v1203, 122
  %v1450 = vpop.permute.xlu0 %1449
  %1451 = vrot.lane.b32.xlu0 %v1204, 122
  %v1452 = vpop.permute.xlu0 %1451
  %v1453 = vsel %vm228, %v1450, %v1452
  %v1456 = vadd.f32 %v1203, %v1453
  %v1457 = vadd.f32 %v1204, %v1452
  %v1458 = vmul.f32 %v1456, 0.036000773
  %v1459 = vmul.f32 %v1457, 0.036000773
  %1462 = vrot.lane.b32.xlu0 %v1458, 3
  %v1463 = vpop.permute.xlu0 %1462
  %1464 = vrot.lane.b32.xlu0 %v1459, 3
  %v1465 = vpop.permute.xlu0 %1464
  %v1466 = vsel %vm242, %v1463, %v1465
  %v1469 = vadd.f32 %v1359, %v1463
  %v1470 = vadd.f32 %v1360, %v1466
  %1471 = vrot.lane.b32.xlu0 %v1207, 122
  %v1472 = vpop.permute.xlu0 %1471
  %1473 = vrot.lane.b32.xlu0 %v1208, 122
  %v1474 = vpop.permute.xlu0 %1473
  %v1475 = vsel %vm228, %v1472, %v1474
  %v1478 = vadd.f32 %v1207, %v1475
  %v1479 = vadd.f32 %v1208, %v1474
  %v1480 = vmul.f32 %v1478, 0.036000773
  %v1481 = vmul.f32 %v1479, 0.036000773
  %1484 = vrot.lane.b32.xlu0 %v1480, 3
  %v1485 = vpop.permute.xlu0 %1484
  %1486 = vrot.lane.b32.xlu0 %v1481, 3
  %v1487 = vpop.permute.xlu0 %1486
  %v1488 = vsel %vm242, %v1485, %v1487
  %v1491 = vadd.f32 %v1381, %v1485
  %v1492 = vadd.f32 %v1382, %v1488
  %1493 = vrot.lane.b32.xlu0 %v1211, 122
  %v1494 = vpop.permute.xlu0 %1493
  %1495 = vrot.lane.b32.xlu0 %v1212, 122
  %v1496 = vpop.permute.xlu0 %1495
  %v1497 = vsel %vm228, %v1494, %v1496
  %v1500 = vadd.f32 %v1211, %v1497
  %v1501 = vadd.f32 %v1212, %v1496
  %v1502 = vmul.f32 %v1500, 0.036000773
  %v1503 = vmul.f32 %v1501, 0.036000773
  %1506 = vrot.lane.b32.xlu0 %v1502, 3
  %v1507 = vpop.permute.xlu0 %1506
  %1508 = vrot.lane.b32.xlu0 %v1503, 3
  %v1509 = vpop.permute.xlu0 %1508
  %v1510 = vsel %vm242, %v1507, %v1509
  %v1513 = vadd.f32 %v1403, %v1507
  %v1514 = vadd.f32 %v1404, %v1510
  %1515 = vrot.lane.b32.xlu0 %v1195, 124
  %v1516 = vpop.permute.xlu0 %1515
  %1517 = vrot.lane.b32.xlu0 %v1196, 124
  %v1518 = vpop.permute.xlu0 %1517
  %v1519 = vsel %vm340, %v1516, %v1518
  %v1522 = vadd.f32 %v1195, %v1519
  %v1523 = vadd.f32 %v1196, %v1518
  %v1524 = vmul.f32 %v1522, 0.10936069
  %v1525 = vmul.f32 %v1523, 0.10936069
  %1528 = vrot.lane.b32.xlu0 %v1524, 2
  %v1529 = vpop.permute.xlu0 %1528
  %1530 = vrot.lane.b32.xlu0 %v1525, 2
  %v1531 = vpop.permute.xlu0 %1530
  %v1532 = vsel %vm354, %v1529, %v1531
  %v1535 = vadd.f32 %v1425, %v1529
  %v1536 = vadd.f32 %v1426, %v1532
  %1537 = vrot.lane.b32.xlu0 %v1197, 124
  %v1538 = vpop.permute.xlu0 %1537
  %1539 = vrot.lane.b32.xlu0 %v1198, 124
  %v1540 = vpop.permute.xlu0 %1539
  %v1541 = vsel %vm340, %v1538, %v1540
  %v1544 = vadd.f32 %v1197, %v1541
  %v1545 = vadd.f32 %v1198, %v1540
  %v1546 = vmul.f32 %v1544, 0.10936069
  %v1547 = vmul.f32 %v1545, 0.10936069
  %1550 = vrot.lane.b32.xlu0 %v1546, 2
  %v1551 = vpop.permute.xlu0 %1550
  %1552 = vrot.lane.b32.xlu0 %v1547, 2
  %v1553 = vpop.permute.xlu0 %1552
  %v1554 = vsel %vm354, %v1551, %v1553
  %v1557 = vadd.f32 %v1447, %v1551
  %v1558 = vadd.f32 %v1448, %v1554
  %1559 = vrot.lane.b32.xlu0 %v1203, 124
  %v1560 = vpop.permute.xlu0 %1559
  %1561 = vrot.lane.b32.xlu0 %v1204, 124
  %v1562 = vpop.permute.xlu0 %1561
  %v1563 = vsel %vm340, %v1560, %v1562
  %v1566 = vadd.f32 %v1203, %v1563
  %v1567 = vadd.f32 %v1204, %v1562
  %v1568 = vmul.f32 %v1566, 0.10936069
  %v1569 = vmul.f32 %v1567, 0.10936069
  %1572 = vrot.lane.b32.xlu0 %v1568, 2
  %v1573 = vpop.permute.xlu0 %1572
  %1574 = vrot.lane.b32.xlu0 %v1569, 2
  %v1575 = vpop.permute.xlu0 %1574
  %v1576 = vsel %vm354, %v1573, %v1575
  %v1579 = vadd.f32 %v1469, %v1573
  %v1580 = vadd.f32 %v1470, %v1576
  %1581 = vrot.lane.b32.xlu0 %v1207, 124
  %v1582 = vpop.permute.xlu0 %1581
  %1583 = vrot.lane.b32.xlu0 %v1208, 124
  %v1584 = vpop.permute.xlu0 %1583
  %v1585 = vsel %vm340, %v1582, %v1584
  %v1588 = vadd.f32 %v1207, %v1585
  %v1589 = vadd.f32 %v1208, %v1584
  %v1590 = vmul.f32 %v1588, 0.10936069
  %v1591 = vmul.f32 %v1589, 0.10936069
  %1594 = vrot.lane.b32.xlu0 %v1590, 2
  %v1595 = vpop.permute.xlu0 %1594
  %1596 = vrot.lane.b32.xlu0 %v1591, 2
  %v1597 = vpop.permute.xlu0 %1596
  %v1598 = vsel %vm354, %v1595, %v1597
  %v1601 = vadd.f32 %v1491, %v1595
  %v1602 = vadd.f32 %v1492, %v1598
  %1603 = vrot.lane.b32.xlu0 %v1211, 124
  %v1604 = vpop.permute.xlu0 %1603
  %1605 = vrot.lane.b32.xlu0 %v1212, 124
  %v1606 = vpop.permute.xlu0 %1605
  %v1607 = vsel %vm340, %v1604, %v1606
  %v1610 = vadd.f32 %v1211, %v1607
  %v1611 = vadd.f32 %v1212, %v1606
  %v1612 = vmul.f32 %v1610, 0.10936069
  %v1613 = vmul.f32 %v1611, 0.10936069
  %1616 = vrot.lane.b32.xlu0 %v1612, 2
  %v1617 = vpop.permute.xlu0 %1616
  %1618 = vrot.lane.b32.xlu0 %v1613, 2
  %v1619 = vpop.permute.xlu0 %1618
  %v1620 = vsel %vm354, %v1617, %v1619
  %v1623 = vadd.f32 %v1513, %v1617
  %v1624 = vadd.f32 %v1514, %v1620
  %1625 = vrot.lane.b32.xlu0 %v1195, 126
  %v1626 = vpop.permute.xlu0 %1625
  %1627 = vrot.lane.b32.xlu0 %v1196, 126
  %v1628 = vpop.permute.xlu0 %1627
  %v1629 = vsel %vm452, %v1626, %v1628
  %v1632 = vadd.f32 %v1195, %v1629
  %v1633 = vadd.f32 %v1196, %v1628
  %v1634 = vmul.f32 %v1632, 0.21300554
  %v1635 = vmul.f32 %v1633, 0.21300554
  %1638 = vrot.lane.b32.xlu0 %v1634, 1
  %v1639 = vpop.permute.xlu0 %1638
  %1640 = vrot.lane.b32.xlu0 %v1635, 1
  %v1641 = vpop.permute.xlu0 %1640
  %v1642 = vsel %vm466, %v1639, %v1641
  %v1645 = vadd.f32 %v1535, %v1639
  %v1646 = vadd.f32 %v1536, %v1642
  %1647 = vrot.lane.b32.xlu0 %v1197, 126
  %v1648 = vpop.permute.xlu0 %1647
  %1649 = vrot.lane.b32.xlu0 %v1198, 126
  %v1650 = vpop.permute.xlu0 %1649
  %v1651 = vsel %vm452, %v1648, %v1650
  %v1654 = vadd.f32 %v1197, %v1651
  %v1655 = vadd.f32 %v1198, %v1650
  %v1656 = vmul.f32 %v1654, 0.21300554
  %v1657 = vmul.f32 %v1655, 0.21300554
  %1660 = vrot.lane.b32.xlu0 %v1656, 1
  %v1661 = vpop.permute.xlu0 %1660
  %1662 = vrot.lane.b32.xlu0 %v1657, 1
  %v1663 = vpop.permute.xlu0 %1662
  %v1664 = vsel %vm466, %v1661, %v1663
  %v1667 = vadd.f32 %v1557, %v1661
  %v1668 = vadd.f32 %v1558, %v1664
  %1669 = vrot.lane.b32.xlu0 %v1203, 126
  %v1670 = vpop.permute.xlu0 %1669
  %1671 = vrot.lane.b32.xlu0 %v1204, 126
  %v1672 = vpop.permute.xlu0 %1671
  %v1673 = vsel %vm452, %v1670, %v1672
  %v1676 = vadd.f32 %v1203, %v1673
  %v1677 = vadd.f32 %v1204, %v1672
  %v1678 = vmul.f32 %v1676, 0.21300554
  %v1679 = vmul.f32 %v1677, 0.21300554
  %1682 = vrot.lane.b32.xlu0 %v1678, 1
  %v1683 = vpop.permute.xlu0 %1682
  %1684 = vrot.lane.b32.xlu0 %v1679, 1
  %v1685 = vpop.permute.xlu0 %1684
  %v1686 = vsel %vm466, %v1683, %v1685
  %v1689 = vadd.f32 %v1579, %v1683
  %v1690 = vadd.f32 %v1580, %v1686
  %1691 = vrot.lane.b32.xlu0 %v1207, 126
  %v1692 = vpop.permute.xlu0 %1691
  %1693 = vrot.lane.b32.xlu0 %v1208, 126
  %v1694 = vpop.permute.xlu0 %1693
  %v1695 = vsel %vm452, %v1692, %v1694
  %v1698 = vadd.f32 %v1207, %v1695
  %v1699 = vadd.f32 %v1208, %v1694
  %v1700 = vmul.f32 %v1698, 0.21300554
  %v1701 = vmul.f32 %v1699, 0.21300554
  %1704 = vrot.lane.b32.xlu0 %v1700, 1
  %v1705 = vpop.permute.xlu0 %1704
  %1706 = vrot.lane.b32.xlu0 %v1701, 1
  %v1707 = vpop.permute.xlu0 %1706
  %v1708 = vsel %vm466, %v1705, %v1707
  %v1711 = vadd.f32 %v1601, %v1705
  %v1712 = vadd.f32 %v1602, %v1708
  %1713 = vrot.lane.b32.xlu0 %v1211, 126
  %v1714 = vpop.permute.xlu0 %1713
  %1715 = vrot.lane.b32.xlu0 %v1212, 126
  %v1716 = vpop.permute.xlu0 %1715
  %v1717 = vsel %vm452, %v1714, %v1716
  %v1720 = vadd.f32 %v1211, %v1717
  %v1721 = vadd.f32 %v1212, %v1716
  %v1722 = vmul.f32 %v1720, 0.21300554
  %v1723 = vmul.f32 %v1721, 0.21300554
  %1726 = vrot.lane.b32.xlu0 %v1722, 1
  %v1727 = vpop.permute.xlu0 %1726
  %1728 = vrot.lane.b32.xlu0 %v1723, 1
  %v1729 = vpop.permute.xlu0 %1728
  %v1730 = vsel %vm466, %v1727, %v1729
  %v1733 = vadd.f32 %v1623, %v1727
  %v1734 = vadd.f32 %v1624, %v1730
  %1737 = vrot.lane.b32.xlu0 %v1645, 123
  %v1738 = vpop.permute.xlu0 %1737
  %1739 = vrot.lane.b32.xlu0 %v1646, 123
  %v1740 = vpop.permute.xlu0 %1739
  %v1741 = vsel %vm566, %v1738, %v1740
  %1743 = vst [vmem:[#allocation2 + $0x10] sm:$0xff] %v1741
  %1746 = vrot.lane.b32.xlu0 %v1667, 123
  %v1747 = vpop.permute.xlu0 %1746
  %1748 = vrot.lane.b32.xlu0 %v1668, 123
  %v1749 = vpop.permute.xlu0 %1748
  %v1750 = vsel %vm566, %v1747, %v1749
  %1752 = vst [vmem:[%s578 + $0x10] sm:$0xff] %v1750
  %1755 = vrot.lane.b32.xlu0 %v1689, 123
  %v1756 = vpop.permute.xlu0 %1755
  %1757 = vrot.lane.b32.xlu0 %v1690, 123
  %v1758 = vpop.permute.xlu0 %1757
  %v1759 = vsel %vm566, %v1756, %v1758
  %1761 = vst [vmem:[%s588 + $0x10] sm:$0xff] %v1759
  %1764 = vrot.lane.b32.xlu0 %v1711, 123
  %v1765 = vpop.permute.xlu0 %1764
  %1766 = vrot.lane.b32.xlu0 %v1712, 123
  %v1767 = vpop.permute.xlu0 %1766
  %v1768 = vsel %vm566, %v1765, %v1767
  %1770 = vst [vmem:[%s598 + $0x10] sm:$0xff] %v1768
  %1773 = vrot.lane.b32.xlu0 %v1733, 123
  %v1774 = vpop.permute.xlu0 %1773
  %1775 = vrot.lane.b32.xlu0 %v1734, 123
  %v1776 = vpop.permute.xlu0 %1775
  %v1777 = vsel %vm566, %v1774, %v1776
  %1779 = vst [vmem:[%s608 + $0x10] sm:$0xff] %v1777
  %v1780 = vld [vmem:[%s0 + $0x30] sm:$0xff]
  %v1781 = vld [vmem:[%s0 + $0x38] sm:$0xff]
  %v1782 = vld [vmem:[%s1 + $0x30] sm:$0xff]
  %v1783 = vld [vmem:[%s1 + $0x38] sm:$0xff]
  %v1784 = vmul.f32 %v1780, 0.26601171
  %v1785 = vmul.f32 %v1781, 0.26601171
  %v1786 = vmul.f32 %v1782, 0.26601171
  %v1787 = vmul.f32 %v1783, 0.26601171
  %v1788 = vmul.f32 %v1780, %v1780
  %v1789 = vmul.f32 %v1781, %v1781
  %v1790 = vmul.f32 %v1788, 0.26601171
  %v1791 = vmul.f32 %v1789, 0.26601171
  %v1792 = vmul.f32 %v1782, %v1782
  %v1793 = vmul.f32 %v1783, %v1783
  %v1794 = vmul.f32 %v1792, 0.26601171
  %v1795 = vmul.f32 %v1793, 0.26601171
  %v1796 = vmul.f32 %v1780, %v1782
  %v1797 = vmul.f32 %v1781, %v1783
  %v1798 = vmul.f32 %v1796, 0.26601171
  %v1799 = vmul.f32 %v1797, 0.26601171
  %v1800 = vld [vmem:[%s0 + $0x30] sm:$0xff]
  %v1801 = vld [vmem:[%s1 + $0x30] sm:$0xff]
  %1804 = vrot.lane.b32.xlu0 %v1780, 118
  %v1805 = vpop.permute.xlu0 %1804
  %1806 = vrot.lane.b32.xlu0 %v1781, 118
  %v1807 = vpop.permute.xlu0 %1806
  %v1808 = vsel %vm37, %v1805, %v1807
  %v1810 = vadd.f32 %v1800, %v1808
  %v1811 = vmul.f32 %v1810, 0.0010283801
  %1813 = vrot.lane.b32.xlu0 %v1811, 5
  %v1814 = vpop.permute.xlu0 %1813
  %v1816 = vadd.f32 %v1784, %v1814
  %v1817 = vadd.f32 %v1785, %v1814
  %1820 = vrot.lane.b32.xlu0 %v1782, 118
  %v1821 = vpop.permute.xlu0 %1820
  %1822 = vrot.lane.b32.xlu0 %v1783, 118
  %v1823 = vpop.permute.xlu0 %1822
  %v1824 = vsel %vm37, %v1821, %v1823
  %v1826 = vadd.f32 %v1801, %v1824
  %v1827 = vmul.f32 %v1826, 0.0010283801
  %1829 = vrot.lane.b32.xlu0 %v1827, 5
  %v1830 = vpop.permute.xlu0 %1829
  %v1832 = vadd.f32 %v1786, %v1830
  %v1833 = vadd.f32 %v1787, %v1830
  %v1834 = vmul.f32 %v1800, %v1800
  %1837 = vrot.lane.b32.xlu0 %v1788, 118
  %v1838 = vpop.permute.xlu0 %1837
  %1839 = vrot.lane.b32.xlu0 %v1789, 118
  %v1840 = vpop.permute.xlu0 %1839
  %v1841 = vsel %vm37, %v1838, %v1840
  %v1843 = vadd.f32 %v1834, %v1841
  %v1844 = vmul.f32 %v1843, 0.0010283801
  %1846 = vrot.lane.b32.xlu0 %v1844, 5
  %v1847 = vpop.permute.xlu0 %1846
  %v1849 = vadd.f32 %v1790, %v1847
  %v1850 = vadd.f32 %v1791, %v1847
  %v1851 = vmul.f32 %v1801, %v1801
  %1854 = vrot.lane.b32.xlu0 %v1792, 118
  %v1855 = vpop.permute.xlu0 %1854
  %1856 = vrot.lane.b32.xlu0 %v1793, 118
  %v1857 = vpop.permute.xlu0 %1856
  %v1858 = vsel %vm37, %v1855, %v1857
  %v1860 = vadd.f32 %v1851, %v1858
  %v1861 = vmul.f32 %v1860, 0.0010283801
  %1863 = vrot.lane.b32.xlu0 %v1861, 5
  %v1864 = vpop.permute.xlu0 %1863
  %v1866 = vadd.f32 %v1794, %v1864
  %v1867 = vadd.f32 %v1795, %v1864
  %v1868 = vmul.f32 %v1800, %v1801
  %1871 = vrot.lane.b32.xlu0 %v1796, 118
  %v1872 = vpop.permute.xlu0 %1871
  %1873 = vrot.lane.b32.xlu0 %v1797, 118
  %v1874 = vpop.permute.xlu0 %1873
  %v1875 = vsel %vm37, %v1872, %v1874
  %v1877 = vadd.f32 %v1868, %v1875
  %v1878 = vmul.f32 %v1877, 0.0010283801
  %1880 = vrot.lane.b32.xlu0 %v1878, 5
  %v1881 = vpop.permute.xlu0 %1880
  %v1883 = vadd.f32 %v1798, %v1881
  %v1884 = vadd.f32 %v1799, %v1881
  %1885 = vrot.lane.b32.xlu0 %v1780, 120
  %v1886 = vpop.permute.xlu0 %1885
  %1887 = vrot.lane.b32.xlu0 %v1781, 120
  %v1888 = vpop.permute.xlu0 %1887
  %v1889 = vsel %vm116, %v1886, %v1888
  %v1892 = vadd.f32 %v1780, %v1889
  %v1893 = vadd.f32 %v1781, %v1888
  %v1894 = vmul.f32 %v1892, 0.007598758
  %v1895 = vmul.f32 %v1893, 0.007598758
  %1898 = vrot.lane.b32.xlu0 %v1894, 4
  %v1899 = vpop.permute.xlu0 %1898
  %1900 = vrot.lane.b32.xlu0 %v1895, 4
  %v1901 = vpop.permute.xlu0 %1900
  %v1902 = vsel %vm130, %v1899, %v1901
  %v1905 = vadd.f32 %v1816, %v1899
  %v1906 = vadd.f32 %v1817, %v1902
  %1907 = vrot.lane.b32.xlu0 %v1782, 120
  %v1908 = vpop.permute.xlu0 %1907
  %1909 = vrot.lane.b32.xlu0 %v1783, 120
  %v1910 = vpop.permute.xlu0 %1909
  %v1911 = vsel %vm116, %v1908, %v1910
  %v1914 = vadd.f32 %v1782, %v1911
  %v1915 = vadd.f32 %v1783, %v1910
  %v1916 = vmul.f32 %v1914, 0.007598758
  %v1917 = vmul.f32 %v1915, 0.007598758
  %1920 = vrot.lane.b32.xlu0 %v1916, 4
  %v1921 = vpop.permute.xlu0 %1920
  %1922 = vrot.lane.b32.xlu0 %v1917, 4
  %v1923 = vpop.permute.xlu0 %1922
  %v1924 = vsel %vm130, %v1921, %v1923
  %v1927 = vadd.f32 %v1832, %v1921
  %v1928 = vadd.f32 %v1833, %v1924
  %1929 = vrot.lane.b32.xlu0 %v1788, 120
  %v1930 = vpop.permute.xlu0 %1929
  %1931 = vrot.lane.b32.xlu0 %v1789, 120
  %v1932 = vpop.permute.xlu0 %1931
  %v1933 = vsel %vm116, %v1930, %v1932
  %v1936 = vadd.f32 %v1788, %v1933
  %v1937 = vadd.f32 %v1789, %v1932
  %v1938 = vmul.f32 %v1936, 0.007598758
  %v1939 = vmul.f32 %v1937, 0.007598758
  %1942 = vrot.lane.b32.xlu0 %v1938, 4
  %v1943 = vpop.permute.xlu0 %1942
  %1944 = vrot.lane.b32.xlu0 %v1939, 4
  %v1945 = vpop.permute.xlu0 %1944
  %v1946 = vsel %vm130, %v1943, %v1945
  %v1949 = vadd.f32 %v1849, %v1943
  %v1950 = vadd.f32 %v1850, %v1946
  %1951 = vrot.lane.b32.xlu0 %v1792, 120
  %v1952 = vpop.permute.xlu0 %1951
  %1953 = vrot.lane.b32.xlu0 %v1793, 120
  %v1954 = vpop.permute.xlu0 %1953
  %v1955 = vsel %vm116, %v1952, %v1954
  %v1958 = vadd.f32 %v1792, %v1955
  %v1959 = vadd.f32 %v1793, %v1954
  %v1960 = vmul.f32 %v1958, 0.007598758
  %v1961 = vmul.f32 %v1959, 0.007598758
  %1964 = vrot.lane.b32.xlu0 %v1960, 4
  %v1965 = vpop.permute.xlu0 %1964
  %1966 = vrot.lane.b32.xlu0 %v1961, 4
  %v1967 = vpop.permute.xlu0 %1966
  %v1968 = vsel %vm130, %v1965, %v1967
  %v1971 = vadd.f32 %v1866, %v1965
  %v1972 = vadd.f32 %v1867, %v1968
  %1973 = vrot.lane.b32.xlu0 %v1796, 120
  %v1974 = vpop.permute.xlu0 %1973
  %1975 = vrot.lane.b32.xlu0 %v1797, 120
  %v1976 = vpop.permute.xlu0 %1975
  %v1977 = vsel %vm116, %v1974, %v1976
  %v1980 = vadd.f32 %v1796, %v1977
  %v1981 = vadd.f32 %v1797, %v1976
  %v1982 = vmul.f32 %v1980, 0.007598758
  %v1983 = vmul.f32 %v1981, 0.007598758
  %1986 = vrot.lane.b32.xlu0 %v1982, 4
  %v1987 = vpop.permute.xlu0 %1986
  %1988 = vrot.lane.b32.xlu0 %v1983, 4
  %v1989 = vpop.permute.xlu0 %1988
  %v1990 = vsel %vm130, %v1987, %v1989
  %v1993 = vadd.f32 %v1883, %v1987
  %v1994 = vadd.f32 %v1884, %v1990
  %1995 = vrot.lane.b32.xlu0 %v1780, 122
  %v1996 = vpop.permute.xlu0 %1995
  %1997 = vrot.lane.b32.xlu0 %v1781, 122
  %v1998 = vpop.permute.xlu0 %1997
  %v1999 = vsel %vm228, %v1996, %v1998
  %v2002 = vadd.f32 %v1780, %v1999
  %v2003 = vadd.f32 %v1781, %v1998
  %v2004 = vmul.f32 %v2002, 0.036000773
  %v2005 = vmul.f32 %v2003, 0.036000773
  %2008 = vrot.lane.b32.xlu0 %v2004, 3
  %v2009 = vpop.permute.xlu0 %2008
  %2010 = vrot.lane.b32.xlu0 %v2005, 3
  %v2011 = vpop.permute.xlu0 %2010
  %v2012 = vsel %vm242, %v2009, %v2011
  %v2015 = vadd.f32 %v1905, %v2009
  %v2016 = vadd.f32 %v1906, %v2012
  %2017 = vrot.lane.b32.xlu0 %v1782, 122
  %v2018 = vpop.permute.xlu0 %2017
  %2019 = vrot.lane.b32.xlu0 %v1783, 122
  %v2020 = vpop.permute.xlu0 %2019
  %v2021 = vsel %vm228, %v2018, %v2020
  %v2024 = vadd.f32 %v1782, %v2021
  %v2025 = vadd.f32 %v1783, %v2020
  %v2026 = vmul.f32 %v2024, 0.036000773
  %v2027 = vmul.f32 %v2025, 0.036000773
  %2030 = vrot.lane.b32.xlu0 %v2026, 3
  %v2031 = vpop.permute.xlu0 %2030
  %2032 = vrot.lane.b32.xlu0 %v2027, 3
  %v2033 = vpop.permute.xlu0 %2032
  %v2034 = vsel %vm242, %v2031, %v2033
  %v2037 = vadd.f32 %v1927, %v2031
  %v2038 = vadd.f32 %v1928, %v2034
  %2039 = vrot.lane.b32.xlu0 %v1788, 122
  %v2040 = vpop.permute.xlu0 %2039
  %2041 = vrot.lane.b32.xlu0 %v1789, 122
  %v2042 = vpop.permute.xlu0 %2041
  %v2043 = vsel %vm228, %v2040, %v2042
  %v2046 = vadd.f32 %v1788, %v2043
  %v2047 = vadd.f32 %v1789, %v2042
  %v2048 = vmul.f32 %v2046, 0.036000773
  %v2049 = vmul.f32 %v2047, 0.036000773
  %2052 = vrot.lane.b32.xlu0 %v2048, 3
  %v2053 = vpop.permute.xlu0 %2052
  %2054 = vrot.lane.b32.xlu0 %v2049, 3
  %v2055 = vpop.permute.xlu0 %2054
  %v2056 = vsel %vm242, %v2053, %v2055
  %v2059 = vadd.f32 %v1949, %v2053
  %v2060 = vadd.f32 %v1950, %v2056
  %2061 = vrot.lane.b32.xlu0 %v1792, 122
  %v2062 = vpop.permute.xlu0 %2061
  %2063 = vrot.lane.b32.xlu0 %v1793, 122
  %v2064 = vpop.permute.xlu0 %2063
  %v2065 = vsel %vm228, %v2062, %v2064
  %v2068 = vadd.f32 %v1792, %v2065
  %v2069 = vadd.f32 %v1793, %v2064
  %v2070 = vmul.f32 %v2068, 0.036000773
  %v2071 = vmul.f32 %v2069, 0.036000773
  %2074 = vrot.lane.b32.xlu0 %v2070, 3
  %v2075 = vpop.permute.xlu0 %2074
  %2076 = vrot.lane.b32.xlu0 %v2071, 3
  %v2077 = vpop.permute.xlu0 %2076
  %v2078 = vsel %vm242, %v2075, %v2077
  %v2081 = vadd.f32 %v1971, %v2075
  %v2082 = vadd.f32 %v1972, %v2078
  %2083 = vrot.lane.b32.xlu0 %v1796, 122
  %v2084 = vpop.permute.xlu0 %2083
  %2085 = vrot.lane.b32.xlu0 %v1797, 122
  %v2086 = vpop.permute.xlu0 %2085
  %v2087 = vsel %vm228, %v2084, %v2086
  %v2090 = vadd.f32 %v1796, %v2087
  %v2091 = vadd.f32 %v1797, %v2086
  %v2092 = vmul.f32 %v2090, 0.036000773
  %v2093 = vmul.f32 %v2091, 0.036000773
  %2096 = vrot.lane.b32.xlu0 %v2092, 3
  %v2097 = vpop.permute.xlu0 %2096
  %2098 = vrot.lane.b32.xlu0 %v2093, 3
  %v2099 = vpop.permute.xlu0 %2098
  %v2100 = vsel %vm242, %v2097, %v2099
  %v2103 = vadd.f32 %v1993, %v2097
  %v2104 = vadd.f32 %v1994, %v2100
  %2105 = vrot.lane.b32.xlu0 %v1780, 124
  %v2106 = vpop.permute.xlu0 %2105
  %2107 = vrot.lane.b32.xlu0 %v1781, 124
  %v2108 = vpop.permute.xlu0 %2107
  %v2109 = vsel %vm340, %v2106, %v2108
  %v2112 = vadd.f32 %v1780, %v2109
  %v2113 = vadd.f32 %v1781, %v2108
  %v2114 = vmul.f32 %v2112, 0.10936069
  %v2115 = vmul.f32 %v2113, 0.10936069
  %2118 = vrot.lane.b32.xlu0 %v2114, 2
  %v2119 = vpop.permute.xlu0 %2118
  %2120 = vrot.lane.b32.xlu0 %v2115, 2
  %v2121 = vpop.permute.xlu0 %2120
  %v2122 = vsel %vm354, %v2119, %v2121
  %v2125 = vadd.f32 %v2015, %v2119
  %v2126 = vadd.f32 %v2016, %v2122
  %2127 = vrot.lane.b32.xlu0 %v1782, 124
  %v2128 = vpop.permute.xlu0 %2127
  %2129 = vrot.lane.b32.xlu0 %v1783, 124
  %v2130 = vpop.permute.xlu0 %2129
  %v2131 = vsel %vm340, %v2128, %v2130
  %v2134 = vadd.f32 %v1782, %v2131
  %v2135 = vadd.f32 %v1783, %v2130
  %v2136 = vmul.f32 %v2134, 0.10936069
  %v2137 = vmul.f32 %v2135, 0.10936069
  %2140 = vrot.lane.b32.xlu0 %v2136, 2
  %v2141 = vpop.permute.xlu0 %2140
  %2142 = vrot.lane.b32.xlu0 %v2137, 2
  %v2143 = vpop.permute.xlu0 %2142
  %v2144 = vsel %vm354, %v2141, %v2143
  %v2147 = vadd.f32 %v2037, %v2141
  %v2148 = vadd.f32 %v2038, %v2144
  %2149 = vrot.lane.b32.xlu0 %v1788, 124
  %v2150 = vpop.permute.xlu0 %2149
  %2151 = vrot.lane.b32.xlu0 %v1789, 124
  %v2152 = vpop.permute.xlu0 %2151
  %v2153 = vsel %vm340, %v2150, %v2152
  %v2156 = vadd.f32 %v1788, %v2153
  %v2157 = vadd.f32 %v1789, %v2152
  %v2158 = vmul.f32 %v2156, 0.10936069
  %v2159 = vmul.f32 %v2157, 0.10936069
  %2162 = vrot.lane.b32.xlu0 %v2158, 2
  %v2163 = vpop.permute.xlu0 %2162
  %2164 = vrot.lane.b32.xlu0 %v2159, 2
  %v2165 = vpop.permute.xlu0 %2164
  %v2166 = vsel %vm354, %v2163, %v2165
  %v2169 = vadd.f32 %v2059, %v2163
  %v2170 = vadd.f32 %v2060, %v2166
  %2171 = vrot.lane.b32.xlu0 %v1792, 124
  %v2172 = vpop.permute.xlu0 %2171
  %2173 = vrot.lane.b32.xlu0 %v1793, 124
  %v2174 = vpop.permute.xlu0 %2173
  %v2175 = vsel %vm340, %v2172, %v2174
  %v2178 = vadd.f32 %v1792, %v2175
  %v2179 = vadd.f32 %v1793, %v2174
  %v2180 = vmul.f32 %v2178, 0.10936069
  %v2181 = vmul.f32 %v2179, 0.10936069
  %2184 = vrot.lane.b32.xlu0 %v2180, 2
  %v2185 = vpop.permute.xlu0 %2184
  %2186 = vrot.lane.b32.xlu0 %v2181, 2
  %v2187 = vpop.permute.xlu0 %2186
  %v2188 = vsel %vm354, %v2185, %v2187
  %v2191 = vadd.f32 %v2081, %v2185
  %v2192 = vadd.f32 %v2082, %v2188
  %2193 = vrot.lane.b32.xlu0 %v1796, 124
  %v2194 = vpop.permute.xlu0 %2193
  %2195 = vrot.lane.b32.xlu0 %v1797, 124
  %v2196 = vpop.permute.xlu0 %2195
  %v2197 = vsel %vm340, %v2194, %v2196
  %v2200 = vadd.f32 %v1796, %v2197
  %v2201 = vadd.f32 %v1797, %v2196
  %v2202 = vmul.f32 %v2200, 0.10936069
  %v2203 = vmul.f32 %v2201, 0.10936069
  %2206 = vrot.lane.b32.xlu0 %v2202, 2
  %v2207 = vpop.permute.xlu0 %2206
  %2208 = vrot.lane.b32.xlu0 %v2203, 2
  %v2209 = vpop.permute.xlu0 %2208
  %v2210 = vsel %vm354, %v2207, %v2209
  %v2213 = vadd.f32 %v2103, %v2207
  %v2214 = vadd.f32 %v2104, %v2210
  %2215 = vrot.lane.b32.xlu0 %v1780, 126
  %v2216 = vpop.permute.xlu0 %2215
  %2217 = vrot.lane.b32.xlu0 %v1781, 126
  %v2218 = vpop.permute.xlu0 %2217
  %v2219 = vsel %vm452, %v2216, %v2218
  %v2222 = vadd.f32 %v1780, %v2219
  %v2223 = vadd.f32 %v1781, %v2218
  %v2224 = vmul.f32 %v2222, 0.21300554
  %v2225 = vmul.f32 %v2223, 0.21300554
  %2228 = vrot.lane.b32.xlu0 %v2224, 1
  %v2229 = vpop.permute.xlu0 %2228
  %2230 = vrot.lane.b32.xlu0 %v2225, 1
  %v2231 = vpop.permute.xlu0 %2230
  %v2232 = vsel %vm466, %v2229, %v2231
  %v2235 = vadd.f32 %v2125, %v2229
  %v2236 = vadd.f32 %v2126, %v2232
  %2237 = vrot.lane.b32.xlu0 %v1782, 126
  %v2238 = vpop.permute.xlu0 %2237
  %2239 = vrot.lane.b32.xlu0 %v1783, 126
  %v2240 = vpop.permute.xlu0 %2239
  %v2241 = vsel %vm452, %v2238, %v2240
  %v2244 = vadd.f32 %v1782, %v2241
  %v2245 = vadd.f32 %v1783, %v2240
  %v2246 = vmul.f32 %v2244, 0.21300554
  %v2247 = vmul.f32 %v2245, 0.21300554
  %2250 = vrot.lane.b32.xlu0 %v2246, 1
  %v2251 = vpop.permute.xlu0 %2250
  %2252 = vrot.lane.b32.xlu0 %v2247, 1
  %v2253 = vpop.permute.xlu0 %2252
  %v2254 = vsel %vm466, %v2251, %v2253
  %v2257 = vadd.f32 %v2147, %v2251
  %v2258 = vadd.f32 %v2148, %v2254
  %2259 = vrot.lane.b32.xlu0 %v1788, 126
  %v2260 = vpop.permute.xlu0 %2259
  %2261 = vrot.lane.b32.xlu0 %v1789, 126
  %v2262 = vpop.permute.xlu0 %2261
  %v2263 = vsel %vm452, %v2260, %v2262
  %v2266 = vadd.f32 %v1788, %v2263
  %v2267 = vadd.f32 %v1789, %v2262
  %v2268 = vmul.f32 %v2266, 0.21300554
  %v2269 = vmul.f32 %v2267, 0.21300554
  %2272 = vrot.lane.b32.xlu0 %v2268, 1
  %v2273 = vpop.permute.xlu0 %2272
  %2274 = vrot.lane.b32.xlu0 %v2269, 1
  %v2275 = vpop.permute.xlu0 %2274
  %v2276 = vsel %vm466, %v2273, %v2275
  %v2279 = vadd.f32 %v2169, %v2273
  %v2280 = vadd.f32 %v2170, %v2276
  %2281 = vrot.lane.b32.xlu0 %v1792, 126
  %v2282 = vpop.permute.xlu0 %2281
  %2283 = vrot.lane.b32.xlu0 %v1793, 126
  %v2284 = vpop.permute.xlu0 %2283
  %v2285 = vsel %vm452, %v2282, %v2284
  %v2288 = vadd.f32 %v1792, %v2285
  %v2289 = vadd.f32 %v1793, %v2284
  %v2290 = vmul.f32 %v2288, 0.21300554
  %v2291 = vmul.f32 %v2289, 0.21300554
  %2294 = vrot.lane.b32.xlu0 %v2290, 1
  %v2295 = vpop.permute.xlu0 %2294
  %2296 = vrot.lane.b32.xlu0 %v2291, 1
  %v2297 = vpop.permute.xlu0 %2296
  %v2298 = vsel %vm466, %v2295, %v2297
  %v2301 = vadd.f32 %v2191, %v2295
  %v2302 = vadd.f32 %v2192, %v2298
  %2303 = vrot.lane.b32.xlu0 %v1796, 126
  %v2304 = vpop.permute.xlu0 %2303
  %2305 = vrot.lane.b32.xlu0 %v1797, 126
  %v2306 = vpop.permute.xlu0 %2305
  %v2307 = vsel %vm452, %v2304, %v2306
  %v2310 = vadd.f32 %v1796, %v2307
  %v2311 = vadd.f32 %v1797, %v2306
  %v2312 = vmul.f32 %v2310, 0.21300554
  %v2313 = vmul.f32 %v2311, 0.21300554
  %2316 = vrot.lane.b32.xlu0 %v2312, 1
  %v2317 = vpop.permute.xlu0 %2316
  %2318 = vrot.lane.b32.xlu0 %v2313, 1
  %v2319 = vpop.permute.xlu0 %2318
  %v2320 = vsel %vm466, %v2317, %v2319
  %v2323 = vadd.f32 %v2213, %v2317
  %v2324 = vadd.f32 %v2214, %v2320
  %2327 = vrot.lane.b32.xlu0 %v2235, 123
  %v2328 = vpop.permute.xlu0 %2327
  %2329 = vrot.lane.b32.xlu0 %v2236, 123
  %v2330 = vpop.permute.xlu0 %2329
  %v2331 = vsel %vm566, %v2328, %v2330
  %2333 = vst [vmem:[#allocation2 + $0x18] sm:$0xff] %v2331
  %2336 = vrot.lane.b32.xlu0 %v2257, 123
  %v2337 = vpop.permute.xlu0 %2336
  %2338 = vrot.lane.b32.xlu0 %v2258, 123
  %v2339 = vpop.permute.xlu0 %2338
  %v2340 = vsel %vm566, %v2337, %v2339
  %2342 = vst [vmem:[%s578 + $0x18] sm:$0xff] %v2340
  %2345 = vrot.lane.b32.xlu0 %v2279, 123
  %v2346 = vpop.permute.xlu0 %2345
  %2347 = vrot.lane.b32.xlu0 %v2280, 123
  %v2348 = vpop.permute.xlu0 %2347
  %v2349 = vsel %vm566, %v2346, %v2348
  %2351 = vst [vmem:[%s588 + $0x18] sm:$0xff] %v2349
  %2354 = vrot.lane.b32.xlu0 %v2301, 123
  %v2355 = vpop.permute.xlu0 %2354
  %2356 = vrot.lane.b32.xlu0 %v2302, 123
  %v2357 = vpop.permute.xlu0 %2356
  %v2358 = vsel %vm566, %v2355, %v2357
  %2360 = vst [vmem:[%s598 + $0x18] sm:$0xff] %v2358
  %2363 = vrot.lane.b32.xlu0 %v2323, 123
  %v2364 = vpop.permute.xlu0 %2363
  %2365 = vrot.lane.b32.xlu0 %v2324, 123
  %v2366 = vpop.permute.xlu0 %2365
  %v2367 = vsel %vm566, %v2364, %v2366
  %2369 = vst [vmem:[%s608 + $0x18] sm:$0xff] %v2367
  %v2370 = vlaneseq
  %v2371 = vand.u32 %v2370, 127
  %vm2372 = vcmp.lt.s32.totalorder %v2371, 16
  %v2373 = vlaneseq
  %v2374 = vshrl.u32 %v2373, 7
  %v2375 = vld [vmem:[#allocation2 + $0x5] sm:$0xff]
  %v2376 = vmul.f32 %v2375, 0.26601171
  %v2377 = vld [vmem:[#allocation2] sm:$0xff]
  %v2378 = vld [vmem:[#allocation2 + $0xa] sm:$0xff]
  %v2379 = vadd.f32 %v2377, %v2378
  %v2380 = vmul.f32 %v2379, 0.0010283801
  %v2381 = vadd.f32 %v2376, %v2380
  %v2382 = vld [vmem:[#allocation2 + $0x1] sm:$0xff]
  %v2383 = vld [vmem:[#allocation2 + $0x9] sm:$0xff]
  %v2384 = vadd.f32 %v2382, %v2383
  %v2385 = vmul.f32 %v2384, 0.007598758
  %v2386 = vadd.f32 %v2381, %v2385
  %v2387 = vld [vmem:[#allocation2 + $0x2] sm:$0xff]
  %v2388 = vld [vmem:[#allocation2 + $0x8] sm:$0xff]
  %v2389 = vadd.f32 %v2387, %v2388
  %v2390 = vmul.f32 %v2389, 0.036000773
  %v2391 = vadd.f32 %v2386, %v2390
  %v2392 = vld [vmem:[#allocation2 + $0x3] sm:$0xff]
  %v2393 = vld [vmem:[#allocation2 + $0x7] sm:$0xff]
  %v2394 = vadd.f32 %v2392, %v2393
  %v2395 = vmul.f32 %v2394, 0.10936069
  %v2396 = vadd.f32 %v2391, %v2395
  %v2397 = vld [vmem:[#allocation2 + $0x4] sm:$0xff]
  %v2398 = vld [vmem:[#allocation2 + $0x6] sm:$0xff]
  %v2399 = vadd.f32 %v2397, %v2398
  %v2400 = vmul.f32 %v2399, 0.21300554
  %v2401 = vadd.f32 %v2396, %v2400
  %v2402 = vld [vmem:[%s578 + $0x5] sm:$0xff]
  %v2403 = vmul.f32 %v2402, 0.26601171
  %v2404 = vld [vmem:[%s578] sm:$0xff]
  %v2405 = vld [vmem:[%s578 + $0xa] sm:$0xff]
  %v2406 = vadd.f32 %v2404, %v2405
  %v2407 = vmul.f32 %v2406, 0.0010283801
  %v2408 = vadd.f32 %v2403, %v2407
  %v2409 = vld [vmem:[%s578 + $0x1] sm:$0xff]
  %v2410 = vld [vmem:[%s578 + $0x9] sm:$0xff]
  %v2411 = vadd.f32 %v2409, %v2410
  %v2412 = vmul.f32 %v2411, 0.007598758
  %v2413 = vadd.f32 %v2408, %v2412
  %v2414 = vld [vmem:[%s578 + $0x2] sm:$0xff]
  %v2415 = vld [vmem:[%s578 + $0x8] sm:$0xff]
  %v2416 = vadd.f32 %v2414, %v2415
  %v2417 = vmul.f32 %v2416, 0.036000773
  %v2418 = vadd.f32 %v2413, %v2417
  %v2419 = vld [vmem:[%s578 + $0x3] sm:$0xff]
  %v2420 = vld [vmem:[%s578 + $0x7] sm:$0xff]
  %v2421 = vadd.f32 %v2419, %v2420
  %v2422 = vmul.f32 %v2421, 0.10936069
  %v2423 = vadd.f32 %v2418, %v2422
  %v2424 = vld [vmem:[%s578 + $0x4] sm:$0xff]
  %v2425 = vld [vmem:[%s578 + $0x6] sm:$0xff]
  %v2426 = vadd.f32 %v2424, %v2425
  %v2427 = vmul.f32 %v2426, 0.21300554
  %v2428 = vadd.f32 %v2423, %v2427
  %v2429 = vld [vmem:[%s588 + $0x5] sm:$0xff]
  %v2430 = vmul.f32 %v2429, 0.26601171
  %v2431 = vld [vmem:[%s588] sm:$0xff]
  %v2432 = vld [vmem:[%s588 + $0xa] sm:$0xff]
  %v2433 = vadd.f32 %v2431, %v2432
  %v2434 = vmul.f32 %v2433, 0.0010283801
  %v2435 = vadd.f32 %v2430, %v2434
  %v2436 = vld [vmem:[%s588 + $0x1] sm:$0xff]
  %v2437 = vld [vmem:[%s588 + $0x9] sm:$0xff]
  %v2438 = vadd.f32 %v2436, %v2437
  %v2439 = vmul.f32 %v2438, 0.007598758
  %v2440 = vadd.f32 %v2435, %v2439
  %v2441 = vld [vmem:[%s588 + $0x2] sm:$0xff]
  %v2442 = vld [vmem:[%s588 + $0x8] sm:$0xff]
  %v2443 = vadd.f32 %v2441, %v2442
  %v2444 = vmul.f32 %v2443, 0.036000773
  %v2445 = vadd.f32 %v2440, %v2444
  %v2446 = vld [vmem:[%s588 + $0x3] sm:$0xff]
  %v2447 = vld [vmem:[%s588 + $0x7] sm:$0xff]
  %v2448 = vadd.f32 %v2446, %v2447
  %v2449 = vmul.f32 %v2448, 0.10936069
  %v2450 = vadd.f32 %v2445, %v2449
  %v2451 = vld [vmem:[%s588 + $0x4] sm:$0xff]
  %v2452 = vld [vmem:[%s588 + $0x6] sm:$0xff]
  %v2453 = vadd.f32 %v2451, %v2452
  %v2454 = vmul.f32 %v2453, 0.21300554
  %v2455 = vadd.f32 %v2450, %v2454
  %v2456 = vld [vmem:[%s598 + $0x5] sm:$0xff]
  %v2457 = vmul.f32 %v2456, 0.26601171
  %v2458 = vld [vmem:[%s598] sm:$0xff]
  %v2459 = vld [vmem:[%s598 + $0xa] sm:$0xff]
  %v2460 = vadd.f32 %v2458, %v2459
  %v2461 = vmul.f32 %v2460, 0.0010283801
  %v2462 = vadd.f32 %v2457, %v2461
  %v2463 = vld [vmem:[%s598 + $0x1] sm:$0xff]
  %v2464 = vld [vmem:[%s598 + $0x9] sm:$0xff]
  %v2465 = vadd.f32 %v2463, %v2464
  %v2466 = vmul.f32 %v2465, 0.007598758
  %v2467 = vadd.f32 %v2462, %v2466
  %v2468 = vld [vmem:[%s598 + $0x2] sm:$0xff]
  %v2469 = vld [vmem:[%s598 + $0x8] sm:$0xff]
  %v2470 = vadd.f32 %v2468, %v2469
  %v2471 = vmul.f32 %v2470, 0.036000773
  %v2472 = vadd.f32 %v2467, %v2471
  %v2473 = vld [vmem:[%s598 + $0x3] sm:$0xff]
  %v2474 = vld [vmem:[%s598 + $0x7] sm:$0xff]
  %v2475 = vadd.f32 %v2473, %v2474
  %v2476 = vmul.f32 %v2475, 0.10936069
  %v2477 = vadd.f32 %v2472, %v2476
  %v2478 = vld [vmem:[%s598 + $0x4] sm:$0xff]
  %v2479 = vld [vmem:[%s598 + $0x6] sm:$0xff]
  %v2480 = vadd.f32 %v2478, %v2479
  %v2481 = vmul.f32 %v2480, 0.21300554
  %v2482 = vadd.f32 %v2477, %v2481
  %v2483 = vld [vmem:[%s608 + $0x5] sm:$0xff]
  %v2484 = vmul.f32 %v2483, 0.26601171
  %v2485 = vld [vmem:[%s608] sm:$0xff]
  %v2486 = vld [vmem:[%s608 + $0xa] sm:$0xff]
  %v2487 = vadd.f32 %v2485, %v2486
  %v2488 = vmul.f32 %v2487, 0.0010283801
  %v2489 = vadd.f32 %v2484, %v2488
  %v2490 = vld [vmem:[%s608 + $0x1] sm:$0xff]
  %v2491 = vld [vmem:[%s608 + $0x9] sm:$0xff]
  %v2492 = vadd.f32 %v2490, %v2491
  %v2493 = vmul.f32 %v2492, 0.007598758
  %v2494 = vadd.f32 %v2489, %v2493
  %v2495 = vld [vmem:[%s608 + $0x2] sm:$0xff]
  %v2496 = vld [vmem:[%s608 + $0x8] sm:$0xff]
  %v2497 = vadd.f32 %v2495, %v2496
  %v2498 = vmul.f32 %v2497, 0.036000773
  %v2499 = vadd.f32 %v2494, %v2498
  %v2500 = vld [vmem:[%s608 + $0x3] sm:$0xff]
  %v2501 = vld [vmem:[%s608 + $0x7] sm:$0xff]
  %v2502 = vadd.f32 %v2500, %v2501
  %v2503 = vmul.f32 %v2502, 0.10936069
  %v2504 = vadd.f32 %v2499, %v2503
  %v2505 = vld [vmem:[%s608 + $0x4] sm:$0xff]
  %v2506 = vld [vmem:[%s608 + $0x6] sm:$0xff]
  %v2507 = vadd.f32 %v2505, %v2506
  %v2508 = vmul.f32 %v2507, 0.21300554
  %v2509 = vadd.f32 %v2504, %v2508
  %v2510 = vmul.f32 %v2401, %v2401
  %v2511 = vmul.f32 %v2428, %v2428
  %v2512 = vmul.f32 %v2401, %v2428
  %v2513 = vsub.f32 %v2455, %v2510
  %v2514 = vsub.f32 %v2482, %v2511
  %v2515 = vsub.f32 %v2509, %v2512
  %v2516 = vmul.f32 %v2512, 2.0
  %v2517 = vadd.f32 %v2516, 0.0001
  %v2518 = vmul.f32 %v2515, 2.0
  %v2519 = vadd.f32 %v2518, 0.0009
  %v2520 = vmul.f32 %v2517, %v2519
  %v2521 = vadd.f32 %v2510, %v2511
  %v2522 = vadd.f32 %v2521, 0.0001
  %v2523 = vadd.f32 %v2513, %v2514
  %v2524 = vadd.f32 %v2523, 0.0009
  %v2525 = vmul.f32 %v2522, %v2524
  %v2526 = vrcp.pop %v2525
  %v2527 = vmul.f32 %v2520, %v2526
  %s2528 = smul.u32 0, 16
  %v2529 = vstv %s2528
  %v2530 = vadd.s32 %v2374, %v2529
  %vm2531 = vcmp.lt.s32.totalorder %v2530, 16
  %vm2532 = vmand %vm2531, %vm2372
  %v2533 = vsel %vm2532, %v2527, 0.0
  %v2534 = vadd.f32 %v2533, 0.0
  %v2535 = vld [vmem:[#allocation2 + $0xd] sm:$0xff]
  %v2536 = vmul.f32 %v2535, 0.26601171
  %v2537 = vld [vmem:[#allocation2 + $0x12] sm:$0xff]
  %v2538 = vadd.f32 %v2388, %v2537
  %v2539 = vmul.f32 %v2538, 0.0010283801
  %v2540 = vadd.f32 %v2536, %v2539
  %v2541 = vld [vmem:[#allocation2 + $0x11] sm:$0xff]
  %v2542 = vadd.f32 %v2383, %v2541
  %v2543 = vmul.f32 %v2542, 0.007598758
  %v2544 = vadd.f32 %v2540, %v2543
  %v2545 = vld [vmem:[#allocation2 + $0x10] sm:$0xff]
  %v2546 = vadd.f32 %v2378, %v2545
  %v2547 = vmul.f32 %v2546, 0.036000773
  %v2548 = vadd.f32 %v2544, %v2547
  %v2549 = vld [vmem:[#allocation2 + $0xb] sm:$0xff]
  %v2550 = vld [vmem:[#allocation2 + $0xf] sm:$0xff]
  %v2551 = vadd.f32 %v2549, %v2550
  %v2552 = vmul.f32 %v2551, 0.10936069
  %v2553 = vadd.f32 %v2548, %v2552
  %v2554 = vld [vmem:[#allocation2 + $0xc] sm:$0xff]
  %v2555 = vld [vmem:[#allocation2 + $0xe] sm:$0xff]
  %v2556 = vadd.f32 %v2554, %v2555
  %v2557 = vmul.f32 %v2556, 0.21300554
  %v2558 = vadd.f32 %v2553, %v2557
  %v2559 = vld [vmem:[%s578 + $0xd] sm:$0xff]
  %v2560 = vmul.f32 %v2559, 0.26601171
  %v2561 = vld [vmem:[%s578 + $0x12] sm:$0xff]
  %v2562 = vadd.f32 %v2415, %v2561
  %v2563 = vmul.f32 %v2562, 0.0010283801
  %v2564 = vadd.f32 %v2560, %v2563
  %v2565 = vld [vmem:[%s578 + $0x11] sm:$0xff]
  %v2566 = vadd.f32 %v2410, %v2565
  %v2567 = vmul.f32 %v2566, 0.007598758
  %v2568 = vadd.f32 %v2564, %v2567
  %v2569 = vld [vmem:[%s578 + $0x10] sm:$0xff]
  %v2570 = vadd.f32 %v2405, %v2569
  %v2571 = vmul.f32 %v2570, 0.036000773
  %v2572 = vadd.f32 %v2568, %v2571
  %v2573 = vld [vmem:[%s578 + $0xb] sm:$0xff]
  %v2574 = vld [vmem:[%s578 + $0xf] sm:$0xff]
  %v2575 = vadd.f32 %v2573, %v2574
  %v2576 = vmul.f32 %v2575, 0.10936069
  %v2577 = vadd.f32 %v2572, %v2576
  %v2578 = vld [vmem:[%s578 + $0xc] sm:$0xff]
  %v2579 = vld [vmem:[%s578 + $0xe] sm:$0xff]
  %v2580 = vadd.f32 %v2578, %v2579
  %v2581 = vmul.f32 %v2580, 0.21300554
  %v2582 = vadd.f32 %v2577, %v2581
  %v2583 = vld [vmem:[%s588 + $0xd] sm:$0xff]
  %v2584 = vmul.f32 %v2583, 0.26601171
  %v2585 = vld [vmem:[%s588 + $0x12] sm:$0xff]
  %v2586 = vadd.f32 %v2442, %v2585
  %v2587 = vmul.f32 %v2586, 0.0010283801
  %v2588 = vadd.f32 %v2584, %v2587
  %v2589 = vld [vmem:[%s588 + $0x11] sm:$0xff]
  %v2590 = vadd.f32 %v2437, %v2589
  %v2591 = vmul.f32 %v2590, 0.007598758
  %v2592 = vadd.f32 %v2588, %v2591
  %v2593 = vld [vmem:[%s588 + $0x10] sm:$0xff]
  %v2594 = vadd.f32 %v2432, %v2593
  %v2595 = vmul.f32 %v2594, 0.036000773
  %v2596 = vadd.f32 %v2592, %v2595
  %v2597 = vld [vmem:[%s588 + $0xb] sm:$0xff]
  %v2598 = vld [vmem:[%s588 + $0xf] sm:$0xff]
  %v2599 = vadd.f32 %v2597, %v2598
  %v2600 = vmul.f32 %v2599, 0.10936069
  %v2601 = vadd.f32 %v2596, %v2600
  %v2602 = vld [vmem:[%s588 + $0xc] sm:$0xff]
  %v2603 = vld [vmem:[%s588 + $0xe] sm:$0xff]
  %v2604 = vadd.f32 %v2602, %v2603
  %v2605 = vmul.f32 %v2604, 0.21300554
  %v2606 = vadd.f32 %v2601, %v2605
  %v2607 = vld [vmem:[%s598 + $0xd] sm:$0xff]
  %v2608 = vmul.f32 %v2607, 0.26601171
  %v2609 = vld [vmem:[%s598 + $0x12] sm:$0xff]
  %v2610 = vadd.f32 %v2469, %v2609
  %v2611 = vmul.f32 %v2610, 0.0010283801
  %v2612 = vadd.f32 %v2608, %v2611
  %v2613 = vld [vmem:[%s598 + $0x11] sm:$0xff]
  %v2614 = vadd.f32 %v2464, %v2613
  %v2615 = vmul.f32 %v2614, 0.007598758
  %v2616 = vadd.f32 %v2612, %v2615
  %v2617 = vld [vmem:[%s598 + $0x10] sm:$0xff]
  %v2618 = vadd.f32 %v2459, %v2617
  %v2619 = vmul.f32 %v2618, 0.036000773
  %v2620 = vadd.f32 %v2616, %v2619
  %v2621 = vld [vmem:[%s598 + $0xb] sm:$0xff]
  %v2622 = vld [vmem:[%s598 + $0xf] sm:$0xff]
  %v2623 = vadd.f32 %v2621, %v2622
  %v2624 = vmul.f32 %v2623, 0.10936069
  %v2625 = vadd.f32 %v2620, %v2624
  %v2626 = vld [vmem:[%s598 + $0xc] sm:$0xff]
  %v2627 = vld [vmem:[%s598 + $0xe] sm:$0xff]
  %v2628 = vadd.f32 %v2626, %v2627
  %v2629 = vmul.f32 %v2628, 0.21300554
  %v2630 = vadd.f32 %v2625, %v2629
  %v2631 = vld [vmem:[%s608 + $0xd] sm:$0xff]
  %v2632 = vmul.f32 %v2631, 0.26601171
  %v2633 = vld [vmem:[%s608 + $0x12] sm:$0xff]
  %v2634 = vadd.f32 %v2496, %v2633
  %v2635 = vmul.f32 %v2634, 0.0010283801
  %v2636 = vadd.f32 %v2632, %v2635
  %v2637 = vld [vmem:[%s608 + $0x11] sm:$0xff]
  %v2638 = vadd.f32 %v2491, %v2637
  %v2639 = vmul.f32 %v2638, 0.007598758
  %v2640 = vadd.f32 %v2636, %v2639
  %v2641 = vld [vmem:[%s608 + $0x10] sm:$0xff]
  %v2642 = vadd.f32 %v2486, %v2641
  %v2643 = vmul.f32 %v2642, 0.036000773
  %v2644 = vadd.f32 %v2640, %v2643
  %v2645 = vld [vmem:[%s608 + $0xb] sm:$0xff]
  %v2646 = vld [vmem:[%s608 + $0xf] sm:$0xff]
  %v2647 = vadd.f32 %v2645, %v2646
  %v2648 = vmul.f32 %v2647, 0.10936069
  %v2649 = vadd.f32 %v2644, %v2648
  %v2650 = vld [vmem:[%s608 + $0xc] sm:$0xff]
  %v2651 = vld [vmem:[%s608 + $0xe] sm:$0xff]
  %v2652 = vadd.f32 %v2650, %v2651
  %v2653 = vmul.f32 %v2652, 0.21300554
  %v2654 = vadd.f32 %v2649, %v2653
  %v2655 = vmul.f32 %v2558, %v2558
  %v2656 = vmul.f32 %v2582, %v2582
  %v2657 = vmul.f32 %v2558, %v2582
  %v2658 = vsub.f32 %v2606, %v2655
  %v2659 = vsub.f32 %v2630, %v2656
  %v2660 = vsub.f32 %v2654, %v2657
  %v2661 = vmul.f32 %v2657, 2.0
  %v2662 = vadd.f32 %v2661, 0.0001
  %v2663 = vmul.f32 %v2660, 2.0
  %v2664 = vadd.f32 %v2663, 0.0009
  %v2665 = vmul.f32 %v2662, %v2664
  %v2666 = vadd.f32 %v2655, %v2656
  %v2667 = vadd.f32 %v2666, 0.0001
  %v2668 = vadd.f32 %v2658, %v2659
  %v2669 = vadd.f32 %v2668, 0.0009
  %v2670 = vmul.f32 %v2667, %v2669
  %v2671 = vrcp.pop %v2670
  %v2672 = vmul.f32 %v2665, %v2671
  %s2673 = sadd.s32 %s2528, 8
  %v2674 = vstv %s2673
  %v2675 = vadd.s32 %v2374, %v2674
  %vm2676 = vcmp.lt.s32.totalorder %v2675, 16
  %vm2677 = vmand %vm2676, %vm2372
  %v2678 = vsel %vm2677, %v2672, 0.0
  %v2679 = vadd.f32 %v2534, %v2678
  %2680 = vadd.xlane.f32.xlu0 %v2679
  %v2681 = vpop.xlane.xlu0 %2680
  %v2682 = vrot.slane %v2681, 4
  %v2683 = vadd.f32 %v2681, %v2682
  %v2684 = vrot.slane %v2683, 2
  %v2685 = vadd.f32 %v2683, %v2684
  %v2686 = vrot.slane %v2685, 1
  %v2687 = vadd.f32 %v2685, %v2686
  %s2688 = vtos %v2687
  %v2689 = vstv %s2688
  %2690 = vst [vmem:[%s2] sm:$0xff] %v2689
  // Predicated region
  $region10: #{ssim.1} parent=0 // pred_check
    _
  $region11: #{ssim.1} parent=0 // pred_check_branch
    %2692 = sbr.rel (0) target = $region13
  $region12: #{ssim.1} parent=0 // pred_region
    _
  $region13: #{ssim.1} parent=0 // pred_fallthru
    _
  // Predicated region
  $region14: #{ssim.1} parent=0 // pred_check
    _
  $region15: #{ssim.1} parent=0 // pred_check_branch
    %2694 = sbr.rel (0) target = $region17
  $region16: #{ssim.1} parent=0 // pred_region
    _
  $region17: #{ssim.1} parent=0 // pred_fallthru
    _

</llo_original>
